<compile_context>
chip_gen: v5e
topology: v5e:2x2
jax: 0.10.0
libtpu: 0.0.40
codegen_flags: <defaults>
</compile_context>

<pallas_src>
import functools

import jax
import jax.numpy as jnp
from jax import lax
from jax.experimental import pallas as pl
from jax.experimental.pallas import tpu as pltpu


def _round_up(x, m):
    return -(-x // m) * m


# ---------------- pass 1: conv (single K-folded MXU matmul) + BN partial stats --------

def _conv_stats_kernel(xs_ref, w_ref, y_ref, stats_ref, *, ks, wp, m):
    # xs_ref   : [(th+ks-1)*wp + ks-1, cin] bf16  flattened padded-input rows of the tile
    # w_ref    : [ks*ks*cin, cout]          bf16  flipped ConvTranspose weight (resident)
    # y_ref    : [m, cout]                  bf16  conv output tile (m = th*wp rows)
    # stats_ref: [2, cout]                  f32   per-tile [sum, sum of squares]
    patches = []
    for p in range(ks):
        for q in range(ks):
            off = p * wp + q                      # contiguous shifted window, stays bf16
            patches.append(xs_ref[off:off + m, :])
    cols = jnp.concatenate(patches, axis=-1)      # [m, ks*ks*cin] bf16 im2col slab

    acc = jnp.dot(cols, w_ref[...], preferred_element_type=jnp.float32)   # [m, cout] f32

    # BN partial stats from the f32 accumulator (unaffected by the bf16 y store below).
    stats_ref[...] = jnp.concatenate(
        [jnp.sum(acc, axis=0, keepdims=True),
         jnp.sum(acc * acc, axis=0, keepdims=True)], axis=0)
    y_ref[...] = acc.astype(y_ref.dtype)


# ---------------- pass 2: fused BN (scale/shift) + LeakyReLU, lane-dense --------------

def _bn_lrelu_kernel(y_ref, scale_ref, shift_ref, o_ref, *, slope):
    # bf16 loads, f32 math (portable incl. v5e), out dtype as requested.
    v = y_ref[...].astype(jnp.float32) * scale_ref[...] + shift_ref[...]
    o_ref[...] = jnp.where(v >= 0, v, slope * v).astype(o_ref.dtype)


# ---------------------------------- one conv block ------------------------------------

def conv_transpose_bn_lrelu(x_nhwc, w, gamma, beta, *, ks, eps=1e-5, slope=0.01,
                            out_dtype=jnp.float32, vmem_budget=12 * 1024 * 1024):
    """ConvTranspose2d(stride=1) + BatchNorm2d(training) + LeakyReLU.

    x_nhwc: [N, H, W, Cin];  w: [Cin, Cout, ks, ks] (PyTorch ConvTranspose2d layout);
    gamma/beta: [Cout].  Conv bias intentionally omitted (cancelled by training BN).
    """
    n, h, wdt, cin = x_nhwc.shape
    cout = w.shape[1]
    pad = ks - 1
    hout, wout = h + pad, wdt + pad
    wp = _round_up(wdt + 2 * pad, 8)     # sublane-aligned row pitch (extra cols are zeros)

    # --- row-tile sizing: as big as the VMEM budget allows; usually one tile per image -
    per_row = wp * (2 * 2 * cin            # xs bf16, double buffered
                    + 2 * ks * ks * cin    # in-kernel im2col slab (bf16)
                    + 4 * cout             # f32 accumulator
                    + 2 * 2 * cout)        # y bf16, double buffered
    th = min(hout, max(8, vmem_budget // max(per_row, 1)))
    t = -(-hout // th)                     # number of row tiles per image
    hout_pad = t * th
    hp = hout_pad + pad

    # --- XLA glue: pad, flatten rows; no halo copy when one tile covers the image ------
    xb = x_nhwc.astype(jnp.bfloat16)
    xp = jnp.pad(xb, ((0, 0), (pad, hp - h - pad), (pad, wp - wdt - pad), (0, 0)))
    xf = jnp.pad(xp.reshape(n, hp * wp, cin), ((0, 0), (0, pad), (0, 0)))  # tap slack
    m = th * wp
    ltile = (th + pad) * wp + pad
    if t == 1:
        xs = xf                             # per-image block == the tile; zero extra HBM
    else:
        # Fallback for large images: overlapping halo windows materialized once.
        # TODO(synk): replace with memory_space=pl.ANY + manual overlapping-window DMA.
        xs = jnp.stack([xf[:, i * m:i * m + ltile, :] for i in range(t)],
                       axis=1).reshape(n * t, ltile, cin)
    g = n * t

    # flipped ConvTranspose2d weight -> [ks*ks*cin, cout]   (tap-major, then cin)
    wmat = jnp.transpose(w[:, :, ::-1, ::-1], (2, 3, 0, 1)).reshape(
        ks * ks * cin, cout).astype(jnp.bfloat16)

    cparams = pltpu.CompilerParams(dimension_semantics=("parallel",),
                                   vmem_limit_bytes=32 * 1024 * 1024)

    # --- pass 1: conv (one K = ks*ks*cin matmul per tile) + partial BN stats -----------
    y, stats = pl.pallas_call(
        functools.partial(_conv_stats_kernel, ks=ks, wp=wp, m=m),
        out_shape=(jax.ShapeDtypeStruct((g, m, cout), jnp.bfloat16),
                   jax.ShapeDtypeStruct((g, 2, cout), jnp.float32)),
        grid=(g,),
        in_specs=[pl.BlockSpec((None, ltile, cin), lambda i: (i, 0, 0)),
                  pl.BlockSpec((ks * ks * cin, cout), lambda i: (0, 0))],   # resident
        out_specs=(pl.BlockSpec((None, m, cout), lambda i: (i, 0, 0)),
                   pl.BlockSpec((None, 2, cout), lambda i: (i, 0, 0))),
        compiler_params=cparams,
    )(xs, wmat)

    # --- tiny XLA reduction of per-tile partials -> per-channel scale/shift ------------
    # Out-of-image rows/cols of each tile are exactly zero (no conv bias), so they add
    # nothing to sum/sumsq; divide by the true pixel count.
    count = jnp.float32(n * hout * wout)
    tot = jnp.sum(stats, axis=0)                                  # [2, cout]
    mean = tot[0] / count
    var = jnp.maximum(tot[1] / count - mean * mean, 0.0)          # biased (training) var
    scale = gamma * lax.rsqrt(var + eps)
    shift = beta - mean * scale

    # --- pass 2: BN scale/shift + LeakyReLU on a lane-dense flattened view -------------
    wcf = m * cout
    if wcf % 128 == 0:
        rows, lanes = wcf // 128, 128          # fully unmasked 128-lane stores
    else:
        rows, lanes = th, wp * cout            # still far denser than cout lanes
    y2 = y.reshape(g, rows, lanes)                                # free row-major reshape
    scale_w = jnp.tile(scale, m).reshape(rows, lanes)
    shift_w = jnp.tile(shift, m).reshape(rows, lanes)
    act = pl.pallas_call(
        functools.partial(_bn_lrelu_kernel, slope=slope),
        out_shape=jax.ShapeDtypeStruct((g, rows, lanes), out_dtype),
        grid=(g,),
        in_specs=[pl.BlockSpec((None, rows, lanes), lambda i: (i, 0, 0)),
                  pl.BlockSpec((rows, lanes), lambda i: (0, 0)),   # resident
                  pl.BlockSpec((rows, lanes), lambda i: (0, 0))],  # resident
        out_specs=pl.BlockSpec((None, rows, lanes), lambda i: (i, 0, 0)),
        compiler_params=cparams,
    )(y2, scale_w, shift_w)

    # drop the padded rows / columns, back to NHWC
    out = act.reshape(n, hout_pad, wp, cout)[:, :hout, :wout, :]
    return out


def tconv_layer_forward(x_nchw, params, *, ks=3):
    """TconvLayer forward: [N, in_ch, H, W] -> [N, out_ch, H + 2*(ks-1), W + 2*(ks-1)].

    params['b1']/params['b2'] (ConvTranspose biases) are accepted but unused by the
    kernel path: training-mode BatchNorm subtracts the per-channel batch mean, which
    cancels a per-channel constant exactly.
    """
    x = jnp.transpose(x_nchw, (0, 2, 3, 1))                      # NCHW -> NHWC
    y = conv_transpose_bn_lrelu(x, params["w1"], params["g1"], params["be1"],
                                ks=ks, out_dtype=jnp.bfloat16)   # bf16 inter-layer act
    y = conv_transpose_bn_lrelu(y, params["w2"], params["g2"], params["be2"],
                                ks=ks, out_dtype=jnp.float32)
    return jnp.transpose(y, (0, 3, 1, 2))                        # NHWC -> NCHW


# ---------------------- pure-JAX reference (correctness check) ------------------------

def _ref_block(x_nhwc, w, b, gamma, beta, *, ks, eps=1e-5, slope=0.01):
    pad = ks - 1
    xp = jnp.pad(x_nhwc, ((0, 0), (pad, pad), (pad, pad), (0, 0)))
    wf = jnp.transpose(w[:, :, ::-1, ::-1], (2, 3, 0, 1))        # HWIO
    y = lax.conv_general_dilated(xp, wf, (1, 1), "VALID",
                                 dimension_numbers=("NHWC", "HWIO", "NHWC")) + b
    mean = jnp.mean(y, axis=(0, 1, 2), keepdims=True)
    var = jnp.mean((y - mean) ** 2, axis=(0, 1, 2), keepdims=True)
    y = (y - mean) * lax.rsqrt(var + eps) * gamma + beta
    return jnp.where(y >= 0, y, slope * y)


def _ref_forward(x_nchw, params, *, ks=3):
    x = jnp.transpose(x_nchw, (0, 2, 3, 1))
    y = _ref_block(x, params["w1"], params["b1"], params["g1"], params["be1"], ks=ks)
    y = _ref_block(y, params["w2"], params["b2"], params["g2"], params["be2"], ks=ks)
    return jnp.transpose(y, (0, 3, 1, 2))


if __name__ == "__main__":
    in_ch, out_ch, ks = 4, 8, 3
    n, h, w = 2, 16, 16

    key = jax.random.PRNGKey(0)
    kx, kw1, kb1, kg1, kbe1, kw2, kb2, kg2, kbe2 = jax.random.split(key, 9)

    x = jax.random.normal(kx, (n, in_ch, h, w), dtype=jnp.float32)
    params = {
        "w1": 0.1 * jax.random.normal(kw1, (in_ch, out_ch, ks, ks), jnp.float32),
        "b1": 0.1 * jax.random.normal(kb1, (out_ch,), jnp.float32),
        "g1": 1.0 + 0.1 * jax.random.normal(kg1, (out_ch,), jnp.float32),
        "be1": 0.1 * jax.random.normal(kbe1, (out_ch,), jnp.float32),
        "w2": 0.1 * jax.random.normal(kw2, (out_ch, out_ch, ks, ks), jnp.float32),
        "b2": 0.1 * jax.random.normal(kb2, (out_ch,), jnp.float32),
        "g2": 1.0 + 0.1 * jax.random.normal(kg2, (out_ch,), jnp.float32),
        "be2": 0.1 * jax.random.normal(kbe2, (out_ch,), jnp.float32),
    }

    fwd = jax.jit(functools.partial(tconv_layer_forward, ks=ks))
    out = jax.block_until_ready(fwd(x, params))
    ref = jax.block_until_ready(_ref_forward(x, params, ks=ks))

    assert out.shape == (n, out_ch, h + 2 * (ks - 1), w + 2 * (ks - 1)), out.shape
    max_err = float(jnp.max(jnp.abs(out - ref)))
    # Kernel path uses bf16 MXU operands, a bf16 pre-BN conv buffer and a bf16
    # inter-layer activation, so allow a bf16-level tolerance vs the pure-f32 reference.
    assert jnp.allclose(out, ref, atol=1e-1, rtol=1e-1), max_err

    print("KERNEL_OK")
</pallas_src>

<mosaic_0001>
module attributes {stable_mosaic.version = 11 : i64} {
  func.func @_conv_stats_kernel(%arg0: i32, %arg1: memref<1x482x4xbf16, #tpu.memory_space<vmem>>, %arg2: memref<36x8xbf16, #tpu.memory_space<vmem>>, %arg3: memref<1x432x8xbf16, #tpu.memory_space<vmem>>, %arg4: memref<1x2x8xf32, #tpu.memory_space<vmem>>) attributes {dimension_semantics = [#tpu.dimension_semantics<parallel>], iteration_bounds = array<i64: 2>, scalar_prefetch = 0 : i64, scratch_operands = 0 : i64, tpu.core_type = #tpu.core_type<tc>, window_params = [{transform_indices = @transform_0, window_bounds = array<i64: 1, 482, 4>}, {pipeline_mode = #tpu.pipeline_mode<synchronous>, transform_indices = @transform_1, window_bounds = array<i64: 36, 8>}, {transform_indices = @transform_2, window_bounds = array<i64: 1, 432, 8>}, {transform_indices = @transform_3, window_bounds = array<i64: 1, 2, 8>}]} {
    %c0 = arith.constant 0 : index
    %c0_0 = arith.constant 0 : index
    %c0_1 = arith.constant 0 : index
    %0 = vector.load %arg1[%c0, %c0_0, %c0_1] : memref<1x482x4xbf16, #tpu.memory_space<vmem>>, vector<1x432x4xbf16>
    %1 = vector.shape_cast %0 : vector<1x432x4xbf16> to vector<432x4xbf16>
    %c0_2 = arith.constant 0 : index
    %c1 = arith.constant 1 : index
    %c0_3 = arith.constant 0 : index
    %2 = vector.load %arg1[%c0_2, %c1, %c0_3] : memref<1x482x4xbf16, #tpu.memory_space<vmem>>, vector<1x432x4xbf16>
    %3 = vector.shape_cast %2 : vector<1x432x4xbf16> to vector<432x4xbf16>
    %c0_4 = arith.constant 0 : index
    %c2 = arith.constant 2 : index
    %c0_5 = arith.constant 0 : index
    %4 = vector.load %arg1[%c0_4, %c2, %c0_5] : memref<1x482x4xbf16, #tpu.memory_space<vmem>>, vector<1x432x4xbf16>
    %5 = vector.shape_cast %4 : vector<1x432x4xbf16> to vector<432x4xbf16>
    %c0_6 = arith.constant 0 : index
    %c24 = arith.constant 24 : index
    %c0_7 = arith.constant 0 : index
    %6 = vector.load %arg1[%c0_6, %c24, %c0_7] : memref<1x482x4xbf16, #tpu.memory_space<vmem>>, vector<1x432x4xbf16>
    %7 = vector.shape_cast %6 : vector<1x432x4xbf16> to vector<432x4xbf16>
    %c0_8 = arith.constant 0 : index
    %c25 = arith.constant 25 : index
    %c0_9 = arith.constant 0 : index
    %8 = vector.load %arg1[%c0_8, %c25, %c0_9] : memref<1x482x4xbf16, #tpu.memory_space<vmem>>, vector<1x432x4xbf16>
    %9 = vector.shape_cast %8 : vector<1x432x4xbf16> to vector<432x4xbf16>
    %c0_10 = arith.constant 0 : index
    %c26 = arith.constant 26 : index
    %c0_11 = arith.constant 0 : index
    %10 = vector.load %arg1[%c0_10, %c26, %c0_11] : memref<1x482x4xbf16, #tpu.memory_space<vmem>>, vector<1x432x4xbf16>
    %11 = vector.shape_cast %10 : vector<1x432x4xbf16> to vector<432x4xbf16>
    %c0_12 = arith.constant 0 : index
    %c48 = arith.constant 48 : index
    %c0_13 = arith.constant 0 : index
    %12 = vector.load %arg1[%c0_12, %c48, %c0_13] : memref<1x482x4xbf16, #tpu.memory_space<vmem>>, vector<1x432x4xbf16>
    %13 = vector.shape_cast %12 : vector<1x432x4xbf16> to vector<432x4xbf16>
    %c0_14 = arith.constant 0 : index
    %c49 = arith.constant 49 : index
    %c0_15 = arith.constant 0 : index
    %14 = vector.load %arg1[%c0_14, %c49, %c0_15] : memref<1x482x4xbf16, #tpu.memory_space<vmem>>, vector<1x432x4xbf16>
    %15 = vector.shape_cast %14 : vector<1x432x4xbf16> to vector<432x4xbf16>
    %c0_16 = arith.constant 0 : index
    %c50 = arith.constant 50 : index
    %c0_17 = arith.constant 0 : index
    %16 = vector.load %arg1[%c0_16, %c50, %c0_17] : memref<1x482x4xbf16, #tpu.memory_space<vmem>>, vector<1x432x4xbf16>
    %17 = vector.shape_cast %16 : vector<1x432x4xbf16> to vector<432x4xbf16>
    %18 = tpu.concatenate %1, %3, %5, %7, %9, %11, %13, %15, %17 in 1 : vector<432x4xbf16>, vector<432x4xbf16>, vector<432x4xbf16>, vector<432x4xbf16>, vector<432x4xbf16>, vector<432x4xbf16>, vector<432x4xbf16>, vector<432x4xbf16>, vector<432x4xbf16> -> vector<432x36xbf16>
    %c0_18 = arith.constant 0 : index
    %c0_19 = arith.constant 0 : index
    %19 = vector.load %arg2[%c0_18, %c0_19] : memref<36x8xbf16, #tpu.memory_space<vmem>>, vector<36x8xbf16>
    %cst = arith.constant dense<0.000000e+00> : vector<432x8xf32>
    %20 = tpu.matmul %18, %19, %cst {dimension_numbers = #tpu.dot_dimension_numbers<[1], [0], [0], [1], [0, 0, 1, 1], [], []>} : vector<432x36xbf16>, vector<36x8xbf16>, vector<432x8xf32> -> vector<432x8xf32>
    %cst_20 = arith.constant dense<0.000000e+00> : vector<8xf32>
    %21 = vector.multi_reduction <add>, %20, %cst_20 [0] : vector<432x8xf32> to vector<8xf32>
    %22 = vector.shape_cast %21 : vector<8xf32> to vector<1x8xf32>
    %23 = arith.mulf %20, %20 : vector<432x8xf32>
    %cst_21 = arith.constant dense<0.000000e+00> : vector<8xf32>
    %24 = vector.multi_reduction <add>, %23, %cst_21 [0] : vector<432x8xf32> to vector<8xf32>
    %25 = vector.shape_cast %24 : vector<8xf32> to vector<1x8xf32>
    %26 = tpu.concatenate %22, %25 in 0 : vector<1x8xf32>, vector<1x8xf32> -> vector<2x8xf32>
    %c0_22 = arith.constant 0 : index
    %c0_23 = arith.constant 0 : index
    %c0_24 = arith.constant 0 : index
    %27 = vector.load %arg4[%c0_22, %c0_23, %c0_24] : memref<1x2x8xf32, #tpu.memory_space<vmem>>, vector<1x2x8xf32>
    %28 = vector.shape_cast %27 : vector<1x2x8xf32> to vector<2x8xf32>
    %29 = vector.shape_cast %26 : vector<2x8xf32> to vector<1x2x8xf32>
    tpu.vector_store %arg4[%c0_22, %c0_23, %c0_24], %29 {strides = array<i32>} : memref<1x2x8xf32, #tpu.memory_space<vmem>>, vector<1x2x8xf32>,
    %30 = arith.truncf %20 : vector<432x8xf32> to vector<432x8xbf16>
    %c0_25 = arith.constant 0 : index
    %c0_26 = arith.constant 0 : index
    %c0_27 = arith.constant 0 : index
    %31 = vector.load %arg3[%c0_25, %c0_26, %c0_27] : memref<1x432x8xbf16, #tpu.memory_space<vmem>>, vector<1x432x8xbf16>
    %32 = vector.shape_cast %31 : vector<1x432x8xbf16> to vector<432x8xbf16>
    %33 = vector.shape_cast %30 : vector<432x8xbf16> to vector<1x432x8xbf16>
    tpu.vector_store %arg3[%c0_25, %c0_26, %c0_27], %33 {strides = array<i32>} : memref<1x432x8xbf16, #tpu.memory_space<vmem>>, vector<1x432x8xbf16>,
    return
  }
  func.func @transform_0(%arg0: i32) -> (i32, i32, i32) {
    %c0_i32 = arith.constant 0 : i32
    %c0_i32_0 = arith.constant 0 : i32
    %c0_i32_1 = arith.constant 0 : i32
    return %arg0, %c0_i32, %c0_i32_0 : i32, i32, i32
  }
  func.func @transform_1(%arg0: i32) -> (i32, i32) {
    %c0_i32 = arith.constant 0 : i32
    %c0_i32_0 = arith.constant 0 : i32
    %c0_i32_1 = arith.constant 0 : i32
    return %c0_i32, %c0_i32_0 : i32, i32
  }
  func.func @transform_2(%arg0: i32) -> (i32, i32, i32) {
    %c0_i32 = arith.constant 0 : i32
    %c0_i32_0 = arith.constant 0 : i32
    %c0_i32_1 = arith.constant 0 : i32
    return %arg0, %c0_i32, %c0_i32_0 : i32, i32, i32
  }
  func.func @transform_3(%arg0: i32) -> (i32, i32, i32) {
    %c0_i32 = arith.constant 0 : i32
    %c0_i32_0 = arith.constant 0 : i32
    %c0_i32_1 = arith.constant 0 : i32
    return %arg0, %c0_i32, %c0_i32_0 : i32, i32, i32
  }
}

module attributes {stable_mosaic.version = 11 : i64} {
  func.func @_bn_lrelu_kernel(%arg0: i32, %arg1: memref<1x27x128xbf16, #tpu.memory_space<vmem>>, %arg2: memref<27x128xf32, #tpu.memory_space<vmem>>, %arg3: memref<27x128xf32, #tpu.memory_space<vmem>>, %arg4: memref<1x27x128xbf16, #tpu.memory_space<vmem>>) attributes {dimension_semantics = [#tpu.dimension_semantics<parallel>], iteration_bounds = array<i64: 2>, scalar_prefetch = 0 : i64, scratch_operands = 0 : i64, tpu.core_type = #tpu.core_type<tc>, window_params = [{transform_indices = @transform_0, window_bounds = array<i64: 1, 27, 128>}, {pipeline_mode = #tpu.pipeline_mode<synchronous>, transform_indices = @transform_1, window_bounds = array<i64: 27, 128>}, {pipeline_mode = #tpu.pipeline_mode<synchronous>, transform_indices = @transform_2, window_bounds = array<i64: 27, 128>}, {transform_indices = @transform_3, window_bounds = array<i64: 1, 27, 128>}]} {
    %c0 = arith.constant 0 : index
    %c0_0 = arith.constant 0 : index
    %c0_1 = arith.constant 0 : index
    %0 = vector.load %arg1[%c0, %c0_0, %c0_1] : memref<1x27x128xbf16, #tpu.memory_space<vmem>>, vector<1x27x128xbf16>
    %1 = vector.shape_cast %0 : vector<1x27x128xbf16> to vector<27x128xbf16>
    %2 = arith.extf %1 : vector<27x128xbf16> to vector<27x128xf32>
    %c0_2 = arith.constant 0 : index
    %c0_3 = arith.constant 0 : index
    %3 = vector.load %arg2[%c0_2, %c0_3] : memref<27x128xf32, #tpu.memory_space<vmem>>, vector<27x128xf32>
    %4 = arith.mulf %2, %3 : vector<27x128xf32>
    %c0_4 = arith.constant 0 : index
    %c0_5 = arith.constant 0 : index
    %5 = vector.load %arg3[%c0_4, %c0_5] : memref<27x128xf32, #tpu.memory_space<vmem>>, vector<27x128xf32>
    %6 = arith.addf %4, %5 : vector<27x128xf32>
    %cst = arith.constant 0.000000e+00 : f32
    %7 = vector.broadcast %cst : f32 to vector<27x128xf32>
    %8 = arith.cmpf oge, %6, %7 : vector<27x128xf32>
    %cst_6 = arith.constant 0.00999999977 : f32
    %9 = vector.broadcast %cst_6 : f32 to vector<27x128xf32>
    %10 = arith.mulf %9, %6 : vector<27x128xf32>
    %11 = arith.select %8, %6, %10 : vector<27x128xi1>, vector<27x128xf32>
    %12 = arith.truncf %11 : vector<27x128xf32> to vector<27x128xbf16>
    %c0_7 = arith.constant 0 : index
    %c0_8 = arith.constant 0 : index
    %c0_9 = arith.constant 0 : index
    %13 = vector.load %arg4[%c0_7, %c0_8, %c0_9] : memref<1x27x128xbf16, #tpu.memory_space<vmem>>, vector<1x27x128xbf16>
    %14 = vector.shape_cast %13 : vector<1x27x128xbf16> to vector<27x128xbf16>
    %15 = vector.shape_cast %12 : vector<27x128xbf16> to vector<1x27x128xbf16>
    tpu.vector_store %arg4[%c0_7, %c0_8, %c0_9], %15 {strides = array<i32>} : memref<1x27x128xbf16, #tpu.memory_space<vmem>>, vector<1x27x128xbf16>,
    return
  }
  func.func @transform_0(%arg0: i32) -> (i32, i32, i32) {
    %c0_i32 = arith.constant 0 : i32
    %c0_i32_0 = arith.constant 0 : i32
    %c0_i32_1 = arith.constant 0 : i32
    return %arg0, %c0_i32, %c0_i32_0 : i32, i32, i32
  }
  func.func @transform_1(%arg0: i32) -> (i32, i32) {
    %c0_i32 = arith.constant 0 : i32
    %c0_i32_0 = arith.constant 0 : i32
    %c0_i32_1 = arith.constant 0 : i32
    return %c0_i32, %c0_i32_0 : i32, i32
  }
  func.func @transform_2(%arg0: i32) -> (i32, i32) {
    %c0_i32 = arith.constant 0 : i32
    %c0_i32_0 = arith.constant 0 : i32
    %c0_i32_1 = arith.constant 0 : i32
    return %c0_i32, %c0_i32_0 : i32, i32
  }
  func.func @transform_3(%arg0: i32) -> (i32, i32, i32) {
    %c0_i32 = arith.constant 0 : i32
    %c0_i32_0 = arith.constant 0 : i32
    %c0_i32_1 = arith.constant 0 : i32
    return %arg0, %c0_i32, %c0_i32_0 : i32, i32, i32
  }
}

module attributes {stable_mosaic.version = 11 : i64} {
  func.func @_conv_stats_kernel(%arg0: i32, %arg1: memref<1x530x8xbf16, #tpu.memory_space<vmem>>, %arg2: memref<72x8xbf16, #tpu.memory_space<vmem>>, %arg3: memref<1x480x8xbf16, #tpu.memory_space<vmem>>, %arg4: memref<1x2x8xf32, #tpu.memory_space<vmem>>) attributes {dimension_semantics = [#tpu.dimension_semantics<parallel>], iteration_bounds = array<i64: 2>, scalar_prefetch = 0 : i64, scratch_operands = 0 : i64, tpu.core_type = #tpu.core_type<tc>, window_params = [{transform_indices = @transform_0, window_bounds = array<i64: 1, 530, 8>}, {pipeline_mode = #tpu.pipeline_mode<synchronous>, transform_indices = @transform_1, window_bounds = array<i64: 72, 8>}, {transform_indices = @transform_2, window_bounds = array<i64: 1, 480, 8>}, {transform_indices = @transform_3, window_bounds = array<i64: 1, 2, 8>}]} {
    %c0 = arith.constant 0 : index
    %c0_0 = arith.constant 0 : index
    %c0_1 = arith.constant 0 : index
    %0 = vector.load %arg1[%c0, %c0_0, %c0_1] : memref<1x530x8xbf16, #tpu.memory_space<vmem>>, vector<1x480x8xbf16>
    %1 = vector.shape_cast %0 : vector<1x480x8xbf16> to vector<480x8xbf16>
    %c0_2 = arith.constant 0 : index
    %c1 = arith.constant 1 : index
    %c0_3 = arith.constant 0 : index
    %2 = vector.load %arg1[%c0_2, %c1, %c0_3] : memref<1x530x8xbf16, #tpu.memory_space<vmem>>, vector<1x480x8xbf16>
    %3 = vector.shape_cast %2 : vector<1x480x8xbf16> to vector<480x8xbf16>
    %c0_4 = arith.constant 0 : index
    %c2 = arith.constant 2 : index
    %c0_5 = arith.constant 0 : index
    %4 = vector.load %arg1[%c0_4, %c2, %c0_5] : memref<1x530x8xbf16, #tpu.memory_space<vmem>>, vector<1x480x8xbf16>
    %5 = vector.shape_cast %4 : vector<1x480x8xbf16> to vector<480x8xbf16>
    %c0_6 = arith.constant 0 : index
    %c24 = arith.constant 24 : index
    %c0_7 = arith.constant 0 : index
    %6 = vector.load %arg1[%c0_6, %c24, %c0_7] : memref<1x530x8xbf16, #tpu.memory_space<vmem>>, vector<1x480x8xbf16>
    %7 = vector.shape_cast %6 : vector<1x480x8xbf16> to vector<480x8xbf16>
    %c0_8 = arith.constant 0 : index
    %c25 = arith.constant 25 : index
    %c0_9 = arith.constant 0 : index
    %8 = vector.load %arg1[%c0_8, %c25, %c0_9] : memref<1x530x8xbf16, #tpu.memory_space<vmem>>, vector<1x480x8xbf16>
    %9 = vector.shape_cast %8 : vector<1x480x8xbf16> to vector<480x8xbf16>
    %c0_10 = arith.constant 0 : index
    %c26 = arith.constant 26 : index
    %c0_11 = arith.constant 0 : index
    %10 = vector.load %arg1[%c0_10, %c26, %c0_11] : memref<1x530x8xbf16, #tpu.memory_space<vmem>>, vector<1x480x8xbf16>
    %11 = vector.shape_cast %10 : vector<1x480x8xbf16> to vector<480x8xbf16>
    %c0_12 = arith.constant 0 : index
    %c48 = arith.constant 48 : index
    %c0_13 = arith.constant 0 : index
    %12 = vector.load %arg1[%c0_12, %c48, %c0_13] : memref<1x530x8xbf16, #tpu.memory_space<vmem>>, vector<1x480x8xbf16>
    %13 = vector.shape_cast %12 : vector<1x480x8xbf16> to vector<480x8xbf16>
    %c0_14 = arith.constant 0 : index
    %c49 = arith.constant 49 : index
    %c0_15 = arith.constant 0 : index
    %14 = vector.load %arg1[%c0_14, %c49, %c0_15] : memref<1x530x8xbf16, #tpu.memory_space<vmem>>, vector<1x480x8xbf16>
    %15 = vector.shape_cast %14 : vector<1x480x8xbf16> to vector<480x8xbf16>
    %c0_16 = arith.constant 0 : index
    %c50 = arith.constant 50 : index
    %c0_17 = arith.constant 0 : index
    %16 = vector.load %arg1[%c0_16, %c50, %c0_17] : memref<1x530x8xbf16, #tpu.memory_space<vmem>>, vector<1x480x8xbf16>
    %17 = vector.shape_cast %16 : vector<1x480x8xbf16> to vector<480x8xbf16>
    %18 = tpu.concatenate %1, %3, %5, %7, %9, %11, %13, %15, %17 in 1 : vector<480x8xbf16>, vector<480x8xbf16>, vector<480x8xbf16>, vector<480x8xbf16>, vector<480x8xbf16>, vector<480x8xbf16>, vector<480x8xbf16>, vector<480x8xbf16>, vector<480x8xbf16> -> vector<480x72xbf16>
    %c0_18 = arith.constant 0 : index
    %c0_19 = arith.constant 0 : index
    %19 = vector.load %arg2[%c0_18, %c0_19] : memref<72x8xbf16, #tpu.memory_space<vmem>>, vector<72x8xbf16>
    %cst = arith.constant dense<0.000000e+00> : vector<480x8xf32>
    %20 = tpu.matmul %18, %19, %cst {dimension_numbers = #tpu.dot_dimension_numbers<[1], [0], [0], [1], [0, 0, 1, 1], [], []>} : vector<480x72xbf16>, vector<72x8xbf16>, vector<480x8xf32> -> vector<480x8xf32>
    %cst_20 = arith.constant dense<0.000000e+00> : vector<8xf32>
    %21 = vector.multi_reduction <add>, %20, %cst_20 [0] : vector<480x8xf32> to vector<8xf32>
    %22 = vector.shape_cast %21 : vector<8xf32> to vector<1x8xf32>
    %23 = arith.mulf %20, %20 : vector<480x8xf32>
    %cst_21 = arith.constant dense<0.000000e+00> : vector<8xf32>
    %24 = vector.multi_reduction <add>, %23, %cst_21 [0] : vector<480x8xf32> to vector<8xf32>
    %25 = vector.shape_cast %24 : vector<8xf32> to vector<1x8xf32>
    %26 = tpu.concatenate %22, %25 in 0 : vector<1x8xf32>, vector<1x8xf32> -> vector<2x8xf32>
    %c0_22 = arith.constant 0 : index
    %c0_23 = arith.constant 0 : index
    %c0_24 = arith.constant 0 : index
    %27 = vector.load %arg4[%c0_22, %c0_23, %c0_24] : memref<1x2x8xf32, #tpu.memory_space<vmem>>, vector<1x2x8xf32>
    %28 = vector.shape_cast %27 : vector<1x2x8xf32> to vector<2x8xf32>
    %29 = vector.shape_cast %26 : vector<2x8xf32> to vector<1x2x8xf32>
    tpu.vector_store %arg4[%c0_22, %c0_23, %c0_24], %29 {strides = array<i32>} : memref<1x2x8xf32, #tpu.memory_space<vmem>>, vector<1x2x8xf32>,
    %30 = arith.truncf %20 : vector<480x8xf32> to vector<480x8xbf16>
    %c0_25 = arith.constant 0 : index
    %c0_26 = arith.constant 0 : index
    %c0_27 = arith.constant 0 : index
    %31 = vector.load %arg3[%c0_25, %c0_26, %c0_27] : memref<1x480x8xbf16, #tpu.memory_space<vmem>>, vector<1x480x8xbf16>
    %32 = vector.shape_cast %31 : vector<1x480x8xbf16> to vector<480x8xbf16>
    %33 = vector.shape_cast %30 : vector<480x8xbf16> to vector<1x480x8xbf16>
    tpu.vector_store %arg3[%c0_25, %c0_26, %c0_27], %33 {strides = array<i32>} : memref<1x480x8xbf16, #tpu.memory_space<vmem>>, vector<1x480x8xbf16>,
    return
  }
  func.func @transform_0(%arg0: i32) -> (i32, i32, i32) {
    %c0_i32 = arith.constant 0 : i32
    %c0_i32_0 = arith.constant 0 : i32
    %c0_i32_1 = arith.constant 0 : i32
    return %arg0, %c0_i32, %c0_i32_0 : i32, i32, i32
  }
  func.func @transform_1(%arg0: i32) -> (i32, i32) {
    %c0_i32 = arith.constant 0 : i32
    %c0_i32_0 = arith.constant 0 : i32
    %c0_i32_1 = arith.constant 0 : i32
    return %c0_i32, %c0_i32_0 : i32, i32
  }
  func.func @transform_2(%arg0: i32) -> (i32, i32, i32) {
    %c0_i32 = arith.constant 0 : i32
    %c0_i32_0 = arith.constant 0 : i32
    %c0_i32_1 = arith.constant 0 : i32
    return %arg0, %c0_i32, %c0_i32_0 : i32, i32, i32
  }
  func.func @transform_3(%arg0: i32) -> (i32, i32, i32) {
    %c0_i32 = arith.constant 0 : i32
    %c0_i32_0 = arith.constant 0 : i32
    %c0_i32_1 = arith.constant 0 : i32
    return %arg0, %c0_i32, %c0_i32_0 : i32, i32, i32
  }
}

module attributes {stable_mosaic.version = 11 : i64} {
  func.func @_bn_lrelu_kernel(%arg0: i32, %arg1: memref<1x30x128xbf16, #tpu.memory_space<vmem>>, %arg2: memref<30x128xf32, #tpu.memory_space<vmem>>, %arg3: memref<30x128xf32, #tpu.memory_space<vmem>>, %arg4: memref<1x30x128xf32, #tpu.memory_space<vmem>>) attributes {dimension_semantics = [#tpu.dimension_semantics<parallel>], iteration_bounds = array<i64: 2>, scalar_prefetch = 0 : i64, scratch_operands = 0 : i64, tpu.core_type = #tpu.core_type<tc>, window_params = [{transform_indices = @transform_0, window_bounds = array<i64: 1, 30, 128>}, {pipeline_mode = #tpu.pipeline_mode<synchronous>, transform_indices = @transform_1, window_bounds = array<i64: 30, 128>}, {pipeline_mode = #tpu.pipeline_mode<synchronous>, transform_indices = @transform_2, window_bounds = array<i64: 30, 128>}, {transform_indices = @transform_3, window_bounds = array<i64: 1, 30, 128>}]} {
    %c0 = arith.constant 0 : index
    %c0_0 = arith.constant 0 : index
    %c0_1 = arith.constant 0 : index
    %0 = vector.load %arg1[%c0, %c0_0, %c0_1] : memref<1x30x128xbf16, #tpu.memory_space<vmem>>, vector<1x30x128xbf16>
    %1 = vector.shape_cast %0 : vector<1x30x128xbf16> to vector<30x128xbf16>
    %2 = arith.extf %1 : vector<30x128xbf16> to vector<30x128xf32>
    %c0_2 = arith.constant 0 : index
    %c0_3 = arith.constant 0 : index
    %3 = vector.load %arg2[%c0_2, %c0_3] : memref<30x128xf32, #tpu.memory_space<vmem>>, vector<30x128xf32>
    %4 = arith.mulf %2, %3 : vector<30x128xf32>
    %c0_4 = arith.constant 0 : index
    %c0_5 = arith.constant 0 : index
    %5 = vector.load %arg3[%c0_4, %c0_5] : memref<30x128xf32, #tpu.memory_space<vmem>>, vector<30x128xf32>
    %6 = arith.addf %4, %5 : vector<30x128xf32>
    %cst = arith.constant 0.000000e+00 : f32
    %7 = vector.broadcast %cst : f32 to vector<30x128xf32>
    %8 = arith.cmpf oge, %6, %7 : vector<30x128xf32>
    %cst_6 = arith.constant 0.00999999977 : f32
    %9 = vector.broadcast %cst_6 : f32 to vector<30x128xf32>
    %10 = arith.mulf %9, %6 : vector<30x128xf32>
    %11 = arith.select %8, %6, %10 : vector<30x128xi1>, vector<30x128xf32>
    %c0_7 = arith.constant 0 : index
    %c0_8 = arith.constant 0 : index
    %c0_9 = arith.constant 0 : index
    %12 = vector.load %arg4[%c0_7, %c0_8, %c0_9] : memref<1x30x128xf32, #tpu.memory_space<vmem>>, vector<1x30x128xf32>
    %13 = vector.shape_cast %12 : vector<1x30x128xf32> to vector<30x128xf32>
    %14 = vector.shape_cast %11 : vector<30x128xf32> to vector<1x30x128xf32>
    tpu.vector_store %arg4[%c0_7, %c0_8, %c0_9], %14 {strides = array<i32>} : memref<1x30x128xf32, #tpu.memory_space<vmem>>, vector<1x30x128xf32>,
    return
  }
  func.func @transform_0(%arg0: i32) -> (i32, i32, i32) {
    %c0_i32 = arith.constant 0 : i32
    %c0_i32_0 = arith.constant 0 : i32
    %c0_i32_1 = arith.constant 0 : i32
    return %arg0, %c0_i32, %c0_i32_0 : i32, i32, i32
  }
  func.func @transform_1(%arg0: i32) -> (i32, i32) {
    %c0_i32 = arith.constant 0 : i32
    %c0_i32_0 = arith.constant 0 : i32
    %c0_i32_1 = arith.constant 0 : i32
    return %c0_i32, %c0_i32_0 : i32, i32
  }
  func.func @transform_2(%arg0: i32) -> (i32, i32) {
    %c0_i32 = arith.constant 0 : i32
    %c0_i32_0 = arith.constant 0 : i32
    %c0_i32_1 = arith.constant 0 : i32
    return %c0_i32, %c0_i32_0 : i32, i32
  }
  func.func @transform_3(%arg0: i32) -> (i32, i32, i32) {
    %c0_i32 = arith.constant 0 : i32
    %c0_i32_0 = arith.constant 0 : i32
    %c0_i32_1 = arith.constant 0 : i32
    return %arg0, %c0_i32, %c0_i32_0 : i32, i32, i32
  }
}

</mosaic_0001>

<llo_original>
// kernel: tconv_layer_forward.5
$region0: #{tconv_layer_forward.5}
  #allocation0 [shape = 'u32[]', space=smem, size = 0x4, offset = 0x4, fixed_abs, tag = 'smem constant byte address 0x4 - core index']
  #allocation1 [shape = 'u32[72,128]{1,0:T(1,128)}', space=vmem, size = 0x9000, scoped, tag = 'internal scratch']
  %s0 = inlined_call_operand.vmem [shape: bf16[2,27,128], index: 0, kind: input, shape index: {}]
  %s1 = inlined_call_operand.vmem [shape: f32[27,128], index: 1, kind: input, shape index: {}]
  %s2 = inlined_call_operand.vmem [shape: f32[27,128], index: 2, kind: input, shape index: {}]
  %s3 = inlined_call_operand.vmem [shape: bf16[2,27,128], index: 3, kind: output, shape index: {}]
  %s4 = sld [smem:[#allocation0]]
  $region45: #{tconv_layer_forward.5} parent=0
    _
  %s6 = ssub.s32 1, %s4
  %s7 = scalar_select 0, %s6, %s4
  loop: start=0, step=1, limit=4
  $region2: #{tconv_layer_forward.5} parent=0 // loop_pre_header
    _
  $region3: #{tconv_layer_forward.5} parent=0 // loop_header
    %s9 = sphi 0, %s13
    %p10 = scmp.ge.s32.totalorder %s9, 4
    %s19 = sphi 0, %s21
    %s22 = sphi 0, %s19
    %s23 = sphi 0, %s22
    %s39 = sphi 0, %s23
    %s43 = sphi 0, %s43
    %s45 = sphi 0, %s43
    %s46 = sphi 0, %s45
    %s60 = sphi 0, %s46
    %s64 = sphi 0, %s64
    %s66 = sphi 0, %s64
    %s67 = sphi 0, %s66
    %s81 = sphi 0, %s67
    %s87 = sphi 0, %s89
    %s90 = sphi 0, %s87
    %s91 = sphi 0, %s90
    %s107 = sphi 0, %s91
  $region4: #{tconv_layer_forward.5} parent=0 // loop_header_branch
    %12 = sbr.rel (%p10) target = $region8
  $region5: #{tconv_layer_forward.5} parent=0 // loop_body
    %s14 = ssub.s32 %s9, 1
    %s15 = ssub.s32 %s9, 2
    %s16 = sadd.s32 %s9, 1
    %s17 = ssub.s32 %s9, %s16
    %p18 = scmp.eq.s32.totalorder %s17, 0
    %s20 = sadd.s32 %s19, 1
    %s21 = scalar_select %p18, %s19, %s20
    %p24 = pneg %p18
    %p25 = scmp.eq.s32.totalorder %s9, 1
    %p26 = por %p24, %p25
    %p27 = scmp.ne.s32.totalorder %s19, %s22
    %p28 = scmp.eq.s32.totalorder %s9, 0
    %p29 = por %p27, %p28
    %p30 = scmp.ne.s32.totalorder %s19, %s22
    %p31 = scmp.eq.s32.totalorder %s14, 1
    %p32 = por %p30, %p31
    %p33 = scmp.ne.s32.totalorder %s22, %s23
    %p34 = scmp.eq.s32.totalorder %s14, 0
    %p35 = por %p33, %p34
    %p36 = scmp.ne.s32.totalorder %s22, %s23
    %p37 = scmp.eq.s32.totalorder %s15, 1
    %p38 = por %p36, %p37
    %p40 = scmp.ne.s32.totalorder %s23, %s39
    %p41 = scmp.eq.s32.totalorder %s15, 0
    %p42 = por %p40, %p41
    %s44 = sadd.s32 %s43, 1
    %p47 = scmp.eq.s32.totalorder %s9, 1
    %p48 = scmp.ne.s32.totalorder %s43, %s45
    %p49 = scmp.eq.s32.totalorder %s9, 0
    %p50 = por %p48, %p49
    %p51 = scmp.ne.s32.totalorder %s43, %s45
    %p52 = scmp.eq.s32.totalorder %s14, 1
    %p53 = por %p51, %p52
    %p54 = scmp.ne.s32.totalorder %s45, %s46
    %p55 = scmp.eq.s32.totalorder %s14, 0
    %p56 = por %p54, %p55
    %p57 = scmp.ne.s32.totalorder %s45, %s46
    %p58 = scmp.eq.s32.totalorder %s15, 1
    %p59 = por %p57, %p58
    %p61 = scmp.ne.s32.totalorder %s46, %s60
    %p62 = scmp.eq.s32.totalorder %s15, 0
    %p63 = por %p61, %p62
    %s65 = sadd.s32 %s64, 1
    %p68 = scmp.eq.s32.totalorder %s9, 1
    %p69 = scmp.ne.s32.totalorder %s64, %s66
    %p70 = scmp.eq.s32.totalorder %s9, 0
    %p71 = por %p69, %p70
    %p72 = scmp.ne.s32.totalorder %s64, %s66
    %p73 = scmp.eq.s32.totalorder %s14, 1
    %p74 = por %p72, %p73
    %p75 = scmp.ne.s32.totalorder %s66, %s67
    %p76 = scmp.eq.s32.totalorder %s14, 0
    %p77 = por %p75, %p76
    %p78 = scmp.ne.s32.totalorder %s66, %s67
    %p79 = scmp.eq.s32.totalorder %s15, 1
    %p80 = por %p78, %p79
    %p82 = scmp.ne.s32.totalorder %s67, %s81
    %p83 = scmp.eq.s32.totalorder %s15, 0
    %p84 = por %p82, %p83
    %s85 = ssub.s32 %s9, %s16
    %p86 = scmp.eq.s32.totalorder %s85, 0
    %s88 = sadd.s32 %s87, 1
    %s89 = scalar_select %p86, %s87, %s88
    %p92 = pneg %p86
    %p93 = scmp.eq.s32.totalorder %s9, 1
    %p94 = por %p92, %p93
    %p95 = scmp.ne.s32.totalorder %s87, %s90
    %p96 = scmp.eq.s32.totalorder %s9, 0
    %p97 = por %p95, %p96
    %p98 = scmp.ne.s32.totalorder %s87, %s90
    %p99 = scmp.eq.s32.totalorder %s14, 1
    %p100 = por %p98, %p99
    %p101 = scmp.ne.s32.totalorder %s90, %s91
    %p102 = scmp.eq.s32.totalorder %s14, 0
    %p103 = por %p101, %p102
    %p104 = scmp.ne.s32.totalorder %s90, %s91
    %p105 = scmp.eq.s32.totalorder %s15, 1
    %p106 = por %p104, %p105
    %p108 = scmp.ne.s32.totalorder %s91, %s107
    %p109 = scmp.eq.s32.totalorder %s15, 0
    %p110 = por %p108, %p109
    %p111 = scmp.le.s32.totalorder 1, %s9
    %p112 = scmp.lt.s32.totalorder %s9, 3
    %p113 = pnand %p111, %p112
    %p114 = pneg %p113
    // Predicated region
    $region9: #{tconv_layer_forward.5} parent=5 // pred_check
      _
    $region10: #{tconv_layer_forward.5} parent=5 // pred_check_branch
      %116 = sbr.rel (%p113) target = $region12
    $region11: #{tconv_layer_forward.5} parent=5 // pred_region
      %s117 = ssub.s32 %s9, 1
      // Predicated region
      $region13: #{tconv_layer_forward.5} parent=11 // pred_check
        %p118 = pneg %p56
      $region14: #{tconv_layer_forward.5} parent=11 // pred_check_branch
        %120 = sbr.rel (%p118) target = $region16
      $region15: #{tconv_layer_forward.5} parent=11 // pred_region
        _
      $region16: #{tconv_layer_forward.5} parent=11 // pred_fallthru
        _
      // Predicated region
      $region17: #{tconv_layer_forward.5} parent=11 // pred_check
        %p121 = pneg %p77
      $region18: #{tconv_layer_forward.5} parent=11 // pred_check_branch
        %123 = sbr.rel (%p121) target = $region20
      $region19: #{tconv_layer_forward.5} parent=11 // pred_region
        _
      $region20: #{tconv_layer_forward.5} parent=11 // pred_fallthru
        _
    $region12: #{tconv_layer_forward.5} parent=5 // pred_fallthru
      _
    %p124 = scmp.lt.s32.totalorder %s9, 2
    // Predicated region
    $region21: #{tconv_layer_forward.5} parent=5 // pred_check
      %p125 = pneg %p124
    $region22: #{tconv_layer_forward.5} parent=5 // pred_check_branch
      %127 = sbr.rel (%p125) target = $region24
    $region23: #{tconv_layer_forward.5} parent=5 // pred_region
      // Predicated region
      $region25: #{tconv_layer_forward.5} parent=23 // pred_check
        %p128 = pneg %p29
      $region26: #{tconv_layer_forward.5} parent=23 // pred_check_branch
        %130 = sbr.rel (%p128) target = $region28
      $region27: #{tconv_layer_forward.5} parent=23 // pred_region
        %p131 = scmp.lt.s32.totalorder %s9, 1
        %s132 = scalar_select %p131, %s9, 1
        %s133 = smul.addr %s132, 4
        %s134 = smul.addr %s133, 4
        %s135 = scalar_lea.vmem %s0, %s134
      $region28: #{tconv_layer_forward.5} parent=23 // pred_fallthru
        _
    $region24: #{tconv_layer_forward.5} parent=5 // pred_fallthru
      _
    %p136 = scmp.le.s32.totalorder 1, %s9
    %p137 = scmp.lt.s32.totalorder %s9, 3
    %p138 = pnand %p136, %p137
    %p139 = pneg %p138
    // Predicated region
    $region29: #{tconv_layer_forward.5} parent=5 // pred_check
      _
    $region30: #{tconv_layer_forward.5} parent=5 // pred_check_branch
      %141 = sbr.rel (%p138) target = $region32
    $region31: #{tconv_layer_forward.5} parent=5 // pred_region
      %s142 = ssub.s32 %s9, 1
      %p143 = scmp.lt.s32.totalorder %s14, 1
      %s144 = scalar_select %p143, %s14, 1
      %s145 = smul.addr %s144, 4
      %s146 = smul.addr %s145, 4
      %s147 = scalar_lea.vmem %s0, %s146
      %p148 = pneg %p35
      %p149 = pneg %p32
      %p150 = pneg %p56
      %p151 = pneg %p53
      %p152 = pneg %p77
      %p153 = pneg %p74
      %p154 = pneg %p103
      %p155 = pneg %p100
      %p156 = scmp.lt.s32.totalorder %s14, 1
      %s157 = scalar_select %p156, %s14, 1
      %s158 = smul.addr %s157, 4
      %s159 = smul.addr %s158, 4
      %s160 = scalar_lea.vmem %s3, %s159
      %p161 = scmp.lt.s32.totalorder %s14, 1
      %s162 = scalar_select %p161, %s14, 1
      %s163 = smul.addr %s162, 4
      %s164 = smul.addr %s163, 4
      %s165 = scalar_lea.vmem %s0, %s164
      %p166 = scmp.lt.s32.totalorder %s14, 1
      %s167 = scalar_select %p166, %s14, 1
      %s168 = smul.addr %s167, 4
      %s169 = smul.addr %s168, 4
      %s170 = scalar_lea.vmem %s3, %s169
      %v171 = vld [vmem:[%s165] sm:$0xf]
      %v172 = vld [vmem:[%s165 + $0x4] sm:$0xf]
      %v173 = vld [vmem:[%s165 + $0x8] sm:$0xf]
      %v174 = vld [vmem:[%s165 + $0xc] sm:$0x3]
      %v175 = vunpack.c.l.bf16 %v171
      %v176 = vunpack.c.l.bf16 %v172
      %v177 = vunpack.c.l.bf16 %v173
      %v178 = vunpack.c.l.bf16 %v174
      %v179 = vld [vmem:[%s1] sm:$0xff]
      %v180 = vld [vmem:[%s1 + $0x8] sm:$0xff]
      %v181 = vld [vmem:[%s1 + $0x10] sm:$0xff]
      %v182 = vld [vmem:[%s1 + $0x18] sm:$0x7]
      %v183 = vmul.f32 %v175, %v179
      %v184 = vmul.f32 %v176, %v180
      %v185 = vmul.f32 %v177, %v181
      %v186 = vmul.f32 %v178, %v182
      %v187 = vld [vmem:[%s2] sm:$0xff]
      %v188 = vld [vmem:[%s2 + $0x8] sm:$0xff]
      %v189 = vld [vmem:[%s2 + $0x10] sm:$0xff]
      %v190 = vld [vmem:[%s2 + $0x18] sm:$0x7]
      %v191 = vadd.f32 %v183, %v187
      %v192 = vadd.f32 %v184, %v188
      %v193 = vadd.f32 %v185, %v189
      %v194 = vadd.f32 %v186, %v190
      %vm195 = vcmp.ge.f32.partialorder %v191, 0.0
      %vm196 = vcmp.ge.f32.partialorder %v192, 0.0
      %vm197 = vcmp.ge.f32.partialorder %v193, 0.0
      %vm198 = vcmp.ge.f32.partialorder %v194, 0.0
      %v199 = vmul.f32 %v191, 0.01
      %v200 = vmul.f32 %v192, 0.01
      %v201 = vmul.f32 %v193, 0.01
      %v202 = vmul.f32 %v194, 0.01
      %v203 = vsel %vm195, %v191, %v199
      %v204 = vsel %vm196, %v192, %v200
      %v205 = vsel %vm197, %v193, %v201
      %v206 = vsel %vm198, %v194, %v202
      %v207 = vpack.c.bf16 %v203, %v203
      %v208 = vpack.c.bf16 %v204, %v204
      %v209 = vpack.c.bf16 %v205, %v205
      %v210 = vpack.c.bf16 %v206, %v206
      %211 = vst [vmem:[%s170] sm:$0xf] %v207
      %212 = vst [vmem:[%s170 + $0x4] sm:$0xf] %v208
      %213 = vst [vmem:[%s170 + $0x8] sm:$0xf] %v209
      %vm214 = vcmask 1041408
      %vm215 = vsmask.f32 1280
      %vm216 = vmand %vm214, %vm215
      %v217 = vld [vmem:[%s170 + $0xc] sm:$0x3]
      %v218 = vsel %vm216, %v210, %v217
      %219 = vst [vmem:[%s170 + $0xc] sm:$0x3] %v218
      %p220 = scmp.lt.s32.totalorder %s14, 1
      %s221 = scalar_select %p220, %s14, 1
      %s222 = smul.addr %s221, 4
      %s223 = smul.addr %s222, 4
      %s224 = scalar_lea.vmem %s3, %s223
      // Predicated region
      $region33: #{tconv_layer_forward.5} parent=31 // pred_check
        %p225 = pneg %p100
      $region34: #{tconv_layer_forward.5} parent=31 // pred_check_branch
        %227 = sbr.rel (%p225) target = $region36
      $region35: #{tconv_layer_forward.5} parent=31 // pred_region
        _
      $region36: #{tconv_layer_forward.5} parent=31 // pred_fallthru
        _
    $region32: #{tconv_layer_forward.5} parent=5 // pred_fallthru
      _
    %p228 = scmp.le.s32.totalorder 2, %s9
    // Predicated region
    $region37: #{tconv_layer_forward.5} parent=5 // pred_check
      %p229 = pneg %p228
    $region38: #{tconv_layer_forward.5} parent=5 // pred_check_branch
      %231 = sbr.rel (%p229) target = $region40
    $region39: #{tconv_layer_forward.5} parent=5 // pred_region
      %s232 = ssub.s32 %s9, 2
      // Predicated region
      $region41: #{tconv_layer_forward.5} parent=39 // pred_check
        %p233 = pneg %p106
      $region42: #{tconv_layer_forward.5} parent=39 // pred_check_branch
        %235 = sbr.rel (%p233) target = $region44
      $region43: #{tconv_layer_forward.5} parent=39 // pred_region
        %p236 = scmp.lt.s32.totalorder %s15, 1
        %s237 = scalar_select %p236, %s15, 1
        %s238 = smul.addr %s237, 4
        %s239 = smul.addr %s238, 4
        %s240 = scalar_lea.vmem %s3, %s239
      $region44: #{tconv_layer_forward.5} parent=39 // pred_fallthru
        _
    $region40: #{tconv_layer_forward.5} parent=5 // pred_fallthru
      _
  $region6: #{tconv_layer_forward.5} parent=0 // loop_footer
    %s13 = sadd.s32 1, %s9
  $region7: #{tconv_layer_forward.5} parent=0 // loop_footer_branch
    %8 = sbr.rel target = $region3
  $region8: #{tconv_layer_forward.5} parent=0 // loop_exit
    _

// kernel: tconv_layer_forward.7
$region0: #{tconv_layer_forward.7}
  #allocation0 [shape = 'u32[]', space=smem, size = 0x4, offset = 0x4, fixed_abs, tag = 'smem constant byte address 0x4 - core index']
  #allocation1 [shape = 'u32[72,128]{1,0:T(1,128)}', space=vmem, size = 0x9000, scoped, tag = 'internal scratch']
  %s0 = inlined_call_operand.vmem [shape: bf16[2,30,128], index: 0, kind: input, shape index: {}]
  %s1 = inlined_call_operand.vmem [shape: f32[30,128], index: 1, kind: input, shape index: {}]
  %s2 = inlined_call_operand.vmem [shape: f32[30,128], index: 2, kind: input, shape index: {}]
  %s3 = inlined_call_operand.vmem [shape: f32[2,30,128], index: 3, kind: output, shape index: {}]
  %s4 = sld [smem:[#allocation0]]
  $region45: #{tconv_layer_forward.7} parent=0
    _
  %s6 = ssub.s32 1, %s4
  %s7 = scalar_select 0, %s6, %s4
  loop: start=0, step=1, limit=4
  $region2: #{tconv_layer_forward.7} parent=0 // loop_pre_header
    _
  $region3: #{tconv_layer_forward.7} parent=0 // loop_header
    %s9 = sphi 0, %s13
    %p10 = scmp.ge.s32.totalorder %s9, 4
    %s19 = sphi 0, %s21
    %s22 = sphi 0, %s19
    %s23 = sphi 0, %s22
    %s39 = sphi 0, %s23
    %s43 = sphi 0, %s43
    %s45 = sphi 0, %s43
    %s46 = sphi 0, %s45
    %s60 = sphi 0, %s46
    %s64 = sphi 0, %s64
    %s66 = sphi 0, %s64
    %s67 = sphi 0, %s66
    %s81 = sphi 0, %s67
    %s87 = sphi 0, %s89
    %s90 = sphi 0, %s87
    %s91 = sphi 0, %s90
    %s107 = sphi 0, %s91
  $region4: #{tconv_layer_forward.7} parent=0 // loop_header_branch
    %12 = sbr.rel (%p10) target = $region8
  $region5: #{tconv_layer_forward.7} parent=0 // loop_body
    %s14 = ssub.s32 %s9, 1
    %s15 = ssub.s32 %s9, 2
    %s16 = sadd.s32 %s9, 1
    %s17 = ssub.s32 %s9, %s16
    %p18 = scmp.eq.s32.totalorder %s17, 0
    %s20 = sadd.s32 %s19, 1
    %s21 = scalar_select %p18, %s19, %s20
    %p24 = pneg %p18
    %p25 = scmp.eq.s32.totalorder %s9, 1
    %p26 = por %p24, %p25
    %p27 = scmp.ne.s32.totalorder %s19, %s22
    %p28 = scmp.eq.s32.totalorder %s9, 0
    %p29 = por %p27, %p28
    %p30 = scmp.ne.s32.totalorder %s19, %s22
    %p31 = scmp.eq.s32.totalorder %s14, 1
    %p32 = por %p30, %p31
    %p33 = scmp.ne.s32.totalorder %s22, %s23
    %p34 = scmp.eq.s32.totalorder %s14, 0
    %p35 = por %p33, %p34
    %p36 = scmp.ne.s32.totalorder %s22, %s23
    %p37 = scmp.eq.s32.totalorder %s15, 1
    %p38 = por %p36, %p37
    %p40 = scmp.ne.s32.totalorder %s23, %s39
    %p41 = scmp.eq.s32.totalorder %s15, 0
    %p42 = por %p40, %p41
    %s44 = sadd.s32 %s43, 1
    %p47 = scmp.eq.s32.totalorder %s9, 1
    %p48 = scmp.ne.s32.totalorder %s43, %s45
    %p49 = scmp.eq.s32.totalorder %s9, 0
    %p50 = por %p48, %p49
    %p51 = scmp.ne.s32.totalorder %s43, %s45
    %p52 = scmp.eq.s32.totalorder %s14, 1
    %p53 = por %p51, %p52
    %p54 = scmp.ne.s32.totalorder %s45, %s46
    %p55 = scmp.eq.s32.totalorder %s14, 0
    %p56 = por %p54, %p55
    %p57 = scmp.ne.s32.totalorder %s45, %s46
    %p58 = scmp.eq.s32.totalorder %s15, 1
    %p59 = por %p57, %p58
    %p61 = scmp.ne.s32.totalorder %s46, %s60
    %p62 = scmp.eq.s32.totalorder %s15, 0
    %p63 = por %p61, %p62
    %s65 = sadd.s32 %s64, 1
    %p68 = scmp.eq.s32.totalorder %s9, 1
    %p69 = scmp.ne.s32.totalorder %s64, %s66
    %p70 = scmp.eq.s32.totalorder %s9, 0
    %p71 = por %p69, %p70
    %p72 = scmp.ne.s32.totalorder %s64, %s66
    %p73 = scmp.eq.s32.totalorder %s14, 1
    %p74 = por %p72, %p73
    %p75 = scmp.ne.s32.totalorder %s66, %s67
    %p76 = scmp.eq.s32.totalorder %s14, 0
    %p77 = por %p75, %p76
    %p78 = scmp.ne.s32.totalorder %s66, %s67
    %p79 = scmp.eq.s32.totalorder %s15, 1
    %p80 = por %p78, %p79
    %p82 = scmp.ne.s32.totalorder %s67, %s81
    %p83 = scmp.eq.s32.totalorder %s15, 0
    %p84 = por %p82, %p83
    %s85 = ssub.s32 %s9, %s16
    %p86 = scmp.eq.s32.totalorder %s85, 0
    %s88 = sadd.s32 %s87, 1
    %s89 = scalar_select %p86, %s87, %s88
    %p92 = pneg %p86
    %p93 = scmp.eq.s32.totalorder %s9, 1
    %p94 = por %p92, %p93
    %p95 = scmp.ne.s32.totalorder %s87, %s90
    %p96 = scmp.eq.s32.totalorder %s9, 0
    %p97 = por %p95, %p96
    %p98 = scmp.ne.s32.totalorder %s87, %s90
    %p99 = scmp.eq.s32.totalorder %s14, 1
    %p100 = por %p98, %p99
    %p101 = scmp.ne.s32.totalorder %s90, %s91
    %p102 = scmp.eq.s32.totalorder %s14, 0
    %p103 = por %p101, %p102
    %p104 = scmp.ne.s32.totalorder %s90, %s91
    %p105 = scmp.eq.s32.totalorder %s15, 1
    %p106 = por %p104, %p105
    %p108 = scmp.ne.s32.totalorder %s91, %s107
    %p109 = scmp.eq.s32.totalorder %s15, 0
    %p110 = por %p108, %p109
    %p111 = scmp.le.s32.totalorder 1, %s9
    %p112 = scmp.lt.s32.totalorder %s9, 3
    %p113 = pnand %p111, %p112
    %p114 = pneg %p113
    // Predicated region
    $region9: #{tconv_layer_forward.7} parent=5 // pred_check
      _
    $region10: #{tconv_layer_forward.7} parent=5 // pred_check_branch
      %116 = sbr.rel (%p113) target = $region12
    $region11: #{tconv_layer_forward.7} parent=5 // pred_region
      %s117 = ssub.s32 %s9, 1
      // Predicated region
      $region13: #{tconv_layer_forward.7} parent=11 // pred_check
        %p118 = pneg %p56
      $region14: #{tconv_layer_forward.7} parent=11 // pred_check_branch
        %120 = sbr.rel (%p118) target = $region16
      $region15: #{tconv_layer_forward.7} parent=11 // pred_region
        _
      $region16: #{tconv_layer_forward.7} parent=11 // pred_fallthru
        _
      // Predicated region
      $region17: #{tconv_layer_forward.7} parent=11 // pred_check
        %p121 = pneg %p77
      $region18: #{tconv_layer_forward.7} parent=11 // pred_check_branch
        %123 = sbr.rel (%p121) target = $region20
      $region19: #{tconv_layer_forward.7} parent=11 // pred_region
        _
      $region20: #{tconv_layer_forward.7} parent=11 // pred_fallthru
        _
    $region12: #{tconv_layer_forward.7} parent=5 // pred_fallthru
      _
    %p124 = scmp.lt.s32.totalorder %s9, 2
    // Predicated region
    $region21: #{tconv_layer_forward.7} parent=5 // pred_check
      %p125 = pneg %p124
    $region22: #{tconv_layer_forward.7} parent=5 // pred_check_branch
      %127 = sbr.rel (%p125) target = $region24
    $region23: #{tconv_layer_forward.7} parent=5 // pred_region
      // Predicated region
      $region25: #{tconv_layer_forward.7} parent=23 // pred_check
        %p128 = pneg %p29
      $region26: #{tconv_layer_forward.7} parent=23 // pred_check_branch
        %130 = sbr.rel (%p128) target = $region28
      $region27: #{tconv_layer_forward.7} parent=23 // pred_region
        %p131 = scmp.lt.s32.totalorder %s9, 1
        %s132 = scalar_select %p131, %s9, 1
        %s133 = smul.addr %s132, 4
        %s134 = smul.addr %s133, 4
        %s135 = scalar_lea.vmem %s0, %s134
      $region28: #{tconv_layer_forward.7} parent=23 // pred_fallthru
        _
    $region24: #{tconv_layer_forward.7} parent=5 // pred_fallthru
      _
    %p136 = scmp.le.s32.totalorder 1, %s9
    %p137 = scmp.lt.s32.totalorder %s9, 3
    %p138 = pnand %p136, %p137
    %p139 = pneg %p138
    // Predicated region
    $region29: #{tconv_layer_forward.7} parent=5 // pred_check
      _
    $region30: #{tconv_layer_forward.7} parent=5 // pred_check_branch
      %141 = sbr.rel (%p138) target = $region32
    $region31: #{tconv_layer_forward.7} parent=5 // pred_region
      %s142 = ssub.s32 %s9, 1
      %p143 = scmp.lt.s32.totalorder %s14, 1
      %s144 = scalar_select %p143, %s14, 1
      %s145 = smul.addr %s144, 4
      %s146 = smul.addr %s145, 4
      %s147 = scalar_lea.vmem %s0, %s146
      %p148 = pneg %p35
      %p149 = pneg %p32
      %p150 = pneg %p56
      %p151 = pneg %p53
      %p152 = pneg %p77
      %p153 = pneg %p74
      %p154 = pneg %p103
      %p155 = pneg %p100
      %p156 = scmp.lt.s32.totalorder %s14, 1
      %s157 = scalar_select %p156, %s14, 1
      %s158 = smul.addr %s157, 4
      %s159 = smul.addr %s158, 8
      %s160 = scalar_lea.vmem %s3, %s159
      %p161 = scmp.lt.s32.totalorder %s14, 1
      %s162 = scalar_select %p161, %s14, 1
      %s163 = smul.addr %s162, 4
      %s164 = smul.addr %s163, 4
      %s165 = scalar_lea.vmem %s0, %s164
      %p166 = scmp.lt.s32.totalorder %s14, 1
      %s167 = scalar_select %p166, %s14, 1
      %s168 = smul.addr %s167, 4
      %s169 = smul.addr %s168, 8
      %s170 = scalar_lea.vmem %s3, %s169
      %v171 = vld [vmem:[%s165] sm:$0xf]
      %v172 = vld [vmem:[%s165 + $0x4] sm:$0xf]
      %v173 = vld [vmem:[%s165 + $0x8] sm:$0xf]
      %v174 = vld [vmem:[%s165 + $0xc] sm:$0x7]
      %v175 = vunpack.c.l.bf16 %v171
      %v176 = vunpack.c.l.bf16 %v172
      %v177 = vunpack.c.l.bf16 %v173
      %v178 = vunpack.c.l.bf16 %v174
      %v179 = vld [vmem:[%s1] sm:$0xff]
      %v180 = vld [vmem:[%s1 + $0x8] sm:$0xff]
      %v181 = vld [vmem:[%s1 + $0x10] sm:$0xff]
      %v182 = vld [vmem:[%s1 + $0x18] sm:$0x3f]
      %v183 = vmul.f32 %v175, %v179
      %v184 = vmul.f32 %v176, %v180
      %v185 = vmul.f32 %v177, %v181
      %v186 = vmul.f32 %v178, %v182
      %v187 = vld [vmem:[%s2] sm:$0xff]
      %v188 = vld [vmem:[%s2 + $0x8] sm:$0xff]
      %v189 = vld [vmem:[%s2 + $0x10] sm:$0xff]
      %v190 = vld [vmem:[%s2 + $0x18] sm:$0x3f]
      %v191 = vadd.f32 %v183, %v187
      %v192 = vadd.f32 %v184, %v188
      %v193 = vadd.f32 %v185, %v189
      %v194 = vadd.f32 %v186, %v190
      %vm195 = vcmp.ge.f32.partialorder %v191, 0.0
      %vm196 = vcmp.ge.f32.partialorder %v192, 0.0
      %vm197 = vcmp.ge.f32.partialorder %v193, 0.0
      %vm198 = vcmp.ge.f32.partialorder %v194, 0.0
      %v199 = vmul.f32 %v191, 0.01
      %v200 = vmul.f32 %v192, 0.01
      %v201 = vmul.f32 %v193, 0.01
      %v202 = vmul.f32 %v194, 0.01
      %v203 = vsel %vm195, %v191, %v199
      %v204 = vsel %vm196, %v192, %v200
      %v205 = vsel %vm197, %v193, %v201
      %v206 = vsel %vm198, %v194, %v202
      %207 = vst [vmem:[%s170] sm:$0xff] %v203
      %208 = vst [vmem:[%s170 + $0x8] sm:$0xff] %v204
      %209 = vst [vmem:[%s170 + $0x10] sm:$0xff] %v205
      %210 = vst [vmem:[%s170 + $0x18] sm:$0x3f] %v206
      %p211 = scmp.lt.s32.totalorder %s14, 1
      %s212 = scalar_select %p211, %s14, 1
      %s213 = smul.addr %s212, 4
      %s214 = smul.addr %s213, 8
      %s215 = scalar_lea.vmem %s3, %s214
      // Predicated region
      $region33: #{tconv_layer_forward.7} parent=31 // pred_check
        %p216 = pneg %p100
      $region34: #{tconv_layer_forward.7} parent=31 // pred_check_branch
        %218 = sbr.rel (%p216) target = $region36
      $region35: #{tconv_layer_forward.7} parent=31 // pred_region
        _
      $region36: #{tconv_layer_forward.7} parent=31 // pred_fallthru
        _
    $region32: #{tconv_layer_forward.7} parent=5 // pred_fallthru
      _
    %p219 = scmp.le.s32.totalorder 2, %s9
    // Predicated region
    $region37: #{tconv_layer_forward.7} parent=5 // pred_check
      %p220 = pneg %p219
    $region38: #{tconv_layer_forward.7} parent=5 // pred_check_branch
      %222 = sbr.rel (%p220) target = $region40
    $region39: #{tconv_layer_forward.7} parent=5 // pred_region
      %s223 = ssub.s32 %s9, 2
      // Predicated region
      $region41: #{tconv_layer_forward.7} parent=39 // pred_check
        %p224 = pneg %p106
      $region42: #{tconv_layer_forward.7} parent=39 // pred_check_branch
        %226 = sbr.rel (%p224) target = $region44
      $region43: #{tconv_layer_forward.7} parent=39 // pred_region
        %p227 = scmp.lt.s32.totalorder %s15, 1
        %s228 = scalar_select %p227, %s15, 1
        %s229 = smul.addr %s228, 4
        %s230 = smul.addr %s229, 8
        %s231 = scalar_lea.vmem %s3, %s230
      $region44: #{tconv_layer_forward.7} parent=39 // pred_fallthru
        _
    $region40: #{tconv_layer_forward.7} parent=5 // pred_fallthru
      _
  $region6: #{tconv_layer_forward.7} parent=0 // loop_footer
    %s13 = sadd.s32 1, %s9
  $region7: #{tconv_layer_forward.7} parent=0 // loop_footer_branch
    %8 = sbr.rel target = $region3
  $region8: #{tconv_layer_forward.7} parent=0 // loop_exit
    _

// kernel: tconv_layer_forward.4
$region0: #{tconv_layer_forward.4}
  #allocation0 [shape = 'u32[]', space=smem, size = 0x4, offset = 0x4, fixed_abs, tag = 'smem constant byte address 0x4 - core index']
  #allocation1 [shape = 'u32[72,128]{1,0:T(1,128)}', space=vmem, size = 0x9000, scoped, tag = 'internal scratch']
  %s0 = inlined_call_operand.vmem [shape: bf16[2,482,4], index: 0, kind: input, shape index: {}]
  %s1 = inlined_call_operand.vmem [shape: bf16[36,8], index: 1, kind: input, shape index: {}]
  %s2 = inlined_call_operand.vmem [shape: bf16[2,432,8], index: 2, kind: output, shape index: {0}]
  %s3 = inlined_call_operand.vmem [shape: f32[2,2,8], index: 3, kind: output, shape index: {1}]
  %4 = xla_tuple %s2, %s3
  %s5 = sld [smem:[#allocation0]]
  $region49: #{tconv_layer_forward.4} parent=0
    _
  %s7 = ssub.s32 1, %s5
  %s8 = scalar_select 0, %s7, %s5
  loop: start=0, step=1, limit=4
  $region2: #{tconv_layer_forward.4} parent=0 // loop_pre_header
    _
  $region3: #{tconv_layer_forward.4} parent=0 // loop_header
    %s10 = sphi 0, %s14
    %p11 = scmp.ge.s32.totalorder %s10, 4
    %s20 = sphi 0, %s22
    %s23 = sphi 0, %s20
    %s24 = sphi 0, %s23
    %s40 = sphi 0, %s24
    %s44 = sphi 0, %s44
    %s46 = sphi 0, %s44
    %s47 = sphi 0, %s46
    %s61 = sphi 0, %s47
    %s67 = sphi 0, %s69
    %s70 = sphi 0, %s67
    %s71 = sphi 0, %s70
    %s87 = sphi 0, %s71
    %s93 = sphi 0, %s95
    %s96 = sphi 0, %s93
    %s97 = sphi 0, %s96
    %s113 = sphi 0, %s97
  $region4: #{tconv_layer_forward.4} parent=0 // loop_header_branch
    %13 = sbr.rel (%p11) target = $region8
  $region5: #{tconv_layer_forward.4} parent=0 // loop_body
    %s15 = ssub.s32 %s10, 1
    %s16 = ssub.s32 %s10, 2
    %s17 = sadd.s32 %s10, 1
    %s18 = ssub.s32 %s10, %s17
    %p19 = scmp.eq.s32.totalorder %s18, 0
    %s21 = sadd.s32 %s20, 1
    %s22 = scalar_select %p19, %s20, %s21
    %p25 = pneg %p19
    %p26 = scmp.eq.s32.totalorder %s10, 1
    %p27 = por %p25, %p26
    %p28 = scmp.ne.s32.totalorder %s20, %s23
    %p29 = scmp.eq.s32.totalorder %s10, 0
    %p30 = por %p28, %p29
    %p31 = scmp.ne.s32.totalorder %s20, %s23
    %p32 = scmp.eq.s32.totalorder %s15, 1
    %p33 = por %p31, %p32
    %p34 = scmp.ne.s32.totalorder %s23, %s24
    %p35 = scmp.eq.s32.totalorder %s15, 0
    %p36 = por %p34, %p35
    %p37 = scmp.ne.s32.totalorder %s23, %s24
    %p38 = scmp.eq.s32.totalorder %s16, 1
    %p39 = por %p37, %p38
    %p41 = scmp.ne.s32.totalorder %s24, %s40
    %p42 = scmp.eq.s32.totalorder %s16, 0
    %p43 = por %p41, %p42
    %s45 = sadd.s32 %s44, 1
    %p48 = scmp.eq.s32.totalorder %s10, 1
    %p49 = scmp.ne.s32.totalorder %s44, %s46
    %p50 = scmp.eq.s32.totalorder %s10, 0
    %p51 = por %p49, %p50
    %p52 = scmp.ne.s32.totalorder %s44, %s46
    %p53 = scmp.eq.s32.totalorder %s15, 1
    %p54 = por %p52, %p53
    %p55 = scmp.ne.s32.totalorder %s46, %s47
    %p56 = scmp.eq.s32.totalorder %s15, 0
    %p57 = por %p55, %p56
    %p58 = scmp.ne.s32.totalorder %s46, %s47
    %p59 = scmp.eq.s32.totalorder %s16, 1
    %p60 = por %p58, %p59
    %p62 = scmp.ne.s32.totalorder %s47, %s61
    %p63 = scmp.eq.s32.totalorder %s16, 0
    %p64 = por %p62, %p63
    %s65 = ssub.s32 %s10, %s17
    %p66 = scmp.eq.s32.totalorder %s65, 0
    %s68 = sadd.s32 %s67, 1
    %s69 = scalar_select %p66, %s67, %s68
    %p72 = pneg %p66
    %p73 = scmp.eq.s32.totalorder %s10, 1
    %p74 = por %p72, %p73
    %p75 = scmp.ne.s32.totalorder %s67, %s70
    %p76 = scmp.eq.s32.totalorder %s10, 0
    %p77 = por %p75, %p76
    %p78 = scmp.ne.s32.totalorder %s67, %s70
    %p79 = scmp.eq.s32.totalorder %s15, 1
    %p80 = por %p78, %p79
    %p81 = scmp.ne.s32.totalorder %s70, %s71
    %p82 = scmp.eq.s32.totalorder %s15, 0
    %p83 = por %p81, %p82
    %p84 = scmp.ne.s32.totalorder %s70, %s71
    %p85 = scmp.eq.s32.totalorder %s16, 1
    %p86 = por %p84, %p85
    %p88 = scmp.ne.s32.totalorder %s71, %s87
    %p89 = scmp.eq.s32.totalorder %s16, 0
    %p90 = por %p88, %p89
    %s91 = ssub.s32 %s10, %s17
    %p92 = scmp.eq.s32.totalorder %s91, 0
    %s94 = sadd.s32 %s93, 1
    %s95 = scalar_select %p92, %s93, %s94
    %p98 = pneg %p92
    %p99 = scmp.eq.s32.totalorder %s10, 1
    %p100 = por %p98, %p99
    %p101 = scmp.ne.s32.totalorder %s93, %s96
    %p102 = scmp.eq.s32.totalorder %s10, 0
    %p103 = por %p101, %p102
    %p104 = scmp.ne.s32.totalorder %s93, %s96
    %p105 = scmp.eq.s32.totalorder %s15, 1
    %p106 = por %p104, %p105
    %p107 = scmp.ne.s32.totalorder %s96, %s97
    %p108 = scmp.eq.s32.totalorder %s15, 0
    %p109 = por %p107, %p108
    %p110 = scmp.ne.s32.totalorder %s96, %s97
    %p111 = scmp.eq.s32.totalorder %s16, 1
    %p112 = por %p110, %p111
    %p114 = scmp.ne.s32.totalorder %s97, %s113
    %p115 = scmp.eq.s32.totalorder %s16, 0
    %p116 = por %p114, %p115
    %p117 = scmp.le.s32.totalorder 1, %s10
    %p118 = scmp.lt.s32.totalorder %s10, 3
    %p119 = pnand %p117, %p118
    %p120 = pneg %p119
    // Predicated region
    $region9: #{tconv_layer_forward.4} parent=5 // pred_check
      _
    $region10: #{tconv_layer_forward.4} parent=5 // pred_check_branch
      %122 = sbr.rel (%p119) target = $region12
    $region11: #{tconv_layer_forward.4} parent=5 // pred_region
      %s123 = ssub.s32 %s10, 1
      // Predicated region
      $region13: #{tconv_layer_forward.4} parent=11 // pred_check
        %p124 = pneg %p57
      $region14: #{tconv_layer_forward.4} parent=11 // pred_check_branch
        %126 = sbr.rel (%p124) target = $region16
      $region15: #{tconv_layer_forward.4} parent=11 // pred_region
        _
      $region16: #{tconv_layer_forward.4} parent=11 // pred_fallthru
        _
    $region12: #{tconv_layer_forward.4} parent=5 // pred_fallthru
      _
    %p127 = scmp.lt.s32.totalorder %s10, 2
    // Predicated region
    $region17: #{tconv_layer_forward.4} parent=5 // pred_check
      %p128 = pneg %p127
    $region18: #{tconv_layer_forward.4} parent=5 // pred_check_branch
      %130 = sbr.rel (%p128) target = $region20
    $region19: #{tconv_layer_forward.4} parent=5 // pred_region
      // Predicated region
      $region21: #{tconv_layer_forward.4} parent=19 // pred_check
        %p131 = pneg %p30
      $region22: #{tconv_layer_forward.4} parent=19 // pred_check_branch
        %133 = sbr.rel (%p131) target = $region24
      $region23: #{tconv_layer_forward.4} parent=19 // pred_region
        %p134 = scmp.lt.s32.totalorder %s10, 1
        %s135 = scalar_select %p134, %s10, 1
        %s136 = smul.addr %s135, 61
        %s137 = smul.addr %s136, 4
        %s138 = scalar_lea.vmem %s0, %s137
      $region24: #{tconv_layer_forward.4} parent=19 // pred_fallthru
        _
    $region20: #{tconv_layer_forward.4} parent=5 // pred_fallthru
      _
    %p139 = scmp.le.s32.totalorder 1, %s10
    %p140 = scmp.lt.s32.totalorder %s10, 3
    %p141 = pnand %p139, %p140
    %p142 = pneg %p141
    // Predicated region
    $region25: #{tconv_layer_forward.4} parent=5 // pred_check
      _
    $region26: #{tconv_layer_forward.4} parent=5 // pred_check_branch
      %144 = sbr.rel (%p141) target = $region28
    $region27: #{tconv_layer_forward.4} parent=5 // pred_region
      %s145 = ssub.s32 %s10, 1
      %p146 = scmp.lt.s32.totalorder %s15, 1
      %s147 = scalar_select %p146, %s15, 1
      %s148 = smul.addr %s147, 61
      %s149 = smul.addr %s148, 4
      %s150 = scalar_lea.vmem %s0, %s149
      %p151 = pneg %p36
      %p152 = pneg %p33
      %p153 = pneg %p57
      %p154 = pneg %p54
      %p155 = pneg %p83
      %p156 = pneg %p80
      %p157 = scmp.lt.s32.totalorder %s15, 1
      %s158 = scalar_select %p157, %s15, 1
      %s159 = smul.addr %s158, 54
      %s160 = smul.addr %s159, 4
      %s161 = scalar_lea.vmem %s2, %s160
      %p162 = pneg %p109
      %p163 = pneg %p106
      %p164 = scmp.lt.s32.totalorder %s15, 1
      %s165 = scalar_select %p164, %s15, 1
      %s166 = smul.addr %s165, 2
      %s167 = scalar_lea.vmem %s3, %s166
      %p168 = scmp.lt.s32.totalorder %s15, 1
      %s169 = scalar_select %p168, %s15, 1
      %s170 = smul.addr %s169, 61
      %s171 = smul.addr %s170, 4
      %s172 = scalar_lea.vmem %s0, %s171
      %p173 = scmp.lt.s32.totalorder %s15, 1
      %s174 = scalar_select %p173, %s15, 1
      %s175 = smul.addr %s174, 54
      %s176 = smul.addr %s175, 4
      %s177 = scalar_lea.vmem %s2, %s176
      %p178 = scmp.lt.s32.totalorder %s15, 1
      %s179 = scalar_select %p178, %s15, 1
      %s180 = smul.addr %s179, 2
      %s181 = scalar_lea.vmem %s3, %s180
      %v183 = vld [vmem:[%s172] sm:$0xf]
      %v184 = vld [vmem:[%s172 + $0x4] sm:$0xf]
      %v185 = vld [vmem:[%s172 + $0x8] sm:$0xf]
      %v186 = vld [vmem:[%s172 + $0xc] sm:$0xf]
      %v187 = vld [vmem:[%s172 + $0x10] sm:$0xf]
      %v188 = vld [vmem:[%s172 + $0x14] sm:$0xf]
      %v189 = vld [vmem:[%s172 + $0x18] sm:$0xf]
      %v190 = vld [vmem:[%s172 + $0x1c] sm:$0xf]
      %v191 = vld [vmem:[%s172 + $0x20] sm:$0xf]
      %v192 = vld [vmem:[%s172 + $0x24] sm:$0xf]
      %v193 = vld [vmem:[%s172 + $0x28] sm:$0xf]
      %v194 = vld [vmem:[%s172 + $0x2c] sm:$0xf]
      %v195 = vld [vmem:[%s172 + $0x30] sm:$0xf]
      %v196 = vld [vmem:[%s172 + $0x34] sm:$0xf]
      %v197 = vld [vmem:[%s172 + $0x38] sm:$0xf]
      %v198 = vld [vmem:[%s172 + $0x3c] sm:$0xf]
      %v199 = vld [vmem:[%s172 + $0x40] sm:$0xf]
      %v200 = vld [vmem:[%s172 + $0x44] sm:$0xf]
      %v201 = vld [vmem:[%s172 + $0x48] sm:$0xf]
      %v202 = vld [vmem:[%s172 + $0x4c] sm:$0xf]
      %v203 = vld [vmem:[%s172 + $0x50] sm:$0xf]
      %v204 = vld [vmem:[%s172 + $0x54] sm:$0xf]
      %v205 = vld [vmem:[%s172 + $0x58] sm:$0xf]
      %v206 = vld [vmem:[%s172 + $0x5c] sm:$0xf]
      %v207 = vld [vmem:[%s172 + $0x60] sm:$0xf]
      %v208 = vld [vmem:[%s172 + $0x64] sm:$0xf]
      %v209 = vld [vmem:[%s172 + $0x68] sm:$0xf]
      %v210 = vld [vmem:[%s172 + $0x6c] sm:$0xf]
      %v211 = vld [vmem:[%s172 + $0x70] sm:$0xf]
      %v212 = vld [vmem:[%s172 + $0x74] sm:$0xf]
      %v213 = vld [vmem:[%s172 + $0x78] sm:$0xf]
      %v214 = vld [vmem:[%s172 + $0x7c] sm:$0xf]
      %v215 = vld [vmem:[%s172 + $0x80] sm:$0xf]
      %v216 = vld [vmem:[%s172 + $0x84] sm:$0xf]
      %v217 = vld [vmem:[%s172 + $0x88] sm:$0xf]
      %v218 = vld [vmem:[%s172 + $0x8c] sm:$0xf]
      %v219 = vld [vmem:[%s172 + $0x90] sm:$0xf]
      %v220 = vld [vmem:[%s172 + $0x94] sm:$0xf]
      %v221 = vld [vmem:[%s172 + $0x98] sm:$0xf]
      %v222 = vld [vmem:[%s172 + $0x9c] sm:$0xf]
      %v223 = vld [vmem:[%s172 + $0xa0] sm:$0xf]
      %v224 = vld [vmem:[%s172 + $0xa4] sm:$0xf]
      %v225 = vld [vmem:[%s172 + $0xa8] sm:$0xf]
      %v226 = vld [vmem:[%s172 + $0xac] sm:$0xf]
      %v227 = vld [vmem:[%s172 + $0xb0] sm:$0xf]
      %v228 = vld [vmem:[%s172 + $0xb4] sm:$0xf]
      %v229 = vld [vmem:[%s172 + $0xb8] sm:$0xf]
      %v230 = vld [vmem:[%s172 + $0xbc] sm:$0xf]
      %v231 = vld [vmem:[%s172 + $0xc0] sm:$0xf]
      %v232 = vld [vmem:[%s172 + $0xc4] sm:$0xf]
      %v233 = vld [vmem:[%s172 + $0xc8] sm:$0xf]
      %v234 = vld [vmem:[%s172 + $0xcc] sm:$0xf]
      %v235 = vld [vmem:[%s172 + $0xd0] sm:$0xf]
      %v236 = vld [vmem:[%s172 + $0xd4] sm:$0xf]
      %v237 = vld [vmem:[%s172 + $0xd8] sm:$0x1]
      %v238 = vld [vmem:[%s172] sm:$0xe]
      %v239 = vld [vmem:[%s172 + $0xd8] sm:$0xf]
      %v240 = vld [vmem:[%s172 + $0xdc] sm:$0xf]
      %v241 = vld [vmem:[%s172 + $0xe0] sm:$0xf]
      %v242 = vld [vmem:[%s172 + $0xe4] sm:$0x1]
      %v243 = vld [vmem:[%s172 + $0xc] sm:$0xe]
      %v244 = vld [vmem:[%s172 + $0xe4] sm:$0xf]
      %v245 = vld [vmem:[%s172 + $0xe8] sm:$0xf]
      %v246 = vld [vmem:[%s172 + $0xec] sm:$0xf]
      %v247 = vld [vmem:[%s172 + $0xf0] sm:$0x1]
      %v248 = vld [vmem:[%s172 + $0x18] sm:$0xe]
      %v303 = vunpack.c.l.b16 %v183
      %v304 = vunpack.c.l.b16 %v184
      %v305 = vunpack.c.l.b16 %v185
      %v306 = vunpack.c.l.b16 %v186
      %v307 = vunpack.c.l.b16 %v187
      %v308 = vunpack.c.l.b16 %v188
      %v309 = vunpack.c.l.b16 %v189
      %v310 = vunpack.c.l.b16 %v190
      %v311 = vunpack.c.l.b16 %v191
      %v312 = vunpack.c.l.b16 %v192
      %v313 = vunpack.c.l.b16 %v193
      %v314 = vunpack.c.l.b16 %v194
      %v315 = vunpack.c.l.b16 %v195
      %v316 = vunpack.c.l.b16 %v196
      %v317 = vunpack.c.l.b16 %v197
      %v318 = vunpack.c.l.b16 %v198
      %v319 = vunpack.c.l.b16 %v199
      %v320 = vunpack.c.l.b16 %v200
      %v321 = vunpack.c.l.b16 %v201
      %v322 = vunpack.c.l.b16 %v202
      %v323 = vunpack.c.l.b16 %v203
      %v324 = vunpack.c.l.b16 %v204
      %v325 = vunpack.c.l.b16 %v205
      %v326 = vunpack.c.l.b16 %v206
      %v327 = vunpack.c.l.b16 %v207
      %v328 = vunpack.c.l.b16 %v208
      %v329 = vunpack.c.l.b16 %v209
      %v330 = vunpack.c.l.b16 %v210
      %v331 = vunpack.c.l.b16 %v211
      %v332 = vunpack.c.l.b16 %v212
      %v333 = vunpack.c.l.b16 %v213
      %v334 = vunpack.c.l.b16 %v214
      %v335 = vunpack.c.l.b16 %v215
      %v336 = vunpack.c.l.b16 %v216
      %v337 = vunpack.c.l.b16 %v217
      %v338 = vunpack.c.l.b16 %v218
      %v339 = vunpack.c.l.b16 %v219
      %v340 = vunpack.c.l.b16 %v220
      %v341 = vunpack.c.l.b16 %v221
      %v342 = vunpack.c.l.b16 %v222
      %v343 = vunpack.c.l.b16 %v223
      %v344 = vunpack.c.l.b16 %v224
      %v345 = vunpack.c.l.b16 %v225
      %v346 = vunpack.c.l.b16 %v226
      %v347 = vunpack.c.l.b16 %v227
      %v348 = vunpack.c.l.b16 %v228
      %v349 = vunpack.c.l.b16 %v229
      %v350 = vunpack.c.l.b16 %v230
      %v351 = vunpack.c.l.b16 %v231
      %v352 = vunpack.c.l.b16 %v232
      %v353 = vunpack.c.l.b16 %v233
      %v354 = vunpack.c.l.b16 %v234
      %v355 = vunpack.c.l.b16 %v235
      %v356 = vunpack.c.l.b16 %v236
      %v357 = vpack.c.b16 %v304, %v303
      %v358 = vpack.c.b16 %v306, %v305
      %v359 = vpack.c.b16 %v308, %v307
      %v360 = vpack.c.b16 %v310, %v309
      %v361 = vpack.c.b16 %v312, %v311
      %v362 = vpack.c.b16 %v314, %v313
      %v363 = vpack.c.b16 %v316, %v315
      %v364 = vpack.c.b16 %v318, %v317
      %v365 = vpack.c.b16 %v320, %v319
      %v366 = vpack.c.b16 %v322, %v321
      %v367 = vpack.c.b16 %v324, %v323
      %v368 = vpack.c.b16 %v326, %v325
      %v369 = vpack.c.b16 %v328, %v327
      %v370 = vpack.c.b16 %v330, %v329
      %v371 = vpack.c.b16 %v332, %v331
      %v372 = vpack.c.b16 %v334, %v333
      %v373 = vpack.c.b16 %v336, %v335
      %v374 = vpack.c.b16 %v338, %v337
      %v375 = vpack.c.b16 %v340, %v339
      %v376 = vpack.c.b16 %v342, %v341
      %v377 = vpack.c.b16 %v344, %v343
      %v378 = vpack.c.b16 %v346, %v345
      %v379 = vpack.c.b16 %v348, %v347
      %v380 = vpack.c.b16 %v350, %v349
      %v381 = vpack.c.b16 %v352, %v351
      %v382 = vpack.c.b16 %v354, %v353
      %v383 = vpack.c.b16 %v356, %v355
      %v385 = vunpack.c.l.b16 %v237
      %v386 = vpack.c.b16 %v385, %v385
      %vm387 = vsmask.f32 7424
      %v389 = vshrl.u32 %v357, 16
      %v391 = vshll.u32 %v357, 16
      %v393 = vrot.slane %v391, 1
      %v394 = vor.u32 %v389, %v393
      %v396 = vshll.u32 %v358, 16
      %v398 = vrot.slane %v396, 1
      %v399 = vsel %vm387, %v394, %v398
      %v400 = vshrl.u32 %v358, 16
      %v402 = vor.u32 %v400, %v398
      %v404 = vshll.u32 %v359, 16
      %v406 = vrot.slane %v404, 1
      %v407 = vsel %vm387, %v402, %v406
      %v408 = vshrl.u32 %v359, 16
      %v410 = vor.u32 %v408, %v406
      %v412 = vshll.u32 %v360, 16
      %v414 = vrot.slane %v412, 1
      %v415 = vsel %vm387, %v410, %v414
      %v416 = vshrl.u32 %v360, 16
      %v418 = vor.u32 %v416, %v414
      %v420 = vshll.u32 %v361, 16
      %v422 = vrot.slane %v420, 1
      %v423 = vsel %vm387, %v418, %v422
      %v424 = vshrl.u32 %v361, 16
      %v426 = vor.u32 %v424, %v422
      %v428 = vshll.u32 %v362, 16
      %v430 = vrot.slane %v428, 1
      %v431 = vsel %vm387, %v426, %v430
      %v432 = vshrl.u32 %v362, 16
      %v434 = vor.u32 %v432, %v430
      %v436 = vshll.u32 %v363, 16
      %v438 = vrot.slane %v436, 1
      %v439 = vsel %vm387, %v434, %v438
      %v440 = vshrl.u32 %v363, 16
      %v442 = vor.u32 %v440, %v438
      %v444 = vshll.u32 %v364, 16
      %v446 = vrot.slane %v444, 1
      %v447 = vsel %vm387, %v442, %v446
      %v448 = vshrl.u32 %v364, 16
      %v450 = vor.u32 %v448, %v446
      %v452 = vshll.u32 %v365, 16
      %v454 = vrot.slane %v452, 1
      %v455 = vsel %vm387, %v450, %v454
      %v456 = vshrl.u32 %v365, 16
      %v458 = vor.u32 %v456, %v454
      %v460 = vshll.u32 %v366, 16
      %v462 = vrot.slane %v460, 1
      %v463 = vsel %vm387, %v458, %v462
      %v464 = vshrl.u32 %v366, 16
      %v466 = vor.u32 %v464, %v462
      %v468 = vshll.u32 %v367, 16
      %v470 = vrot.slane %v468, 1
      %v471 = vsel %vm387, %v466, %v470
      %v472 = vshrl.u32 %v367, 16
      %v474 = vor.u32 %v472, %v470
      %v476 = vshll.u32 %v368, 16
      %v478 = vrot.slane %v476, 1
      %v479 = vsel %vm387, %v474, %v478
      %v480 = vshrl.u32 %v368, 16
      %v482 = vor.u32 %v480, %v478
      %v484 = vshll.u32 %v369, 16
      %v486 = vrot.slane %v484, 1
      %v487 = vsel %vm387, %v482, %v486
      %v488 = vshrl.u32 %v369, 16
      %v490 = vor.u32 %v488, %v486
      %v492 = vshll.u32 %v370, 16
      %v494 = vrot.slane %v492, 1
      %v495 = vsel %vm387, %v490, %v494
      %v496 = vshrl.u32 %v370, 16
      %v498 = vor.u32 %v496, %v494
      %v500 = vshll.u32 %v371, 16
      %v502 = vrot.slane %v500, 1
      %v503 = vsel %vm387, %v498, %v502
      %v504 = vshrl.u32 %v371, 16
      %v506 = vor.u32 %v504, %v502
      %v508 = vshll.u32 %v372, 16
      %v510 = vrot.slane %v508, 1
      %v511 = vsel %vm387, %v506, %v510
      %v512 = vshrl.u32 %v372, 16
      %v514 = vor.u32 %v512, %v510
      %v516 = vshll.u32 %v373, 16
      %v518 = vrot.slane %v516, 1
      %v519 = vsel %vm387, %v514, %v518
      %v520 = vshrl.u32 %v373, 16
      %v522 = vor.u32 %v520, %v518
      %v524 = vshll.u32 %v374, 16
      %v526 = vrot.slane %v524, 1
      %v527 = vsel %vm387, %v522, %v526
      %v528 = vshrl.u32 %v374, 16
      %v530 = vor.u32 %v528, %v526
      %v532 = vshll.u32 %v375, 16
      %v534 = vrot.slane %v532, 1
      %v535 = vsel %vm387, %v530, %v534
      %v536 = vshrl.u32 %v375, 16
      %v538 = vor.u32 %v536, %v534
      %v540 = vshll.u32 %v376, 16
      %v542 = vrot.slane %v540, 1
      %v543 = vsel %vm387, %v538, %v542
      %v544 = vshrl.u32 %v376, 16
      %v546 = vor.u32 %v544, %v542
      %v548 = vshll.u32 %v377, 16
      %v550 = vrot.slane %v548, 1
      %v551 = vsel %vm387, %v546, %v550
      %v552 = vshrl.u32 %v377, 16
      %v554 = vor.u32 %v552, %v550
      %v556 = vshll.u32 %v378, 16
      %v558 = vrot.slane %v556, 1
      %v559 = vsel %vm387, %v554, %v558
      %v560 = vshrl.u32 %v378, 16
      %v562 = vor.u32 %v560, %v558
      %v564 = vshll.u32 %v379, 16
      %v566 = vrot.slane %v564, 1
      %v567 = vsel %vm387, %v562, %v566
      %v568 = vshrl.u32 %v379, 16
      %v570 = vor.u32 %v568, %v566
      %v572 = vshll.u32 %v380, 16
      %v574 = vrot.slane %v572, 1
      %v575 = vsel %vm387, %v570, %v574
      %v576 = vshrl.u32 %v380, 16
      %v578 = vor.u32 %v576, %v574
      %v580 = vshll.u32 %v381, 16
      %v582 = vrot.slane %v580, 1
      %v583 = vsel %vm387, %v578, %v582
      %v584 = vshrl.u32 %v381, 16
      %v586 = vor.u32 %v584, %v582
      %v588 = vshll.u32 %v382, 16
      %v590 = vrot.slane %v588, 1
      %v591 = vsel %vm387, %v586, %v590
      %v592 = vshrl.u32 %v382, 16
      %v594 = vor.u32 %v592, %v590
      %v596 = vshll.u32 %v383, 16
      %v598 = vrot.slane %v596, 1
      %v599 = vsel %vm387, %v594, %v598
      %v600 = vshrl.u32 %v383, 16
      %v602 = vor.u32 %v600, %v598
      %v604 = vshll.u32 %v386, 16
      %v606 = vrot.slane %v604, 1
      %v607 = vsel %vm387, %v602, %v606
      %608 = vrot.lane.b32.xlu0 %v399, 4
      %v609 = vpop.permute.xlu0 %608
      %610 = vrot.lane.b32.xlu0 %v407, 4
      %v611 = vpop.permute.xlu0 %610
      %612 = vrot.lane.b32.xlu0 %v415, 4
      %v613 = vpop.permute.xlu0 %612
      %614 = vrot.lane.b32.xlu0 %v423, 4
      %v615 = vpop.permute.xlu0 %614
      %616 = vrot.lane.b32.xlu0 %v431, 4
      %v617 = vpop.permute.xlu0 %616
      %618 = vrot.lane.b32.xlu0 %v439, 4
      %v619 = vpop.permute.xlu0 %618
      %620 = vrot.lane.b32.xlu0 %v447, 4
      %v621 = vpop.permute.xlu0 %620
      %622 = vrot.lane.b32.xlu0 %v455, 4
      %v623 = vpop.permute.xlu0 %622
      %624 = vrot.lane.b32.xlu0 %v463, 4
      %v625 = vpop.permute.xlu0 %624
      %626 = vrot.lane.b32.xlu0 %v471, 4
      %v627 = vpop.permute.xlu0 %626
      %628 = vrot.lane.b32.xlu0 %v479, 4
      %v629 = vpop.permute.xlu0 %628
      %630 = vrot.lane.b32.xlu0 %v487, 4
      %v631 = vpop.permute.xlu0 %630
      %632 = vrot.lane.b32.xlu0 %v495, 4
      %v633 = vpop.permute.xlu0 %632
      %634 = vrot.lane.b32.xlu0 %v503, 4
      %v635 = vpop.permute.xlu0 %634
      %636 = vrot.lane.b32.xlu0 %v511, 4
      %v637 = vpop.permute.xlu0 %636
      %638 = vrot.lane.b32.xlu0 %v519, 4
      %v639 = vpop.permute.xlu0 %638
      %640 = vrot.lane.b32.xlu0 %v527, 4
      %v641 = vpop.permute.xlu0 %640
      %642 = vrot.lane.b32.xlu0 %v535, 4
      %v643 = vpop.permute.xlu0 %642
      %644 = vrot.lane.b32.xlu0 %v543, 4
      %v645 = vpop.permute.xlu0 %644
      %646 = vrot.lane.b32.xlu0 %v551, 4
      %v647 = vpop.permute.xlu0 %646
      %648 = vrot.lane.b32.xlu0 %v559, 4
      %v649 = vpop.permute.xlu0 %648
      %650 = vrot.lane.b32.xlu0 %v567, 4
      %v651 = vpop.permute.xlu0 %650
      %652 = vrot.lane.b32.xlu0 %v575, 4
      %v653 = vpop.permute.xlu0 %652
      %654 = vrot.lane.b32.xlu0 %v583, 4
      %v655 = vpop.permute.xlu0 %654
      %656 = vrot.lane.b32.xlu0 %v591, 4
      %v657 = vpop.permute.xlu0 %656
      %658 = vrot.lane.b32.xlu0 %v599, 4
      %v659 = vpop.permute.xlu0 %658
      %660 = vrot.lane.b32.xlu0 %v607, 4
      %v661 = vpop.permute.xlu0 %660
      %v663 = vunpack.c.l.b16 %v238
      %v664 = vpack.c.b16 %v304, %v663
      %vm665 = vcmask 1046528
      %v666 = vrot.slane %v664, 1
      %v667 = vrot.slane %v358, 1
      %v668 = vsel %vm665, %v666, %v667
      %v669 = vrot.slane %v359, 1
      %v670 = vsel %vm665, %v667, %v669
      %v671 = vrot.slane %v360, 1
      %v672 = vsel %vm665, %v669, %v671
      %v673 = vrot.slane %v361, 1
      %v674 = vsel %vm665, %v671, %v673
      %v675 = vrot.slane %v362, 1
      %v676 = vsel %vm665, %v673, %v675
      %v677 = vrot.slane %v363, 1
      %v678 = vsel %vm665, %v675, %v677
      %v679 = vrot.slane %v364, 1
      %v680 = vsel %vm665, %v677, %v679
      %v681 = vrot.slane %v365, 1
      %v682 = vsel %vm665, %v679, %v681
      %v683 = vrot.slane %v366, 1
      %v684 = vsel %vm665, %v681, %v683
      %v685 = vrot.slane %v367, 1
      %v686 = vsel %vm665, %v683, %v685
      %v687 = vrot.slane %v368, 1
      %v688 = vsel %vm665, %v685, %v687
      %v689 = vrot.slane %v369, 1
      %v690 = vsel %vm665, %v687, %v689
      %v691 = vrot.slane %v370, 1
      %v692 = vsel %vm665, %v689, %v691
      %v693 = vrot.slane %v371, 1
      %v694 = vsel %vm665, %v691, %v693
      %v695 = vrot.slane %v372, 1
      %v696 = vsel %vm665, %v693, %v695
      %v697 = vrot.slane %v373, 1
      %v698 = vsel %vm665, %v695, %v697
      %v699 = vrot.slane %v374, 1
      %v700 = vsel %vm665, %v697, %v699
      %v701 = vrot.slane %v375, 1
      %v702 = vsel %vm665, %v699, %v701
      %v703 = vrot.slane %v376, 1
      %v704 = vsel %vm665, %v701, %v703
      %v705 = vrot.slane %v377, 1
      %v706 = vsel %vm665, %v703, %v705
      %v707 = vrot.slane %v378, 1
      %v708 = vsel %vm665, %v705, %v707
      %v709 = vrot.slane %v379, 1
      %v710 = vsel %vm665, %v707, %v709
      %v711 = vrot.slane %v380, 1
      %v712 = vsel %vm665, %v709, %v711
      %v713 = vrot.slane %v381, 1
      %v714 = vsel %vm665, %v711, %v713
      %v715 = vrot.slane %v382, 1
      %v716 = vsel %vm665, %v713, %v715
      %v717 = vrot.slane %v383, 1
      %v718 = vsel %vm665, %v715, %v717
      %v719 = vrot.slane %v386, 1
      %v720 = vsel %vm665, %v717, %v719
      %721 = vrot.lane.b32.xlu0 %v668, 8
      %v722 = vpop.permute.xlu0 %721
      %723 = vrot.lane.b32.xlu0 %v670, 8
      %v724 = vpop.permute.xlu0 %723
      %725 = vrot.lane.b32.xlu0 %v672, 8
      %v726 = vpop.permute.xlu0 %725
      %727 = vrot.lane.b32.xlu0 %v674, 8
      %v728 = vpop.permute.xlu0 %727
      %729 = vrot.lane.b32.xlu0 %v676, 8
      %v730 = vpop.permute.xlu0 %729
      %731 = vrot.lane.b32.xlu0 %v678, 8
      %v732 = vpop.permute.xlu0 %731
      %733 = vrot.lane.b32.xlu0 %v680, 8
      %v734 = vpop.permute.xlu0 %733
      %735 = vrot.lane.b32.xlu0 %v682, 8
      %v736 = vpop.permute.xlu0 %735
      %737 = vrot.lane.b32.xlu0 %v684, 8
      %v738 = vpop.permute.xlu0 %737
      %739 = vrot.lane.b32.xlu0 %v686, 8
      %v740 = vpop.permute.xlu0 %739
      %741 = vrot.lane.b32.xlu0 %v688, 8
      %v742 = vpop.permute.xlu0 %741
      %743 = vrot.lane.b32.xlu0 %v690, 8
      %v744 = vpop.permute.xlu0 %743
      %745 = vrot.lane.b32.xlu0 %v692, 8
      %v746 = vpop.permute.xlu0 %745
      %747 = vrot.lane.b32.xlu0 %v694, 8
      %v748 = vpop.permute.xlu0 %747
      %749 = vrot.lane.b32.xlu0 %v696, 8
      %v750 = vpop.permute.xlu0 %749
      %751 = vrot.lane.b32.xlu0 %v698, 8
      %v752 = vpop.permute.xlu0 %751
      %753 = vrot.lane.b32.xlu0 %v700, 8
      %v754 = vpop.permute.xlu0 %753
      %755 = vrot.lane.b32.xlu0 %v702, 8
      %v756 = vpop.permute.xlu0 %755
      %757 = vrot.lane.b32.xlu0 %v704, 8
      %v758 = vpop.permute.xlu0 %757
      %759 = vrot.lane.b32.xlu0 %v706, 8
      %v760 = vpop.permute.xlu0 %759
      %761 = vrot.lane.b32.xlu0 %v708, 8
      %v762 = vpop.permute.xlu0 %761
      %763 = vrot.lane.b32.xlu0 %v710, 8
      %v764 = vpop.permute.xlu0 %763
      %765 = vrot.lane.b32.xlu0 %v712, 8
      %v766 = vpop.permute.xlu0 %765
      %767 = vrot.lane.b32.xlu0 %v714, 8
      %v768 = vpop.permute.xlu0 %767
      %769 = vrot.lane.b32.xlu0 %v716, 8
      %v770 = vpop.permute.xlu0 %769
      %771 = vrot.lane.b32.xlu0 %v718, 8
      %v772 = vpop.permute.xlu0 %771
      %773 = vrot.lane.b32.xlu0 %v720, 8
      %v774 = vpop.permute.xlu0 %773
      %v778 = vunpack.c.l.b16 %v239
      %v779 = vunpack.c.l.b16 %v240
      %v780 = vunpack.c.l.b16 %v241
      %v781 = vpack.c.b16 %v307, %v306
      %v782 = vpack.c.b16 %v309, %v308
      %v783 = vpack.c.b16 %v311, %v310
      %v784 = vpack.c.b16 %v313, %v312
      %v785 = vpack.c.b16 %v315, %v314
      %v786 = vpack.c.b16 %v317, %v316
      %v787 = vpack.c.b16 %v319, %v318
      %v788 = vpack.c.b16 %v321, %v320
      %v789 = vpack.c.b16 %v323, %v322
      %v790 = vpack.c.b16 %v325, %v324
      %v791 = vpack.c.b16 %v327, %v326
      %v792 = vpack.c.b16 %v329, %v328
      %v793 = vpack.c.b16 %v331, %v330
      %v794 = vpack.c.b16 %v333, %v332
      %v795 = vpack.c.b16 %v335, %v334
      %v796 = vpack.c.b16 %v337, %v336
      %v797 = vpack.c.b16 %v339, %v338
      %v798 = vpack.c.b16 %v341, %v340
      %v799 = vpack.c.b16 %v343, %v342
      %v800 = vpack.c.b16 %v345, %v344
      %v801 = vpack.c.b16 %v347, %v346
      %v802 = vpack.c.b16 %v349, %v348
      %v803 = vpack.c.b16 %v351, %v350
      %v804 = vpack.c.b16 %v353, %v352
      %v805 = vpack.c.b16 %v355, %v354
      %v806 = vpack.c.b16 %v778, %v356
      %v807 = vpack.c.b16 %v780, %v779
      %808 = vrot.lane.b32.xlu0 %v781, 12
      %v809 = vpop.permute.xlu0 %808
      %810 = vrot.lane.b32.xlu0 %v782, 12
      %v811 = vpop.permute.xlu0 %810
      %812 = vrot.lane.b32.xlu0 %v783, 12
      %v813 = vpop.permute.xlu0 %812
      %814 = vrot.lane.b32.xlu0 %v784, 12
      %v815 = vpop.permute.xlu0 %814
      %816 = vrot.lane.b32.xlu0 %v785, 12
      %v817 = vpop.permute.xlu0 %816
      %818 = vrot.lane.b32.xlu0 %v786, 12
      %v819 = vpop.permute.xlu0 %818
      %820 = vrot.lane.b32.xlu0 %v787, 12
      %v821 = vpop.permute.xlu0 %820
      %822 = vrot.lane.b32.xlu0 %v788, 12
      %v823 = vpop.permute.xlu0 %822
      %824 = vrot.lane.b32.xlu0 %v789, 12
      %v825 = vpop.permute.xlu0 %824
      %826 = vrot.lane.b32.xlu0 %v790, 12
      %v827 = vpop.permute.xlu0 %826
      %828 = vrot.lane.b32.xlu0 %v791, 12
      %v829 = vpop.permute.xlu0 %828
      %830 = vrot.lane.b32.xlu0 %v792, 12
      %v831 = vpop.permute.xlu0 %830
      %832 = vrot.lane.b32.xlu0 %v793, 12
      %v833 = vpop.permute.xlu0 %832
      %834 = vrot.lane.b32.xlu0 %v794, 12
      %v835 = vpop.permute.xlu0 %834
      %836 = vrot.lane.b32.xlu0 %v795, 12
      %v837 = vpop.permute.xlu0 %836
      %838 = vrot.lane.b32.xlu0 %v796, 12
      %v839 = vpop.permute.xlu0 %838
      %840 = vrot.lane.b32.xlu0 %v797, 12
      %v841 = vpop.permute.xlu0 %840
      %842 = vrot.lane.b32.xlu0 %v798, 12
      %v843 = vpop.permute.xlu0 %842
      %844 = vrot.lane.b32.xlu0 %v799, 12
      %v845 = vpop.permute.xlu0 %844
      %846 = vrot.lane.b32.xlu0 %v800, 12
      %v847 = vpop.permute.xlu0 %846
      %848 = vrot.lane.b32.xlu0 %v801, 12
      %v849 = vpop.permute.xlu0 %848
      %850 = vrot.lane.b32.xlu0 %v802, 12
      %v851 = vpop.permute.xlu0 %850
      %852 = vrot.lane.b32.xlu0 %v803, 12
      %v853 = vpop.permute.xlu0 %852
      %854 = vrot.lane.b32.xlu0 %v804, 12
      %v855 = vpop.permute.xlu0 %854
      %856 = vrot.lane.b32.xlu0 %v805, 12
      %v857 = vpop.permute.xlu0 %856
      %858 = vrot.lane.b32.xlu0 %v806, 12
      %v859 = vpop.permute.xlu0 %858
      %860 = vrot.lane.b32.xlu0 %v807, 12
      %v861 = vpop.permute.xlu0 %860
      %v863 = vunpack.c.l.b16 %v242
      %v864 = vpack.c.b16 %v863, %v863
      %v866 = vshrl.u32 %v781, 16
      %v868 = vshll.u32 %v781, 16
      %v870 = vrot.slane %v868, 1
      %v871 = vor.u32 %v866, %v870
      %v873 = vshll.u32 %v782, 16
      %v875 = vrot.slane %v873, 1
      %v876 = vsel %vm387, %v871, %v875
      %v877 = vshrl.u32 %v782, 16
      %v879 = vor.u32 %v877, %v875
      %v881 = vshll.u32 %v783, 16
      %v883 = vrot.slane %v881, 1
      %v884 = vsel %vm387, %v879, %v883
      %v885 = vshrl.u32 %v783, 16
      %v887 = vor.u32 %v885, %v883
      %v889 = vshll.u32 %v784, 16
      %v891 = vrot.slane %v889, 1
      %v892 = vsel %vm387, %v887, %v891
      %v893 = vshrl.u32 %v784, 16
      %v895 = vor.u32 %v893, %v891
      %v897 = vshll.u32 %v785, 16
      %v899 = vrot.slane %v897, 1
      %v900 = vsel %vm387, %v895, %v899
      %v901 = vshrl.u32 %v785, 16
      %v903 = vor.u32 %v901, %v899
      %v905 = vshll.u32 %v786, 16
      %v907 = vrot.slane %v905, 1
      %v908 = vsel %vm387, %v903, %v907
      %v909 = vshrl.u32 %v786, 16
      %v911 = vor.u32 %v909, %v907
      %v913 = vshll.u32 %v787, 16
      %v915 = vrot.slane %v913, 1
      %v916 = vsel %vm387, %v911, %v915
      %v917 = vshrl.u32 %v787, 16
      %v919 = vor.u32 %v917, %v915
      %v921 = vshll.u32 %v788, 16
      %v923 = vrot.slane %v921, 1
      %v924 = vsel %vm387, %v919, %v923
      %v925 = vshrl.u32 %v788, 16
      %v927 = vor.u32 %v925, %v923
      %v929 = vshll.u32 %v789, 16
      %v931 = vrot.slane %v929, 1
      %v932 = vsel %vm387, %v927, %v931
      %v933 = vshrl.u32 %v789, 16
      %v935 = vor.u32 %v933, %v931
      %v937 = vshll.u32 %v790, 16
      %v939 = vrot.slane %v937, 1
      %v940 = vsel %vm387, %v935, %v939
      %v941 = vshrl.u32 %v790, 16
      %v943 = vor.u32 %v941, %v939
      %v945 = vshll.u32 %v791, 16
      %v947 = vrot.slane %v945, 1
      %v948 = vsel %vm387, %v943, %v947
      %v949 = vshrl.u32 %v791, 16
      %v951 = vor.u32 %v949, %v947
      %v953 = vshll.u32 %v792, 16
      %v955 = vrot.slane %v953, 1
      %v956 = vsel %vm387, %v951, %v955
      %v957 = vshrl.u32 %v792, 16
      %v959 = vor.u32 %v957, %v955
      %v961 = vshll.u32 %v793, 16
      %v963 = vrot.slane %v961, 1
      %v964 = vsel %vm387, %v959, %v963
      %v965 = vshrl.u32 %v793, 16
      %v967 = vor.u32 %v965, %v963
      %v969 = vshll.u32 %v794, 16
      %v971 = vrot.slane %v969, 1
      %v972 = vsel %vm387, %v967, %v971
      %v973 = vshrl.u32 %v794, 16
      %v975 = vor.u32 %v973, %v971
      %v977 = vshll.u32 %v795, 16
      %v979 = vrot.slane %v977, 1
      %v980 = vsel %vm387, %v975, %v979
      %v981 = vshrl.u32 %v795, 16
      %v983 = vor.u32 %v981, %v979
      %v985 = vshll.u32 %v796, 16
      %v987 = vrot.slane %v985, 1
      %v988 = vsel %vm387, %v983, %v987
      %v989 = vshrl.u32 %v796, 16
      %v991 = vor.u32 %v989, %v987
      %v993 = vshll.u32 %v797, 16
      %v995 = vrot.slane %v993, 1
      %v996 = vsel %vm387, %v991, %v995
      %v997 = vshrl.u32 %v797, 16
      %v999 = vor.u32 %v997, %v995
      %v1001 = vshll.u32 %v798, 16
      %v1003 = vrot.slane %v1001, 1
      %v1004 = vsel %vm387, %v999, %v1003
      %v1005 = vshrl.u32 %v798, 16
      %v1007 = vor.u32 %v1005, %v1003
      %v1009 = vshll.u32 %v799, 16
      %v1011 = vrot.slane %v1009, 1
      %v1012 = vsel %vm387, %v1007, %v1011
      %v1013 = vshrl.u32 %v799, 16
      %v1015 = vor.u32 %v1013, %v1011
      %v1017 = vshll.u32 %v800, 16
      %v1019 = vrot.slane %v1017, 1
      %v1020 = vsel %vm387, %v1015, %v1019
      %v1021 = vshrl.u32 %v800, 16
      %v1023 = vor.u32 %v1021, %v1019
      %v1025 = vshll.u32 %v801, 16
      %v1027 = vrot.slane %v1025, 1
      %v1028 = vsel %vm387, %v1023, %v1027
      %v1029 = vshrl.u32 %v801, 16
      %v1031 = vor.u32 %v1029, %v1027
      %v1033 = vshll.u32 %v802, 16
      %v1035 = vrot.slane %v1033, 1
      %v1036 = vsel %vm387, %v1031, %v1035
      %v1037 = vshrl.u32 %v802, 16
      %v1039 = vor.u32 %v1037, %v1035
      %v1041 = vshll.u32 %v803, 16
      %v1043 = vrot.slane %v1041, 1
      %v1044 = vsel %vm387, %v1039, %v1043
      %v1045 = vshrl.u32 %v803, 16
      %v1047 = vor.u32 %v1045, %v1043
      %v1049 = vshll.u32 %v804, 16
      %v1051 = vrot.slane %v1049, 1
      %v1052 = vsel %vm387, %v1047, %v1051
      %v1053 = vshrl.u32 %v804, 16
      %v1055 = vor.u32 %v1053, %v1051
      %v1057 = vshll.u32 %v805, 16
      %v1059 = vrot.slane %v1057, 1
      %v1060 = vsel %vm387, %v1055, %v1059
      %v1061 = vshrl.u32 %v805, 16
      %v1063 = vor.u32 %v1061, %v1059
      %v1065 = vshll.u32 %v806, 16
      %v1067 = vrot.slane %v1065, 1
      %v1068 = vsel %vm387, %v1063, %v1067
      %v1069 = vshrl.u32 %v806, 16
      %v1071 = vor.u32 %v1069, %v1067
      %v1073 = vshll.u32 %v807, 16
      %v1075 = vrot.slane %v1073, 1
      %v1076 = vsel %vm387, %v1071, %v1075
      %v1077 = vshrl.u32 %v807, 16
      %v1079 = vor.u32 %v1077, %v1075
      %v1081 = vshll.u32 %v864, 16
      %v1083 = vrot.slane %v1081, 1
      %v1084 = vsel %vm387, %v1079, %v1083
      %1085 = vrot.lane.b32.xlu0 %v876, 16
      %v1086 = vpop.permute.xlu0 %1085
      %1087 = vrot.lane.b32.xlu0 %v884, 16
      %v1088 = vpop.permute.xlu0 %1087
      %1089 = vrot.lane.b32.xlu0 %v892, 16
      %v1090 = vpop.permute.xlu0 %1089
      %1091 = vrot.lane.b32.xlu0 %v900, 16
      %v1092 = vpop.permute.xlu0 %1091
      %1093 = vrot.lane.b32.xlu0 %v908, 16
      %v1094 = vpop.permute.xlu0 %1093
      %1095 = vrot.lane.b32.xlu0 %v916, 16
      %v1096 = vpop.permute.xlu0 %1095
      %1097 = vrot.lane.b32.xlu0 %v924, 16
      %v1098 = vpop.permute.xlu0 %1097
      %1099 = vrot.lane.b32.xlu0 %v932, 16
      %v1100 = vpop.permute.xlu0 %1099
      %1101 = vrot.lane.b32.xlu0 %v940, 16
      %v1102 = vpop.permute.xlu0 %1101
      %1103 = vrot.lane.b32.xlu0 %v948, 16
      %v1104 = vpop.permute.xlu0 %1103
      %1105 = vrot.lane.b32.xlu0 %v956, 16
      %v1106 = vpop.permute.xlu0 %1105
      %1107 = vrot.lane.b32.xlu0 %v964, 16
      %v1108 = vpop.permute.xlu0 %1107
      %1109 = vrot.lane.b32.xlu0 %v972, 16
      %v1110 = vpop.permute.xlu0 %1109
      %1111 = vrot.lane.b32.xlu0 %v980, 16
      %v1112 = vpop.permute.xlu0 %1111
      %1113 = vrot.lane.b32.xlu0 %v988, 16
      %v1114 = vpop.permute.xlu0 %1113
      %1115 = vrot.lane.b32.xlu0 %v996, 16
      %v1116 = vpop.permute.xlu0 %1115
      %1117 = vrot.lane.b32.xlu0 %v1004, 16
      %v1118 = vpop.permute.xlu0 %1117
      %1119 = vrot.lane.b32.xlu0 %v1012, 16
      %v1120 = vpop.permute.xlu0 %1119
      %1121 = vrot.lane.b32.xlu0 %v1020, 16
      %v1122 = vpop.permute.xlu0 %1121
      %1123 = vrot.lane.b32.xlu0 %v1028, 16
      %v1124 = vpop.permute.xlu0 %1123
      %1125 = vrot.lane.b32.xlu0 %v1036, 16
      %v1126 = vpop.permute.xlu0 %1125
      %1127 = vrot.lane.b32.xlu0 %v1044, 16
      %v1128 = vpop.permute.xlu0 %1127
      %1129 = vrot.lane.b32.xlu0 %v1052, 16
      %v1130 = vpop.permute.xlu0 %1129
      %1131 = vrot.lane.b32.xlu0 %v1060, 16
      %v1132 = vpop.permute.xlu0 %1131
      %1133 = vrot.lane.b32.xlu0 %v1068, 16
      %v1134 = vpop.permute.xlu0 %1133
      %1135 = vrot.lane.b32.xlu0 %v1076, 16
      %v1136 = vpop.permute.xlu0 %1135
      %1137 = vrot.lane.b32.xlu0 %v1084, 16
      %v1138 = vpop.permute.xlu0 %1137
      %v1140 = vunpack.c.l.b16 %v243
      %v1141 = vpack.c.b16 %v307, %v1140
      %v1142 = vrot.slane %v1141, 1
      %v1143 = vrot.slane %v782, 1
      %v1144 = vsel %vm665, %v1142, %v1143
      %v1145 = vrot.slane %v783, 1
      %v1146 = vsel %vm665, %v1143, %v1145
      %v1147 = vrot.slane %v784, 1
      %v1148 = vsel %vm665, %v1145, %v1147
      %v1149 = vrot.slane %v785, 1
      %v1150 = vsel %vm665, %v1147, %v1149
      %v1151 = vrot.slane %v786, 1
      %v1152 = vsel %vm665, %v1149, %v1151
      %v1153 = vrot.slane %v787, 1
      %v1154 = vsel %vm665, %v1151, %v1153
      %v1155 = vrot.slane %v788, 1
      %v1156 = vsel %vm665, %v1153, %v1155
      %v1157 = vrot.slane %v789, 1
      %v1158 = vsel %vm665, %v1155, %v1157
      %v1159 = vrot.slane %v790, 1
      %v1160 = vsel %vm665, %v1157, %v1159
      %v1161 = vrot.slane %v791, 1
      %v1162 = vsel %vm665, %v1159, %v1161
      %v1163 = vrot.slane %v792, 1
      %v1164 = vsel %vm665, %v1161, %v1163
      %v1165 = vrot.slane %v793, 1
      %v1166 = vsel %vm665, %v1163, %v1165
      %v1167 = vrot.slane %v794, 1
      %v1168 = vsel %vm665, %v1165, %v1167
      %v1169 = vrot.slane %v795, 1
      %v1170 = vsel %vm665, %v1167, %v1169
      %v1171 = vrot.slane %v796, 1
      %v1172 = vsel %vm665, %v1169, %v1171
      %v1173 = vrot.slane %v797, 1
      %v1174 = vsel %vm665, %v1171, %v1173
      %v1175 = vrot.slane %v798, 1
      %v1176 = vsel %vm665, %v1173, %v1175
      %v1177 = vrot.slane %v799, 1
      %v1178 = vsel %vm665, %v1175, %v1177
      %v1179 = vrot.slane %v800, 1
      %v1180 = vsel %vm665, %v1177, %v1179
      %v1181 = vrot.slane %v801, 1
      %v1182 = vsel %vm665, %v1179, %v1181
      %v1183 = vrot.slane %v802, 1
      %v1184 = vsel %vm665, %v1181, %v1183
      %v1185 = vrot.slane %v803, 1
      %v1186 = vsel %vm665, %v1183, %v1185
      %v1187 = vrot.slane %v804, 1
      %v1188 = vsel %vm665, %v1185, %v1187
      %v1189 = vrot.slane %v805, 1
      %v1190 = vsel %vm665, %v1187, %v1189
      %v1191 = vrot.slane %v806, 1
      %v1192 = vsel %vm665, %v1189, %v1191
      %v1193 = vrot.slane %v807, 1
      %v1194 = vsel %vm665, %v1191, %v1193
      %v1195 = vrot.slane %v864, 1
      %v1196 = vsel %vm665, %v1193, %v1195
      %1197 = vrot.lane.b32.xlu0 %v1144, 20
      %v1198 = vpop.permute.xlu0 %1197
      %1199 = vrot.lane.b32.xlu0 %v1146, 20
      %v1200 = vpop.permute.xlu0 %1199
      %1201 = vrot.lane.b32.xlu0 %v1148, 20
      %v1202 = vpop.permute.xlu0 %1201
      %1203 = vrot.lane.b32.xlu0 %v1150, 20
      %v1204 = vpop.permute.xlu0 %1203
      %1205 = vrot.lane.b32.xlu0 %v1152, 20
      %v1206 = vpop.permute.xlu0 %1205
      %1207 = vrot.lane.b32.xlu0 %v1154, 20
      %v1208 = vpop.permute.xlu0 %1207
      %1209 = vrot.lane.b32.xlu0 %v1156, 20
      %v1210 = vpop.permute.xlu0 %1209
      %1211 = vrot.lane.b32.xlu0 %v1158, 20
      %v1212 = vpop.permute.xlu0 %1211
      %1213 = vrot.lane.b32.xlu0 %v1160, 20
      %v1214 = vpop.permute.xlu0 %1213
      %1215 = vrot.lane.b32.xlu0 %v1162, 20
      %v1216 = vpop.permute.xlu0 %1215
      %1217 = vrot.lane.b32.xlu0 %v1164, 20
      %v1218 = vpop.permute.xlu0 %1217
      %1219 = vrot.lane.b32.xlu0 %v1166, 20
      %v1220 = vpop.permute.xlu0 %1219
      %1221 = vrot.lane.b32.xlu0 %v1168, 20
      %v1222 = vpop.permute.xlu0 %1221
      %1223 = vrot.lane.b32.xlu0 %v1170, 20
      %v1224 = vpop.permute.xlu0 %1223
      %1225 = vrot.lane.b32.xlu0 %v1172, 20
      %v1226 = vpop.permute.xlu0 %1225
      %1227 = vrot.lane.b32.xlu0 %v1174, 20
      %v1228 = vpop.permute.xlu0 %1227
      %1229 = vrot.lane.b32.xlu0 %v1176, 20
      %v1230 = vpop.permute.xlu0 %1229
      %1231 = vrot.lane.b32.xlu0 %v1178, 20
      %v1232 = vpop.permute.xlu0 %1231
      %1233 = vrot.lane.b32.xlu0 %v1180, 20
      %v1234 = vpop.permute.xlu0 %1233
      %1235 = vrot.lane.b32.xlu0 %v1182, 20
      %v1236 = vpop.permute.xlu0 %1235
      %1237 = vrot.lane.b32.xlu0 %v1184, 20
      %v1238 = vpop.permute.xlu0 %1237
      %1239 = vrot.lane.b32.xlu0 %v1186, 20
      %v1240 = vpop.permute.xlu0 %1239
      %1241 = vrot.lane.b32.xlu0 %v1188, 20
      %v1242 = vpop.permute.xlu0 %1241
      %1243 = vrot.lane.b32.xlu0 %v1190, 20
      %v1244 = vpop.permute.xlu0 %1243
      %1245 = vrot.lane.b32.xlu0 %v1192, 20
      %v1246 = vpop.permute.xlu0 %1245
      %1247 = vrot.lane.b32.xlu0 %v1194, 20
      %v1248 = vpop.permute.xlu0 %1247
      %1249 = vrot.lane.b32.xlu0 %v1196, 20
      %v1250 = vpop.permute.xlu0 %1249
      %v1254 = vunpack.c.l.b16 %v244
      %v1255 = vunpack.c.l.b16 %v245
      %v1256 = vunpack.c.l.b16 %v246
      %v1257 = vpack.c.b16 %v779, %v778
      %v1258 = vpack.c.b16 %v1254, %v780
      %v1259 = vpack.c.b16 %v1256, %v1255
      %1260 = vrot.lane.b32.xlu0 %v360, 24
      %v1261 = vpop.permute.xlu0 %1260
      %1262 = vrot.lane.b32.xlu0 %v361, 24
      %v1263 = vpop.permute.xlu0 %1262
      %1264 = vrot.lane.b32.xlu0 %v362, 24
      %v1265 = vpop.permute.xlu0 %1264
      %1266 = vrot.lane.b32.xlu0 %v363, 24
      %v1267 = vpop.permute.xlu0 %1266
      %1268 = vrot.lane.b32.xlu0 %v364, 24
      %v1269 = vpop.permute.xlu0 %1268
      %1270 = vrot.lane.b32.xlu0 %v365, 24
      %v1271 = vpop.permute.xlu0 %1270
      %1272 = vrot.lane.b32.xlu0 %v366, 24
      %v1273 = vpop.permute.xlu0 %1272
      %1274 = vrot.lane.b32.xlu0 %v367, 24
      %v1275 = vpop.permute.xlu0 %1274
      %1276 = vrot.lane.b32.xlu0 %v368, 24
      %v1277 = vpop.permute.xlu0 %1276
      %1278 = vrot.lane.b32.xlu0 %v369, 24
      %v1279 = vpop.permute.xlu0 %1278
      %1280 = vrot.lane.b32.xlu0 %v370, 24
      %v1281 = vpop.permute.xlu0 %1280
      %1282 = vrot.lane.b32.xlu0 %v371, 24
      %v1283 = vpop.permute.xlu0 %1282
      %1284 = vrot.lane.b32.xlu0 %v372, 24
      %v1285 = vpop.permute.xlu0 %1284
      %1286 = vrot.lane.b32.xlu0 %v373, 24
      %v1287 = vpop.permute.xlu0 %1286
      %1288 = vrot.lane.b32.xlu0 %v374, 24
      %v1289 = vpop.permute.xlu0 %1288
      %1290 = vrot.lane.b32.xlu0 %v375, 24
      %v1291 = vpop.permute.xlu0 %1290
      %1292 = vrot.lane.b32.xlu0 %v376, 24
      %v1293 = vpop.permute.xlu0 %1292
      %1294 = vrot.lane.b32.xlu0 %v377, 24
      %v1295 = vpop.permute.xlu0 %1294
      %1296 = vrot.lane.b32.xlu0 %v378, 24
      %v1297 = vpop.permute.xlu0 %1296
      %1298 = vrot.lane.b32.xlu0 %v379, 24
      %v1299 = vpop.permute.xlu0 %1298
      %1300 = vrot.lane.b32.xlu0 %v380, 24
      %v1301 = vpop.permute.xlu0 %1300
      %1302 = vrot.lane.b32.xlu0 %v381, 24
      %v1303 = vpop.permute.xlu0 %1302
      %1304 = vrot.lane.b32.xlu0 %v382, 24
      %v1305 = vpop.permute.xlu0 %1304
      %1306 = vrot.lane.b32.xlu0 %v383, 24
      %v1307 = vpop.permute.xlu0 %1306
      %1308 = vrot.lane.b32.xlu0 %v1257, 24
      %v1309 = vpop.permute.xlu0 %1308
      %1310 = vrot.lane.b32.xlu0 %v1258, 24
      %v1311 = vpop.permute.xlu0 %1310
      %1312 = vrot.lane.b32.xlu0 %v1259, 24
      %v1313 = vpop.permute.xlu0 %1312
      %v1315 = vunpack.c.l.b16 %v247
      %v1316 = vpack.c.b16 %v1315, %v1315
      %v1318 = vshll.u32 %v1257, 16
      %v1320 = vrot.slane %v1318, 1
      %v1321 = vsel %vm387, %v602, %v1320
      %v1322 = vshrl.u32 %v1257, 16
      %v1324 = vor.u32 %v1322, %v1320
      %v1326 = vshll.u32 %v1258, 16
      %v1328 = vrot.slane %v1326, 1
      %v1329 = vsel %vm387, %v1324, %v1328
      %v1330 = vshrl.u32 %v1258, 16
      %v1332 = vor.u32 %v1330, %v1328
      %v1334 = vshll.u32 %v1259, 16
      %v1336 = vrot.slane %v1334, 1
      %v1337 = vsel %vm387, %v1332, %v1336
      %v1338 = vshrl.u32 %v1259, 16
      %v1340 = vor.u32 %v1338, %v1336
      %v1342 = vshll.u32 %v1316, 16
      %v1344 = vrot.slane %v1342, 1
      %v1345 = vsel %vm387, %v1340, %v1344
      %1346 = vrot.lane.b32.xlu0 %v423, 28
      %v1347 = vpop.permute.xlu0 %1346
      %1348 = vrot.lane.b32.xlu0 %v431, 28
      %v1349 = vpop.permute.xlu0 %1348
      %1350 = vrot.lane.b32.xlu0 %v439, 28
      %v1351 = vpop.permute.xlu0 %1350
      %1352 = vrot.lane.b32.xlu0 %v447, 28
      %v1353 = vpop.permute.xlu0 %1352
      %1354 = vrot.lane.b32.xlu0 %v455, 28
      %v1355 = vpop.permute.xlu0 %1354
      %1356 = vrot.lane.b32.xlu0 %v463, 28
      %v1357 = vpop.permute.xlu0 %1356
      %1358 = vrot.lane.b32.xlu0 %v471, 28
      %v1359 = vpop.permute.xlu0 %1358
      %1360 = vrot.lane.b32.xlu0 %v479, 28
      %v1361 = vpop.permute.xlu0 %1360
      %1362 = vrot.lane.b32.xlu0 %v487, 28
      %v1363 = vpop.permute.xlu0 %1362
      %1364 = vrot.lane.b32.xlu0 %v495, 28
      %v1365 = vpop.permute.xlu0 %1364
      %1366 = vrot.lane.b32.xlu0 %v503, 28
      %v1367 = vpop.permute.xlu0 %1366
      %1368 = vrot.lane.b32.xlu0 %v511, 28
      %v1369 = vpop.permute.xlu0 %1368
      %1370 = vrot.lane.b32.xlu0 %v519, 28
      %v1371 = vpop.permute.xlu0 %1370
      %1372 = vrot.lane.b32.xlu0 %v527, 28
      %v1373 = vpop.permute.xlu0 %1372
      %1374 = vrot.lane.b32.xlu0 %v535, 28
      %v1375 = vpop.permute.xlu0 %1374
      %1376 = vrot.lane.b32.xlu0 %v543, 28
      %v1377 = vpop.permute.xlu0 %1376
      %1378 = vrot.lane.b32.xlu0 %v551, 28
      %v1379 = vpop.permute.xlu0 %1378
      %1380 = vrot.lane.b32.xlu0 %v559, 28
      %v1381 = vpop.permute.xlu0 %1380
      %1382 = vrot.lane.b32.xlu0 %v567, 28
      %v1383 = vpop.permute.xlu0 %1382
      %1384 = vrot.lane.b32.xlu0 %v575, 28
      %v1385 = vpop.permute.xlu0 %1384
      %1386 = vrot.lane.b32.xlu0 %v583, 28
      %v1387 = vpop.permute.xlu0 %1386
      %1388 = vrot.lane.b32.xlu0 %v591, 28
      %v1389 = vpop.permute.xlu0 %1388
      %1390 = vrot.lane.b32.xlu0 %v599, 28
      %v1391 = vpop.permute.xlu0 %1390
      %1392 = vrot.lane.b32.xlu0 %v1321, 28
      %v1393 = vpop.permute.xlu0 %1392
      %1394 = vrot.lane.b32.xlu0 %v1329, 28
      %v1395 = vpop.permute.xlu0 %1394
      %1396 = vrot.lane.b32.xlu0 %v1337, 28
      %v1397 = vpop.permute.xlu0 %1396
      %1398 = vrot.lane.b32.xlu0 %v1345, 28
      %v1399 = vpop.permute.xlu0 %1398
      %v1401 = vunpack.c.l.b16 %v248
      %v1402 = vpack.c.b16 %v310, %v1401
      %v1403 = vrot.slane %v1402, 1
      %v1404 = vsel %vm665, %v1403, %v673
      %v1405 = vrot.slane %v1257, 1
      %v1406 = vsel %vm665, %v717, %v1405
      %v1407 = vrot.slane %v1258, 1
      %v1408 = vsel %vm665, %v1405, %v1407
      %v1409 = vrot.slane %v1259, 1
      %v1410 = vsel %vm665, %v1407, %v1409
      %v1411 = vrot.slane %v1316, 1
      %v1412 = vsel %vm665, %v1409, %v1411
      %1413 = vrot.lane.b32.xlu0 %v1404, 32
      %v1414 = vpop.permute.xlu0 %1413
      %1415 = vrot.lane.b32.xlu0 %v676, 32
      %v1416 = vpop.permute.xlu0 %1415
      %1417 = vrot.lane.b32.xlu0 %v678, 32
      %v1418 = vpop.permute.xlu0 %1417
      %1419 = vrot.lane.b32.xlu0 %v680, 32
      %v1420 = vpop.permute.xlu0 %1419
      %1421 = vrot.lane.b32.xlu0 %v682, 32
      %v1422 = vpop.permute.xlu0 %1421
      %1423 = vrot.lane.b32.xlu0 %v684, 32
      %v1424 = vpop.permute.xlu0 %1423
      %1425 = vrot.lane.b32.xlu0 %v686, 32
      %v1426 = vpop.permute.xlu0 %1425
      %1427 = vrot.lane.b32.xlu0 %v688, 32
      %v1428 = vpop.permute.xlu0 %1427
      %1429 = vrot.lane.b32.xlu0 %v690, 32
      %v1430 = vpop.permute.xlu0 %1429
      %1431 = vrot.lane.b32.xlu0 %v692, 32
      %v1432 = vpop.permute.xlu0 %1431
      %1433 = vrot.lane.b32.xlu0 %v694, 32
      %v1434 = vpop.permute.xlu0 %1433
      %1435 = vrot.lane.b32.xlu0 %v696, 32
      %v1436 = vpop.permute.xlu0 %1435
      %1437 = vrot.lane.b32.xlu0 %v698, 32
      %v1438 = vpop.permute.xlu0 %1437
      %1439 = vrot.lane.b32.xlu0 %v700, 32
      %v1440 = vpop.permute.xlu0 %1439
      %1441 = vrot.lane.b32.xlu0 %v702, 32
      %v1442 = vpop.permute.xlu0 %1441
      %1443 = vrot.lane.b32.xlu0 %v704, 32
      %v1444 = vpop.permute.xlu0 %1443
      %1445 = vrot.lane.b32.xlu0 %v706, 32
      %v1446 = vpop.permute.xlu0 %1445
      %1447 = vrot.lane.b32.xlu0 %v708, 32
      %v1448 = vpop.permute.xlu0 %1447
      %1449 = vrot.lane.b32.xlu0 %v710, 32
      %v1450 = vpop.permute.xlu0 %1449
      %1451 = vrot.lane.b32.xlu0 %v712, 32
      %v1452 = vpop.permute.xlu0 %1451
      %1453 = vrot.lane.b32.xlu0 %v714, 32
      %v1454 = vpop.permute.xlu0 %1453
      %1455 = vrot.lane.b32.xlu0 %v716, 32
      %v1456 = vpop.permute.xlu0 %1455
      %1457 = vrot.lane.b32.xlu0 %v718, 32
      %v1458 = vpop.permute.xlu0 %1457
      %1459 = vrot.lane.b32.xlu0 %v1406, 32
      %v1460 = vpop.permute.xlu0 %1459
      %1461 = vrot.lane.b32.xlu0 %v1408, 32
      %v1462 = vpop.permute.xlu0 %1461
      %1463 = vrot.lane.b32.xlu0 %v1410, 32
      %v1464 = vpop.permute.xlu0 %1463
      %1465 = vrot.lane.b32.xlu0 %v1412, 32
      %v1466 = vpop.permute.xlu0 %1465
      %vm1467 = vcmask 31744
      %v1469 = vsel %vm1467, %v357, %v609
      %v1471 = vsel %vm1467, %v358, %v611
      %v1473 = vsel %vm1467, %v359, %v613
      %v1475 = vsel %vm1467, %v360, %v615
      %v1477 = vsel %vm1467, %v361, %v617
      %v1479 = vsel %vm1467, %v362, %v619
      %v1481 = vsel %vm1467, %v363, %v621
      %v1483 = vsel %vm1467, %v364, %v623
      %v1485 = vsel %vm1467, %v365, %v625
      %v1487 = vsel %vm1467, %v366, %v627
      %v1489 = vsel %vm1467, %v367, %v629
      %v1491 = vsel %vm1467, %v368, %v631
      %v1493 = vsel %vm1467, %v369, %v633
      %v1495 = vsel %vm1467, %v370, %v635
      %v1497 = vsel %vm1467, %v371, %v637
      %v1499 = vsel %vm1467, %v372, %v639
      %v1501 = vsel %vm1467, %v373, %v641
      %v1503 = vsel %vm1467, %v374, %v643
      %v1505 = vsel %vm1467, %v375, %v645
      %v1507 = vsel %vm1467, %v376, %v647
      %v1509 = vsel %vm1467, %v377, %v649
      %v1511 = vsel %vm1467, %v378, %v651
      %v1513 = vsel %vm1467, %v379, %v653
      %v1515 = vsel %vm1467, %v380, %v655
      %v1517 = vsel %vm1467, %v381, %v657
      %v1519 = vsel %vm1467, %v382, %v659
      %v1521 = vsel %vm1467, %v383, %v661
      %vm1522 = vcmask 64512
      %v1524 = vsel %vm1522, %v1469, %v722
      %v1526 = vsel %vm1522, %v1471, %v724
      %v1528 = vsel %vm1522, %v1473, %v726
      %v1530 = vsel %vm1522, %v1475, %v728
      %v1532 = vsel %vm1522, %v1477, %v730
      %v1534 = vsel %vm1522, %v1479, %v732
      %v1536 = vsel %vm1522, %v1481, %v734
      %v1538 = vsel %vm1522, %v1483, %v736
      %v1540 = vsel %vm1522, %v1485, %v738
      %v1542 = vsel %vm1522, %v1487, %v740
      %v1544 = vsel %vm1522, %v1489, %v742
      %v1546 = vsel %vm1522, %v1491, %v744
      %v1548 = vsel %vm1522, %v1493, %v746
      %v1550 = vsel %vm1522, %v1495, %v748
      %v1552 = vsel %vm1522, %v1497, %v750
      %v1554 = vsel %vm1522, %v1499, %v752
      %v1556 = vsel %vm1522, %v1501, %v754
      %v1558 = vsel %vm1522, %v1503, %v756
      %v1560 = vsel %vm1522, %v1505, %v758
      %v1562 = vsel %vm1522, %v1507, %v760
      %v1564 = vsel %vm1522, %v1509, %v762
      %v1566 = vsel %vm1522, %v1511, %v764
      %v1568 = vsel %vm1522, %v1513, %v766
      %v1570 = vsel %vm1522, %v1515, %v768
      %v1572 = vsel %vm1522, %v1517, %v770
      %v1574 = vsel %vm1522, %v1519, %v772
      %v1576 = vsel %vm1522, %v1521, %v774
      %vm1577 = vcmask 97280
      %v1579 = vsel %vm1577, %v1524, %v809
      %v1581 = vsel %vm1577, %v1526, %v811
      %v1583 = vsel %vm1577, %v1528, %v813
      %v1585 = vsel %vm1577, %v1530, %v815
      %v1587 = vsel %vm1577, %v1532, %v817
      %v1589 = vsel %vm1577, %v1534, %v819
      %v1591 = vsel %vm1577, %v1536, %v821
      %v1593 = vsel %vm1577, %v1538, %v823
      %v1595 = vsel %vm1577, %v1540, %v825
      %v1597 = vsel %vm1577, %v1542, %v827
      %v1599 = vsel %vm1577, %v1544, %v829
      %v1601 = vsel %vm1577, %v1546, %v831
      %v1603 = vsel %vm1577, %v1548, %v833
      %v1605 = vsel %vm1577, %v1550, %v835
      %v1607 = vsel %vm1577, %v1552, %v837
      %v1609 = vsel %vm1577, %v1554, %v839
      %v1611 = vsel %vm1577, %v1556, %v841
      %v1613 = vsel %vm1577, %v1558, %v843
      %v1615 = vsel %vm1577, %v1560, %v845
      %v1617 = vsel %vm1577, %v1562, %v847
      %v1619 = vsel %vm1577, %v1564, %v849
      %v1621 = vsel %vm1577, %v1566, %v851
      %v1623 = vsel %vm1577, %v1568, %v853
      %v1625 = vsel %vm1577, %v1570, %v855
      %v1627 = vsel %vm1577, %v1572, %v857
      %v1629 = vsel %vm1577, %v1574, %v859
      %v1631 = vsel %vm1577, %v1576, %v861
      %vm1632 = vcmask 130048
      %v1634 = vsel %vm1632, %v1579, %v1086
      %v1636 = vsel %vm1632, %v1581, %v1088
      %v1638 = vsel %vm1632, %v1583, %v1090
      %v1640 = vsel %vm1632, %v1585, %v1092
      %v1642 = vsel %vm1632, %v1587, %v1094
      %v1644 = vsel %vm1632, %v1589, %v1096
      %v1646 = vsel %vm1632, %v1591, %v1098
      %v1648 = vsel %vm1632, %v1593, %v1100
      %v1650 = vsel %vm1632, %v1595, %v1102
      %v1652 = vsel %vm1632, %v1597, %v1104
      %v1654 = vsel %vm1632, %v1599, %v1106
      %v1656 = vsel %vm1632, %v1601, %v1108
      %v1658 = vsel %vm1632, %v1603, %v1110
      %v1660 = vsel %vm1632, %v1605, %v1112
      %v1662 = vsel %vm1632, %v1607, %v1114
      %v1664 = vsel %vm1632, %v1609, %v1116
      %v1666 = vsel %vm1632, %v1611, %v1118
      %v1668 = vsel %vm1632, %v1613, %v1120
      %v1670 = vsel %vm1632, %v1615, %v1122
      %v1672 = vsel %vm1632, %v1617, %v1124
      %v1674 = vsel %vm1632, %v1619, %v1126
      %v1676 = vsel %vm1632, %v1621, %v1128
      %v1678 = vsel %vm1632, %v1623, %v1130
      %v1680 = vsel %vm1632, %v1625, %v1132
      %v1682 = vsel %vm1632, %v1627, %v1134
      %v1684 = vsel %vm1632, %v1629, %v1136
      %v1686 = vsel %vm1632, %v1631, %v1138
      %vm1687 = vcmask 162816
      %v1689 = vsel %vm1687, %v1634, %v1198
      %v1691 = vsel %vm1687, %v1636, %v1200
      %v1693 = vsel %vm1687, %v1638, %v1202
      %v1695 = vsel %vm1687, %v1640, %v1204
      %v1697 = vsel %vm1687, %v1642, %v1206
      %v1699 = vsel %vm1687, %v1644, %v1208
      %v1701 = vsel %vm1687, %v1646, %v1210
      %v1703 = vsel %vm1687, %v1648, %v1212
      %v1705 = vsel %vm1687, %v1650, %v1214
      %v1707 = vsel %vm1687, %v1652, %v1216
      %v1709 = vsel %vm1687, %v1654, %v1218
      %v1711 = vsel %vm1687, %v1656, %v1220
      %v1713 = vsel %vm1687, %v1658, %v1222
      %v1715 = vsel %vm1687, %v1660, %v1224
      %v1717 = vsel %vm1687, %v1662, %v1226
      %v1719 = vsel %vm1687, %v1664, %v1228
      %v1721 = vsel %vm1687, %v1666, %v1230
      %v1723 = vsel %vm1687, %v1668, %v1232
      %v1725 = vsel %vm1687, %v1670, %v1234
      %v1727 = vsel %vm1687, %v1672, %v1236
      %v1729 = vsel %vm1687, %v1674, %v1238
      %v1731 = vsel %vm1687, %v1676, %v1240
      %v1733 = vsel %vm1687, %v1678, %v1242
      %v1735 = vsel %vm1687, %v1680, %v1244
      %v1737 = vsel %vm1687, %v1682, %v1246
      %v1739 = vsel %vm1687, %v1684, %v1248
      %v1741 = vsel %vm1687, %v1686, %v1250
      %vm1742 = vcmask 195584
      %v1744 = vsel %vm1742, %v1689, %v1261
      %v1746 = vsel %vm1742, %v1691, %v1263
      %v1748 = vsel %vm1742, %v1693, %v1265
      %v1750 = vsel %vm1742, %v1695, %v1267
      %v1752 = vsel %vm1742, %v1697, %v1269
      %v1754 = vsel %vm1742, %v1699, %v1271
      %v1756 = vsel %vm1742, %v1701, %v1273
      %v1758 = vsel %vm1742, %v1703, %v1275
      %v1760 = vsel %vm1742, %v1705, %v1277
      %v1762 = vsel %vm1742, %v1707, %v1279
      %v1764 = vsel %vm1742, %v1709, %v1281
      %v1766 = vsel %vm1742, %v1711, %v1283
      %v1768 = vsel %vm1742, %v1713, %v1285
      %v1770 = vsel %vm1742, %v1715, %v1287
      %v1772 = vsel %vm1742, %v1717, %v1289
      %v1774 = vsel %vm1742, %v1719, %v1291
      %v1776 = vsel %vm1742, %v1721, %v1293
      %v1778 = vsel %vm1742, %v1723, %v1295
      %v1780 = vsel %vm1742, %v1725, %v1297
      %v1782 = vsel %vm1742, %v1727, %v1299
      %v1784 = vsel %vm1742, %v1729, %v1301
      %v1786 = vsel %vm1742, %v1731, %v1303
      %v1788 = vsel %vm1742, %v1733, %v1305
      %v1790 = vsel %vm1742, %v1735, %v1307
      %v1792 = vsel %vm1742, %v1737, %v1309
      %v1794 = vsel %vm1742, %v1739, %v1311
      %v1796 = vsel %vm1742, %v1741, %v1313
      %vm1797 = vcmask 228352
      %v1799 = vsel %vm1797, %v1744, %v1347
      %v1801 = vsel %vm1797, %v1746, %v1349
      %v1803 = vsel %vm1797, %v1748, %v1351
      %v1805 = vsel %vm1797, %v1750, %v1353
      %v1807 = vsel %vm1797, %v1752, %v1355
      %v1809 = vsel %vm1797, %v1754, %v1357
      %v1811 = vsel %vm1797, %v1756, %v1359
      %v1813 = vsel %vm1797, %v1758, %v1361
      %v1815 = vsel %vm1797, %v1760, %v1363
      %v1817 = vsel %vm1797, %v1762, %v1365
      %v1819 = vsel %vm1797, %v1764, %v1367
      %v1821 = vsel %vm1797, %v1766, %v1369
      %v1823 = vsel %vm1797, %v1768, %v1371
      %v1825 = vsel %vm1797, %v1770, %v1373
      %v1827 = vsel %vm1797, %v1772, %v1375
      %v1829 = vsel %vm1797, %v1774, %v1377
      %v1831 = vsel %vm1797, %v1776, %v1379
      %v1833 = vsel %vm1797, %v1778, %v1381
      %v1835 = vsel %vm1797, %v1780, %v1383
      %v1837 = vsel %vm1797, %v1782, %v1385
      %v1839 = vsel %vm1797, %v1784, %v1387
      %v1841 = vsel %vm1797, %v1786, %v1389
      %v1843 = vsel %vm1797, %v1788, %v1391
      %v1845 = vsel %vm1797, %v1790, %v1393
      %v1847 = vsel %vm1797, %v1792, %v1395
      %v1849 = vsel %vm1797, %v1794, %v1397
      %v1851 = vsel %vm1797, %v1796, %v1399
      %vm1852 = vcmask 261120
      %v1854 = vsel %vm1852, %v1799, %v1414
      %v1856 = vsel %vm1852, %v1801, %v1416
      %v1858 = vsel %vm1852, %v1803, %v1418
      %v1860 = vsel %vm1852, %v1805, %v1420
      %v1862 = vsel %vm1852, %v1807, %v1422
      %v1864 = vsel %vm1852, %v1809, %v1424
      %v1866 = vsel %vm1852, %v1811, %v1426
      %v1868 = vsel %vm1852, %v1813, %v1428
      %v1870 = vsel %vm1852, %v1815, %v1430
      %v1872 = vsel %vm1852, %v1817, %v1432
      %v1874 = vsel %vm1852, %v1819, %v1434
      %v1876 = vsel %vm1852, %v1821, %v1436
      %v1878 = vsel %vm1852, %v1823, %v1438
      %v1880 = vsel %vm1852, %v1825, %v1440
      %v1882 = vsel %vm1852, %v1827, %v1442
      %v1884 = vsel %vm1852, %v1829, %v1444
      %v1886 = vsel %vm1852, %v1831, %v1446
      %v1888 = vsel %vm1852, %v1833, %v1448
      %v1890 = vsel %vm1852, %v1835, %v1450
      %v1892 = vsel %vm1852, %v1837, %v1452
      %v1894 = vsel %vm1852, %v1839, %v1454
      %v1896 = vsel %vm1852, %v1841, %v1456
      %v1898 = vsel %vm1852, %v1843, %v1458
      %v1900 = vsel %vm1852, %v1845, %v1460
      %v1902 = vsel %vm1852, %v1847, %v1462
      %v1904 = vsel %vm1852, %v1849, %v1464
      %v1906 = vsel %vm1852, %v1851, %v1466
      %v1907 = vld [vmem:[%s1] sm:$0xf]
      %v1908 = vld [vmem:[%s1 + $0x4] sm:$0xf]
      %v1909 = vld [vmem:[%s1 + $0x8] sm:$0xf]
      %v1910 = vld [vmem:[%s1 + $0xc] sm:$0xf]
      %v1911 = vld [vmem:[%s1 + $0x10] sm:$0x3]
      %v1917 = vunpack.c.l.b16 %v1907
      %v1918 = vunpack.c.l.b16 %v1908
      %v1919 = vunpack.c.l.b16 %v1909
      %v1920 = vunpack.c.l.b16 %v1910
      %v1921 = vunpack.c.l.b16 %v1911
      %v1922 = vpack.c.b16 %v1918, %v1917
      %v1923 = vpack.c.b16 %v1920, %v1919
      %v1924 = vpack.c.b16 %v1921, %v1921
      %vm1927 = vcmask 293888
      %v1928 = vsel %vm1927, %v1854, 0
      %v1930 = vsel %vm1927, %v1856, 0
      %v1932 = vsel %vm1927, %v1858, 0
      %v1934 = vsel %vm1927, %v1860, 0
      %v1936 = vsel %vm1927, %v1862, 0
      %v1938 = vsel %vm1927, %v1864, 0
      %v1940 = vsel %vm1927, %v1866, 0
      %v1942 = vsel %vm1927, %v1868, 0
      %v1944 = vsel %vm1927, %v1870, 0
      %v1946 = vsel %vm1927, %v1872, 0
      %v1948 = vsel %vm1927, %v1874, 0
      %v1950 = vsel %vm1927, %v1876, 0
      %v1952 = vsel %vm1927, %v1878, 0
      %v1954 = vsel %vm1927, %v1880, 0
      %v1956 = vsel %vm1927, %v1882, 0
      %v1958 = vsel %vm1927, %v1884, 0
      %v1960 = vsel %vm1927, %v1886, 0
      %v1962 = vsel %vm1927, %v1888, 0
      %v1964 = vsel %vm1927, %v1890, 0
      %v1966 = vsel %vm1927, %v1892, 0
      %v1968 = vsel %vm1927, %v1894, 0
      %v1970 = vsel %vm1927, %v1896, 0
      %v1972 = vsel %vm1927, %v1898, 0
      %v1974 = vsel %vm1927, %v1900, 0
      %v1976 = vsel %vm1927, %v1902, 0
      %v1978 = vsel %vm1927, %v1904, 0
      %v1980 = vsel %vm1927, %v1906, 0
      %vm1982 = vcmask 1041408
      %v1984 = vsel %vm1982, %v1924, 0
      %1986 = vmatpush.bf16.msra.mxu0 0
      %1987 = vmatpush.bf16.msra.mxu0 0
      %1988 = vmatpush.bf16.msra.mxu0 0
      %1989 = vmatpush.bf16.msra.mxu0 0
      %1990 = vmatpush.bf16.msra.mxu0 0
      %1991 = vmatpush.bf16.msra.mxu0 %v1984
      %1992 = vmatpush.bf16.msra.mxu0 %v1923
      %1993 = vmatpush.bf16.msra.mxu0 %v1922
      %1994 = vmatmul.bf16.gmra.mxu0 %v1928
      %v1995 = vpop.f32.mrf.mxu0
      %v1996 = vadd.f32 0.0, %v1995
      %v1997 = vpop.f32.mrf.mxu0
      %v1998 = vadd.f32 0.0, %v1997
      %1999 = vmatmul.bf16.gmra.mxu0 %v1930
      %v2000 = vpop.f32.mrf.mxu0
      %v2001 = vadd.f32 0.0, %v2000
      %v2002 = vpop.f32.mrf.mxu0
      %v2003 = vadd.f32 0.0, %v2002
      %2004 = vmatmul.bf16.gmra.mxu0 %v1932
      %v2005 = vpop.f32.mrf.mxu0
      %v2006 = vadd.f32 0.0, %v2005
      %v2007 = vpop.f32.mrf.mxu0
      %v2008 = vadd.f32 0.0, %v2007
      %2009 = vmatmul.bf16.gmra.mxu0 %v1934
      %v2010 = vpop.f32.mrf.mxu0
      %v2011 = vadd.f32 0.0, %v2010
      %v2012 = vpop.f32.mrf.mxu0
      %v2013 = vadd.f32 0.0, %v2012
      %2014 = vmatmul.bf16.gmra.mxu0 %v1936
      %v2015 = vpop.f32.mrf.mxu0
      %v2016 = vadd.f32 0.0, %v2015
      %v2017 = vpop.f32.mrf.mxu0
      %v2018 = vadd.f32 0.0, %v2017
      %2019 = vmatmul.bf16.gmra.mxu0 %v1938
      %v2020 = vpop.f32.mrf.mxu0
      %v2021 = vadd.f32 0.0, %v2020
      %v2022 = vpop.f32.mrf.mxu0
      %v2023 = vadd.f32 0.0, %v2022
      %2024 = vmatmul.bf16.gmra.mxu0 %v1940
      %v2025 = vpop.f32.mrf.mxu0
      %v2026 = vadd.f32 0.0, %v2025
      %v2027 = vpop.f32.mrf.mxu0
      %v2028 = vadd.f32 0.0, %v2027
      %2029 = vmatmul.bf16.gmra.mxu0 %v1942
      %v2030 = vpop.f32.mrf.mxu0
      %v2031 = vadd.f32 0.0, %v2030
      %v2032 = vpop.f32.mrf.mxu0
      %v2033 = vadd.f32 0.0, %v2032
      %2034 = vmatmul.bf16.gmra.mxu0 %v1944
      %v2035 = vpop.f32.mrf.mxu0
      %v2036 = vadd.f32 0.0, %v2035
      %v2037 = vpop.f32.mrf.mxu0
      %v2038 = vadd.f32 0.0, %v2037
      %2039 = vmatmul.bf16.gmra.mxu0 %v1946
      %v2040 = vpop.f32.mrf.mxu0
      %v2041 = vadd.f32 0.0, %v2040
      %v2042 = vpop.f32.mrf.mxu0
      %v2043 = vadd.f32 0.0, %v2042
      %2044 = vmatmul.bf16.gmra.mxu0 %v1948
      %v2045 = vpop.f32.mrf.mxu0
      %v2046 = vadd.f32 0.0, %v2045
      %v2047 = vpop.f32.mrf.mxu0
      %v2048 = vadd.f32 0.0, %v2047
      %2049 = vmatmul.bf16.gmra.mxu0 %v1950
      %v2050 = vpop.f32.mrf.mxu0
      %v2051 = vadd.f32 0.0, %v2050
      %v2052 = vpop.f32.mrf.mxu0
      %v2053 = vadd.f32 0.0, %v2052
      %2054 = vmatmul.bf16.gmra.mxu0 %v1952
      %v2055 = vpop.f32.mrf.mxu0
      %v2056 = vadd.f32 0.0, %v2055
      %v2057 = vpop.f32.mrf.mxu0
      %v2058 = vadd.f32 0.0, %v2057
      %2059 = vmatmul.bf16.gmra.mxu0 %v1954
      %v2060 = vpop.f32.mrf.mxu0
      %v2061 = vadd.f32 0.0, %v2060
      %v2062 = vpop.f32.mrf.mxu0
      %v2063 = vadd.f32 0.0, %v2062
      %2064 = vmatmul.bf16.gmra.mxu0 %v1956
      %v2065 = vpop.f32.mrf.mxu0
      %v2066 = vadd.f32 0.0, %v2065
      %v2067 = vpop.f32.mrf.mxu0
      %v2068 = vadd.f32 0.0, %v2067
      %2069 = vmatmul.bf16.gmra.mxu0 %v1958
      %v2070 = vpop.f32.mrf.mxu0
      %v2071 = vadd.f32 0.0, %v2070
      %v2072 = vpop.f32.mrf.mxu0
      %v2073 = vadd.f32 0.0, %v2072
      %2074 = vmatmul.bf16.gmra.mxu0 %v1960
      %v2075 = vpop.f32.mrf.mxu0
      %v2076 = vadd.f32 0.0, %v2075
      %v2077 = vpop.f32.mrf.mxu0
      %v2078 = vadd.f32 0.0, %v2077
      %2079 = vmatmul.bf16.gmra.mxu0 %v1962
      %v2080 = vpop.f32.mrf.mxu0
      %v2081 = vadd.f32 0.0, %v2080
      %v2082 = vpop.f32.mrf.mxu0
      %v2083 = vadd.f32 0.0, %v2082
      %2084 = vmatmul.bf16.gmra.mxu0 %v1964
      %v2085 = vpop.f32.mrf.mxu0
      %v2086 = vadd.f32 0.0, %v2085
      %v2087 = vpop.f32.mrf.mxu0
      %v2088 = vadd.f32 0.0, %v2087
      %2089 = vmatmul.bf16.gmra.mxu0 %v1966
      %v2090 = vpop.f32.mrf.mxu0
      %v2091 = vadd.f32 0.0, %v2090
      %v2092 = vpop.f32.mrf.mxu0
      %v2093 = vadd.f32 0.0, %v2092
      %2094 = vmatmul.bf16.gmra.mxu0 %v1968
      %v2095 = vpop.f32.mrf.mxu0
      %v2096 = vadd.f32 0.0, %v2095
      %v2097 = vpop.f32.mrf.mxu0
      %v2098 = vadd.f32 0.0, %v2097
      %2099 = vmatmul.bf16.gmra.mxu0 %v1970
      %v2100 = vpop.f32.mrf.mxu0
      %v2101 = vadd.f32 0.0, %v2100
      %v2102 = vpop.f32.mrf.mxu0
      %v2103 = vadd.f32 0.0, %v2102
      %2104 = vmatmul.bf16.gmra.mxu0 %v1972
      %v2105 = vpop.f32.mrf.mxu0
      %v2106 = vadd.f32 0.0, %v2105
      %v2107 = vpop.f32.mrf.mxu0
      %v2108 = vadd.f32 0.0, %v2107
      %2109 = vmatmul.bf16.gmra.mxu0 %v1974
      %v2110 = vpop.f32.mrf.mxu0
      %v2111 = vadd.f32 0.0, %v2110
      %v2112 = vpop.f32.mrf.mxu0
      %v2113 = vadd.f32 0.0, %v2112
      %2114 = vmatmul.bf16.gmra.mxu0 %v1976
      %v2115 = vpop.f32.mrf.mxu0
      %v2116 = vadd.f32 0.0, %v2115
      %v2117 = vpop.f32.mrf.mxu0
      %v2118 = vadd.f32 0.0, %v2117
      %2119 = vmatmul.bf16.gmra.mxu0 %v1978
      %v2120 = vpop.f32.mrf.mxu0
      %v2121 = vadd.f32 0.0, %v2120
      %v2122 = vpop.f32.mrf.mxu0
      %v2123 = vadd.f32 0.0, %v2122
      %2124 = vmatmul.bf16.gmra.mxu0 %v1980
      %v2125 = vpop.f32.mrf.mxu0
      %v2126 = vadd.f32 0.0, %v2125
      %v2127 = vpop.f32.mrf.mxu0
      %v2128 = vadd.f32 0.0, %v2127
      %2129 = vdwg.mxu0
      %v2130 = vsel %vm1522, %v1996, 0.0
      %v2131 = vsel %vm1522, %v1998, 0.0
      %v2132 = vadd.f32 %v2130, %v2131
      %v2133 = vsel %vm1522, %v2001, 0.0
      %v2134 = vadd.f32 %v2132, %v2133
      %v2135 = vsel %vm1522, %v2003, 0.0
      %v2136 = vadd.f32 %v2134, %v2135
      %v2137 = vsel %vm1522, %v2006, 0.0
      %v2138 = vadd.f32 %v2136, %v2137
      %v2139 = vsel %vm1522, %v2008, 0.0
      %v2140 = vadd.f32 %v2138, %v2139
      %v2141 = vsel %vm1522, %v2011, 0.0
      %v2142 = vadd.f32 %v2140, %v2141
      %v2143 = vsel %vm1522, %v2013, 0.0
      %v2144 = vadd.f32 %v2142, %v2143
      %v2145 = vsel %vm1522, %v2016, 0.0
      %v2146 = vadd.f32 %v2144, %v2145
      %v2147 = vsel %vm1522, %v2018, 0.0
      %v2148 = vadd.f32 %v2146, %v2147
      %v2149 = vsel %vm1522, %v2021, 0.0
      %v2150 = vadd.f32 %v2148, %v2149
      %v2151 = vsel %vm1522, %v2023, 0.0
      %v2152 = vadd.f32 %v2150, %v2151
      %v2153 = vsel %vm1522, %v2026, 0.0
      %v2154 = vadd.f32 %v2152, %v2153
      %v2155 = vsel %vm1522, %v2028, 0.0
      %v2156 = vadd.f32 %v2154, %v2155
      %v2157 = vsel %vm1522, %v2031, 0.0
      %v2158 = vadd.f32 %v2156, %v2157
      %v2159 = vsel %vm1522, %v2033, 0.0
      %v2160 = vadd.f32 %v2158, %v2159
      %v2161 = vsel %vm1522, %v2036, 0.0
      %v2162 = vadd.f32 %v2160, %v2161
      %v2163 = vsel %vm1522, %v2038, 0.0
      %v2164 = vadd.f32 %v2162, %v2163
      %v2165 = vsel %vm1522, %v2041, 0.0
      %v2166 = vadd.f32 %v2164, %v2165
      %v2167 = vsel %vm1522, %v2043, 0.0
      %v2168 = vadd.f32 %v2166, %v2167
      %v2169 = vsel %vm1522, %v2046, 0.0
      %v2170 = vadd.f32 %v2168, %v2169
      %v2171 = vsel %vm1522, %v2048, 0.0
      %v2172 = vadd.f32 %v2170, %v2171
      %v2173 = vsel %vm1522, %v2051, 0.0
      %v2174 = vadd.f32 %v2172, %v2173
      %v2175 = vsel %vm1522, %v2053, 0.0
      %v2176 = vadd.f32 %v2174, %v2175
      %v2177 = vsel %vm1522, %v2056, 0.0
      %v2178 = vadd.f32 %v2176, %v2177
      %v2179 = vsel %vm1522, %v2058, 0.0
      %v2180 = vadd.f32 %v2178, %v2179
      %v2181 = vsel %vm1522, %v2061, 0.0
      %v2182 = vadd.f32 %v2180, %v2181
      %v2183 = vsel %vm1522, %v2063, 0.0
      %v2184 = vadd.f32 %v2182, %v2183
      %v2185 = vsel %vm1522, %v2066, 0.0
      %v2186 = vadd.f32 %v2184, %v2185
      %v2187 = vsel %vm1522, %v2068, 0.0
      %v2188 = vadd.f32 %v2186, %v2187
      %v2189 = vsel %vm1522, %v2071, 0.0
      %v2190 = vadd.f32 %v2188, %v2189
      %v2191 = vsel %vm1522, %v2073, 0.0
      %v2192 = vadd.f32 %v2190, %v2191
      %v2193 = vsel %vm1522, %v2076, 0.0
      %v2194 = vadd.f32 %v2192, %v2193
      %v2195 = vsel %vm1522, %v2078, 0.0
      %v2196 = vadd.f32 %v2194, %v2195
      %v2197 = vsel %vm1522, %v2081, 0.0
      %v2198 = vadd.f32 %v2196, %v2197
      %v2199 = vsel %vm1522, %v2083, 0.0
      %v2200 = vadd.f32 %v2198, %v2199
      %v2201 = vsel %vm1522, %v2086, 0.0
      %v2202 = vadd.f32 %v2200, %v2201
      %v2203 = vsel %vm1522, %v2088, 0.0
      %v2204 = vadd.f32 %v2202, %v2203
      %v2205 = vsel %vm1522, %v2091, 0.0
      %v2206 = vadd.f32 %v2204, %v2205
      %v2207 = vsel %vm1522, %v2093, 0.0
      %v2208 = vadd.f32 %v2206, %v2207
      %v2209 = vsel %vm1522, %v2096, 0.0
      %v2210 = vadd.f32 %v2208, %v2209
      %v2211 = vsel %vm1522, %v2098, 0.0
      %v2212 = vadd.f32 %v2210, %v2211
      %v2213 = vsel %vm1522, %v2101, 0.0
      %v2214 = vadd.f32 %v2212, %v2213
      %v2215 = vsel %vm1522, %v2103, 0.0
      %v2216 = vadd.f32 %v2214, %v2215
      %v2217 = vsel %vm1522, %v2106, 0.0
      %v2218 = vadd.f32 %v2216, %v2217
      %v2219 = vsel %vm1522, %v2108, 0.0
      %v2220 = vadd.f32 %v2218, %v2219
      %v2221 = vsel %vm1522, %v2111, 0.0
      %v2222 = vadd.f32 %v2220, %v2221
      %v2223 = vsel %vm1522, %v2113, 0.0
      %v2224 = vadd.f32 %v2222, %v2223
      %v2225 = vsel %vm1522, %v2116, 0.0
      %v2226 = vadd.f32 %v2224, %v2225
      %v2227 = vsel %vm1522, %v2118, 0.0
      %v2228 = vadd.f32 %v2226, %v2227
      %v2229 = vsel %vm1522, %v2121, 0.0
      %v2230 = vadd.f32 %v2228, %v2229
      %v2231 = vsel %vm1522, %v2123, 0.0
      %v2232 = vadd.f32 %v2230, %v2231
      %v2233 = vsel %vm1522, %v2126, 0.0
      %v2234 = vadd.f32 %v2232, %v2233
      %v2235 = vsel %vm1522, %v2128, 0.0
      %v2236 = vadd.f32 %v2234, %v2235
      %v2237 = vrot.slane %v2236, 4
      %v2238 = vadd.f32 %v2236, %v2237
      %v2239 = vrot.slane %v2238, 2
      %v2240 = vadd.f32 %v2238, %v2239
      %v2241 = vrot.slane %v2240, 1
      %v2242 = vadd.f32 %v2240, %v2241
      %v2243 = vmul.f32 %v1996, %v1996
      %v2244 = vmul.f32 %v1998, %v1998
      %v2245 = vmul.f32 %v2001, %v2001
      %v2246 = vmul.f32 %v2003, %v2003
      %v2247 = vmul.f32 %v2006, %v2006
      %v2248 = vmul.f32 %v2008, %v2008
      %v2249 = vmul.f32 %v2011, %v2011
      %v2250 = vmul.f32 %v2013, %v2013
      %v2251 = vmul.f32 %v2016, %v2016
      %v2252 = vmul.f32 %v2018, %v2018
      %v2253 = vmul.f32 %v2021, %v2021
      %v2254 = vmul.f32 %v2023, %v2023
      %v2255 = vmul.f32 %v2026, %v2026
      %v2256 = vmul.f32 %v2028, %v2028
      %v2257 = vmul.f32 %v2031, %v2031
      %v2258 = vmul.f32 %v2033, %v2033
      %v2259 = vmul.f32 %v2036, %v2036
      %v2260 = vmul.f32 %v2038, %v2038
      %v2261 = vmul.f32 %v2041, %v2041
      %v2262 = vmul.f32 %v2043, %v2043
      %v2263 = vmul.f32 %v2046, %v2046
      %v2264 = vmul.f32 %v2048, %v2048
      %v2265 = vmul.f32 %v2051, %v2051
      %v2266 = vmul.f32 %v2053, %v2053
      %v2267 = vmul.f32 %v2056, %v2056
      %v2268 = vmul.f32 %v2058, %v2058
      %v2269 = vmul.f32 %v2061, %v2061
      %v2270 = vmul.f32 %v2063, %v2063
      %v2271 = vmul.f32 %v2066, %v2066
      %v2272 = vmul.f32 %v2068, %v2068
      %v2273 = vmul.f32 %v2071, %v2071
      %v2274 = vmul.f32 %v2073, %v2073
      %v2275 = vmul.f32 %v2076, %v2076
      %v2276 = vmul.f32 %v2078, %v2078
      %v2277 = vmul.f32 %v2081, %v2081
      %v2278 = vmul.f32 %v2083, %v2083
      %v2279 = vmul.f32 %v2086, %v2086
      %v2280 = vmul.f32 %v2088, %v2088
      %v2281 = vmul.f32 %v2091, %v2091
      %v2282 = vmul.f32 %v2093, %v2093
      %v2283 = vmul.f32 %v2096, %v2096
      %v2284 = vmul.f32 %v2098, %v2098
      %v2285 = vmul.f32 %v2101, %v2101
      %v2286 = vmul.f32 %v2103, %v2103
      %v2287 = vmul.f32 %v2106, %v2106
      %v2288 = vmul.f32 %v2108, %v2108
      %v2289 = vmul.f32 %v2111, %v2111
      %v2290 = vmul.f32 %v2113, %v2113
      %v2291 = vmul.f32 %v2116, %v2116
      %v2292 = vmul.f32 %v2118, %v2118
      %v2293 = vmul.f32 %v2121, %v2121
      %v2294 = vmul.f32 %v2123, %v2123
      %v2295 = vmul.f32 %v2126, %v2126
      %v2296 = vmul.f32 %v2128, %v2128
      %v2297 = vsel %vm1522, %v2243, 0.0
      %v2298 = vsel %vm1522, %v2244, 0.0
      %v2299 = vadd.f32 %v2297, %v2298
      %v2300 = vsel %vm1522, %v2245, 0.0
      %v2301 = vadd.f32 %v2299, %v2300
      %v2302 = vsel %vm1522, %v2246, 0.0
      %v2303 = vadd.f32 %v2301, %v2302
      %v2304 = vsel %vm1522, %v2247, 0.0
      %v2305 = vadd.f32 %v2303, %v2304
      %v2306 = vsel %vm1522, %v2248, 0.0
      %v2307 = vadd.f32 %v2305, %v2306
      %v2308 = vsel %vm1522, %v2249, 0.0
      %v2309 = vadd.f32 %v2307, %v2308
      %v2310 = vsel %vm1522, %v2250, 0.0
      %v2311 = vadd.f32 %v2309, %v2310
      %v2312 = vsel %vm1522, %v2251, 0.0
      %v2313 = vadd.f32 %v2311, %v2312
      %v2314 = vsel %vm1522, %v2252, 0.0
      %v2315 = vadd.f32 %v2313, %v2314
      %v2316 = vsel %vm1522, %v2253, 0.0
      %v2317 = vadd.f32 %v2315, %v2316
      %v2318 = vsel %vm1522, %v2254, 0.0
      %v2319 = vadd.f32 %v2317, %v2318
      %v2320 = vsel %vm1522, %v2255, 0.0
      %v2321 = vadd.f32 %v2319, %v2320
      %v2322 = vsel %vm1522, %v2256, 0.0
      %v2323 = vadd.f32 %v2321, %v2322
      %v2324 = vsel %vm1522, %v2257, 0.0
      %v2325 = vadd.f32 %v2323, %v2324
      %v2326 = vsel %vm1522, %v2258, 0.0
      %v2327 = vadd.f32 %v2325, %v2326
      %v2328 = vsel %vm1522, %v2259, 0.0
      %v2329 = vadd.f32 %v2327, %v2328
      %v2330 = vsel %vm1522, %v2260, 0.0
      %v2331 = vadd.f32 %v2329, %v2330
      %v2332 = vsel %vm1522, %v2261, 0.0
      %v2333 = vadd.f32 %v2331, %v2332
      %v2334 = vsel %vm1522, %v2262, 0.0
      %v2335 = vadd.f32 %v2333, %v2334
      %v2336 = vsel %vm1522, %v2263, 0.0
      %v2337 = vadd.f32 %v2335, %v2336
      %v2338 = vsel %vm1522, %v2264, 0.0
      %v2339 = vadd.f32 %v2337, %v2338
      %v2340 = vsel %vm1522, %v2265, 0.0
      %v2341 = vadd.f32 %v2339, %v2340
      %v2342 = vsel %vm1522, %v2266, 0.0
      %v2343 = vadd.f32 %v2341, %v2342
      %v2344 = vsel %vm1522, %v2267, 0.0
      %v2345 = vadd.f32 %v2343, %v2344
      %v2346 = vsel %vm1522, %v2268, 0.0
      %v2347 = vadd.f32 %v2345, %v2346
      %v2348 = vsel %vm1522, %v2269, 0.0
      %v2349 = vadd.f32 %v2347, %v2348
      %v2350 = vsel %vm1522, %v2270, 0.0
      %v2351 = vadd.f32 %v2349, %v2350
      %v2352 = vsel %vm1522, %v2271, 0.0
      %v2353 = vadd.f32 %v2351, %v2352
      %v2354 = vsel %vm1522, %v2272, 0.0
      %v2355 = vadd.f32 %v2353, %v2354
      %v2356 = vsel %vm1522, %v2273, 0.0
      %v2357 = vadd.f32 %v2355, %v2356
      %v2358 = vsel %vm1522, %v2274, 0.0
      %v2359 = vadd.f32 %v2357, %v2358
      %v2360 = vsel %vm1522, %v2275, 0.0
      %v2361 = vadd.f32 %v2359, %v2360
      %v2362 = vsel %vm1522, %v2276, 0.0
      %v2363 = vadd.f32 %v2361, %v2362
      %v2364 = vsel %vm1522, %v2277, 0.0
      %v2365 = vadd.f32 %v2363, %v2364
      %v2366 = vsel %vm1522, %v2278, 0.0
      %v2367 = vadd.f32 %v2365, %v2366
      %v2368 = vsel %vm1522, %v2279, 0.0
      %v2369 = vadd.f32 %v2367, %v2368
      %v2370 = vsel %vm1522, %v2280, 0.0
      %v2371 = vadd.f32 %v2369, %v2370
      %v2372 = vsel %vm1522, %v2281, 0.0
      %v2373 = vadd.f32 %v2371, %v2372
      %v2374 = vsel %vm1522, %v2282, 0.0
      %v2375 = vadd.f32 %v2373, %v2374
      %v2376 = vsel %vm1522, %v2283, 0.0
      %v2377 = vadd.f32 %v2375, %v2376
      %v2378 = vsel %vm1522, %v2284, 0.0
      %v2379 = vadd.f32 %v2377, %v2378
      %v2380 = vsel %vm1522, %v2285, 0.0
      %v2381 = vadd.f32 %v2379, %v2380
      %v2382 = vsel %vm1522, %v2286, 0.0
      %v2383 = vadd.f32 %v2381, %v2382
      %v2384 = vsel %vm1522, %v2287, 0.0
      %v2385 = vadd.f32 %v2383, %v2384
      %v2386 = vsel %vm1522, %v2288, 0.0
      %v2387 = vadd.f32 %v2385, %v2386
      %v2388 = vsel %vm1522, %v2289, 0.0
      %v2389 = vadd.f32 %v2387, %v2388
      %v2390 = vsel %vm1522, %v2290, 0.0
      %v2391 = vadd.f32 %v2389, %v2390
      %v2392 = vsel %vm1522, %v2291, 0.0
      %v2393 = vadd.f32 %v2391, %v2392
      %v2394 = vsel %vm1522, %v2292, 0.0
      %v2395 = vadd.f32 %v2393, %v2394
      %v2396 = vsel %vm1522, %v2293, 0.0
      %v2397 = vadd.f32 %v2395, %v2396
      %v2398 = vsel %vm1522, %v2294, 0.0
      %v2399 = vadd.f32 %v2397, %v2398
      %v2400 = vsel %vm1522, %v2295, 0.0
      %v2401 = vadd.f32 %v2399, %v2400
      %v2402 = vsel %vm1522, %v2296, 0.0
      %v2403 = vadd.f32 %v2401, %v2402
      %v2404 = vrot.slane %v2403, 4
      %v2405 = vadd.f32 %v2403, %v2404
      %v2406 = vrot.slane %v2405, 2
      %v2407 = vadd.f32 %v2405, %v2406
      %v2408 = vrot.slane %v2407, 1
      %v2409 = vadd.f32 %v2407, %v2408
      %vm2410 = vcmask 1040384
      %v2411 = vsel %vm2410, %v2242, %v2409
      %vm2412 = vcmask 58368
      %2413 = vst.msk [vmem:[%s181] sm:$0x3] %vm2412, %v2411
      %v2414 = vpack.c.bf16 %v1996, %v1996
      %v2415 = vpack.c.bf16 %v1998, %v1998
      %v2416 = vpack.c.bf16 %v2001, %v2001
      %v2417 = vpack.c.bf16 %v2003, %v2003
      %v2418 = vpack.c.bf16 %v2006, %v2006
      %v2419 = vpack.c.bf16 %v2008, %v2008
      %v2420 = vpack.c.bf16 %v2011, %v2011
      %v2421 = vpack.c.bf16 %v2013, %v2013
      %v2422 = vpack.c.bf16 %v2016, %v2016
      %v2423 = vpack.c.bf16 %v2018, %v2018
      %v2424 = vpack.c.bf16 %v2021, %v2021
      %v2425 = vpack.c.bf16 %v2023, %v2023
      %v2426 = vpack.c.bf16 %v2026, %v2026
      %v2427 = vpack.c.bf16 %v2028, %v2028
      %v2428 = vpack.c.bf16 %v2031, %v2031
      %v2429 = vpack.c.bf16 %v2033, %v2033
      %v2430 = vpack.c.bf16 %v2036, %v2036
      %v2431 = vpack.c.bf16 %v2038, %v2038
      %v2432 = vpack.c.bf16 %v2041, %v2041
      %v2433 = vpack.c.bf16 %v2043, %v2043
      %v2434 = vpack.c.bf16 %v2046, %v2046
      %v2435 = vpack.c.bf16 %v2048, %v2048
      %v2436 = vpack.c.bf16 %v2051, %v2051
      %v2437 = vpack.c.bf16 %v2053, %v2053
      %v2438 = vpack.c.bf16 %v2056, %v2056
      %v2439 = vpack.c.bf16 %v2058, %v2058
      %v2440 = vpack.c.bf16 %v2061, %v2061
      %v2441 = vpack.c.bf16 %v2063, %v2063
      %v2442 = vpack.c.bf16 %v2066, %v2066
      %v2443 = vpack.c.bf16 %v2068, %v2068
      %v2444 = vpack.c.bf16 %v2071, %v2071
      %v2445 = vpack.c.bf16 %v2073, %v2073
      %v2446 = vpack.c.bf16 %v2076, %v2076
      %v2447 = vpack.c.bf16 %v2078, %v2078
      %v2448 = vpack.c.bf16 %v2081, %v2081
      %v2449 = vpack.c.bf16 %v2083, %v2083
      %v2450 = vpack.c.bf16 %v2086, %v2086
      %v2451 = vpack.c.bf16 %v2088, %v2088
      %v2452 = vpack.c.bf16 %v2091, %v2091
      %v2453 = vpack.c.bf16 %v2093, %v2093
      %v2454 = vpack.c.bf16 %v2096, %v2096
      %v2455 = vpack.c.bf16 %v2098, %v2098
      %v2456 = vpack.c.bf16 %v2101, %v2101
      %v2457 = vpack.c.bf16 %v2103, %v2103
      %v2458 = vpack.c.bf16 %v2106, %v2106
      %v2459 = vpack.c.bf16 %v2108, %v2108
      %v2460 = vpack.c.bf16 %v2111, %v2111
      %v2461 = vpack.c.bf16 %v2113, %v2113
      %v2462 = vpack.c.bf16 %v2116, %v2116
      %v2463 = vpack.c.bf16 %v2118, %v2118
      %v2464 = vpack.c.bf16 %v2121, %v2121
      %v2465 = vpack.c.bf16 %v2123, %v2123
      %v2466 = vpack.c.bf16 %v2126, %v2126
      %v2467 = vpack.c.bf16 %v2128, %v2128
      %vm2468 = vcmask 60416
      %2469 = vst.msk [vmem:[%s177] sm:$0xf] %vm2468, %v2414
      %2470 = vst.msk [vmem:[%s177 + $0x4] sm:$0xf] %vm2468, %v2415
      %2471 = vst.msk [vmem:[%s177 + $0x8] sm:$0xf] %vm2468, %v2416
      %2472 = vst.msk [vmem:[%s177 + $0xc] sm:$0xf] %vm2468, %v2417
      %2473 = vst.msk [vmem:[%s177 + $0x10] sm:$0xf] %vm2468, %v2418
      %2474 = vst.msk [vmem:[%s177 + $0x14] sm:$0xf] %vm2468, %v2419
      %2475 = vst.msk [vmem:[%s177 + $0x18] sm:$0xf] %vm2468, %v2420
      %2476 = vst.msk [vmem:[%s177 + $0x1c] sm:$0xf] %vm2468, %v2421
      %2477 = vst.msk [vmem:[%s177 + $0x20] sm:$0xf] %vm2468, %v2422
      %2478 = vst.msk [vmem:[%s177 + $0x24] sm:$0xf] %vm2468, %v2423
      %2479 = vst.msk [vmem:[%s177 + $0x28] sm:$0xf] %vm2468, %v2424
      %2480 = vst.msk [vmem:[%s177 + $0x2c] sm:$0xf] %vm2468, %v2425
      %2481 = vst.msk [vmem:[%s177 + $0x30] sm:$0xf] %vm2468, %v2426
      %2482 = vst.msk [vmem:[%s177 + $0x34] sm:$0xf] %vm2468, %v2427
      %2483 = vst.msk [vmem:[%s177 + $0x38] sm:$0xf] %vm2468, %v2428
      %2484 = vst.msk [vmem:[%s177 + $0x3c] sm:$0xf] %vm2468, %v2429
      %2485 = vst.msk [vmem:[%s177 + $0x40] sm:$0xf] %vm2468, %v2430
      %2486 = vst.msk [vmem:[%s177 + $0x44] sm:$0xf] %vm2468, %v2431
      %2487 = vst.msk [vmem:[%s177 + $0x48] sm:$0xf] %vm2468, %v2432
      %2488 = vst.msk [vmem:[%s177 + $0x4c] sm:$0xf] %vm2468, %v2433
      %2489 = vst.msk [vmem:[%s177 + $0x50] sm:$0xf] %vm2468, %v2434
      %2490 = vst.msk [vmem:[%s177 + $0x54] sm:$0xf] %vm2468, %v2435
      %2491 = vst.msk [vmem:[%s177 + $0x58] sm:$0xf] %vm2468, %v2436
      %2492 = vst.msk [vmem:[%s177 + $0x5c] sm:$0xf] %vm2468, %v2437
      %2493 = vst.msk [vmem:[%s177 + $0x60] sm:$0xf] %vm2468, %v2438
      %2494 = vst.msk [vmem:[%s177 + $0x64] sm:$0xf] %vm2468, %v2439
      %2495 = vst.msk [vmem:[%s177 + $0x68] sm:$0xf] %vm2468, %v2440
      %2496 = vst.msk [vmem:[%s177 + $0x6c] sm:$0xf] %vm2468, %v2441
      %2497 = vst.msk [vmem:[%s177 + $0x70] sm:$0xf] %vm2468, %v2442
      %2498 = vst.msk [vmem:[%s177 + $0x74] sm:$0xf] %vm2468, %v2443
      %2499 = vst.msk [vmem:[%s177 + $0x78] sm:$0xf] %vm2468, %v2444
      %2500 = vst.msk [vmem:[%s177 + $0x7c] sm:$0xf] %vm2468, %v2445
      %2501 = vst.msk [vmem:[%s177 + $0x80] sm:$0xf] %vm2468, %v2446
      %2502 = vst.msk [vmem:[%s177 + $0x84] sm:$0xf] %vm2468, %v2447
      %2503 = vst.msk [vmem:[%s177 + $0x88] sm:$0xf] %vm2468, %v2448
      %2504 = vst.msk [vmem:[%s177 + $0x8c] sm:$0xf] %vm2468, %v2449
      %2505 = vst.msk [vmem:[%s177 + $0x90] sm:$0xf] %vm2468, %v2450
      %2506 = vst.msk [vmem:[%s177 + $0x94] sm:$0xf] %vm2468, %v2451
      %2507 = vst.msk [vmem:[%s177 + $0x98] sm:$0xf] %vm2468, %v2452
      %2508 = vst.msk [vmem:[%s177 + $0x9c] sm:$0xf] %vm2468, %v2453
      %2509 = vst.msk [vmem:[%s177 + $0xa0] sm:$0xf] %vm2468, %v2454
      %2510 = vst.msk [vmem:[%s177 + $0xa4] sm:$0xf] %vm2468, %v2455
      %2511 = vst.msk [vmem:[%s177 + $0xa8] sm:$0xf] %vm2468, %v2456
      %2512 = vst.msk [vmem:[%s177 + $0xac] sm:$0xf] %vm2468, %v2457
      %2513 = vst.msk [vmem:[%s177 + $0xb0] sm:$0xf] %vm2468, %v2458
      %2514 = vst.msk [vmem:[%s177 + $0xb4] sm:$0xf] %vm2468, %v2459
      %2515 = vst.msk [vmem:[%s177 + $0xb8] sm:$0xf] %vm2468, %v2460
      %2516 = vst.msk [vmem:[%s177 + $0xbc] sm:$0xf] %vm2468, %v2461
      %2517 = vst.msk [vmem:[%s177 + $0xc0] sm:$0xf] %vm2468, %v2462
      %2518 = vst.msk [vmem:[%s177 + $0xc4] sm:$0xf] %vm2468, %v2463
      %2519 = vst.msk [vmem:[%s177 + $0xc8] sm:$0xf] %vm2468, %v2464
      %2520 = vst.msk [vmem:[%s177 + $0xcc] sm:$0xf] %vm2468, %v2465
      %2521 = vst.msk [vmem:[%s177 + $0xd0] sm:$0xf] %vm2468, %v2466
      %2522 = vst.msk [vmem:[%s177 + $0xd4] sm:$0xf] %vm2468, %v2467
      %p2523 = scmp.lt.s32.totalorder %s15, 1
      %s2524 = scalar_select %p2523, %s15, 1
      %s2525 = smul.addr %s2524, 54
      %s2526 = smul.addr %s2525, 4
      %s2527 = scalar_lea.vmem %s2, %s2526
      %p2528 = scmp.lt.s32.totalorder %s15, 1
      %s2529 = scalar_select %p2528, %s15, 1
      %s2530 = smul.addr %s2529, 2
      %s2531 = scalar_lea.vmem %s3, %s2530
      // Predicated region
      $region29: #{tconv_layer_forward.4} parent=27 // pred_check
        %p2532 = pneg %p80
      $region30: #{tconv_layer_forward.4} parent=27 // pred_check_branch
        %2534 = sbr.rel (%p2532) target = $region32
      $region31: #{tconv_layer_forward.4} parent=27 // pred_region
        _
      $region32: #{tconv_layer_forward.4} parent=27 // pred_fallthru
        _
      // Predicated region
      $region33: #{tconv_layer_forward.4} parent=27 // pred_check
        %p2535 = pneg %p106
      $region34: #{tconv_layer_forward.4} parent=27 // pred_check_branch
        %2537 = sbr.rel (%p2535) target = $region36
      $region35: #{tconv_layer_forward.4} parent=27 // pred_region
        _
      $region36: #{tconv_layer_forward.4} parent=27 // pred_fallthru
        _
    $region28: #{tconv_layer_forward.4} parent=5 // pred_fallthru
      _
    %p2538 = scmp.le.s32.totalorder 2, %s10
    // Predicated region
    $region37: #{tconv_layer_forward.4} parent=5 // pred_check
      %p2539 = pneg %p2538
    $region38: #{tconv_layer_forward.4} parent=5 // pred_check_branch
      %2541 = sbr.rel (%p2539) target = $region40
    $region39: #{tconv_layer_forward.4} parent=5 // pred_region
      %s2542 = ssub.s32 %s10, 2
      // Predicated region
      $region41: #{tconv_layer_forward.4} parent=39 // pred_check
        %p2543 = pneg %p86
      $region42: #{tconv_layer_forward.4} parent=39 // pred_check_branch
        %2545 = sbr.rel (%p2543) target = $region44
      $region43: #{tconv_layer_forward.4} parent=39 // pred_region
        %p2546 = scmp.lt.s32.totalorder %s16, 1
        %s2547 = scalar_select %p2546, %s16, 1
        %s2548 = smul.addr %s2547, 54
        %s2549 = smul.addr %s2548, 4
        %s2550 = scalar_lea.vmem %s2, %s2549
      $region44: #{tconv_layer_forward.4} parent=39 // pred_fallthru
        _
      // Predicated region
      $region45: #{tconv_layer_forward.4} parent=39 // pred_check
        %p2551 = pneg %p112
      $region46: #{tconv_layer_forward.4} parent=39 // pred_check_branch
        %2553 = sbr.rel (%p2551) target = $region48
      $region47: #{tconv_layer_forward.4} parent=39 // pred_region
        %p2554 = scmp.lt.s32.totalorder %s16, 1
        %s2555 = scalar_select %p2554, %s16, 1
        %s2556 = smul.addr %s2555, 2
        %s2557 = scalar_lea.vmem %s3, %s2556
      $region48: #{tconv_layer_forward.4} parent=39 // pred_fallthru
        _
    $region40: #{tconv_layer_forward.4} parent=5 // pred_fallthru
      _
  $region6: #{tconv_layer_forward.4} parent=0 // loop_footer
    %s14 = sadd.s32 1, %s10
  $region7: #{tconv_layer_forward.4} parent=0 // loop_footer_branch
    %9 = sbr.rel target = $region3
  $region8: #{tconv_layer_forward.4} parent=0 // loop_exit
    _

// kernel: tconv_layer_forward.6
$region0: #{tconv_layer_forward.6}
  #allocation0 [shape = 'u32[]', space=smem, size = 0x4, offset = 0x4, fixed_abs, tag = 'smem constant byte address 0x4 - core index']
  #allocation1 [shape = 'u32[72,128]{1,0:T(1,128)}', space=vmem, size = 0x9000, scoped, tag = 'internal scratch']
  %s0 = inlined_call_operand.vmem [shape: bf16[2,530,8], index: 0, kind: input, shape index: {}]
  %s1 = inlined_call_operand.vmem [shape: bf16[72,8], index: 1, kind: input, shape index: {}]
  %s2 = inlined_call_operand.vmem [shape: bf16[2,480,8], index: 2, kind: output, shape index: {0}]
  %s3 = inlined_call_operand.vmem [shape: f32[2,2,8], index: 3, kind: output, shape index: {1}]
  %4 = xla_tuple %s2, %s3
  %s5 = sld [smem:[#allocation0]]
  $region49: #{tconv_layer_forward.6} parent=0
    _
  %s7 = ssub.s32 1, %s5
  %s8 = scalar_select 0, %s7, %s5
  loop: start=0, step=1, limit=4
  $region2: #{tconv_layer_forward.6} parent=0 // loop_pre_header
    _
  $region3: #{tconv_layer_forward.6} parent=0 // loop_header
    %s10 = sphi 0, %s14
    %p11 = scmp.ge.s32.totalorder %s10, 4
    %s20 = sphi 0, %s22
    %s23 = sphi 0, %s20
    %s24 = sphi 0, %s23
    %s40 = sphi 0, %s24
    %s44 = sphi 0, %s44
    %s46 = sphi 0, %s44
    %s47 = sphi 0, %s46
    %s61 = sphi 0, %s47
    %s67 = sphi 0, %s69
    %s70 = sphi 0, %s67
    %s71 = sphi 0, %s70
    %s87 = sphi 0, %s71
    %s93 = sphi 0, %s95
    %s96 = sphi 0, %s93
    %s97 = sphi 0, %s96
    %s113 = sphi 0, %s97
  $region4: #{tconv_layer_forward.6} parent=0 // loop_header_branch
    %13 = sbr.rel (%p11) target = $region8
  $region5: #{tconv_layer_forward.6} parent=0 // loop_body
    %s15 = ssub.s32 %s10, 1
    %s16 = ssub.s32 %s10, 2
    %s17 = sadd.s32 %s10, 1
    %s18 = ssub.s32 %s10, %s17
    %p19 = scmp.eq.s32.totalorder %s18, 0
    %s21 = sadd.s32 %s20, 1
    %s22 = scalar_select %p19, %s20, %s21
    %p25 = pneg %p19
    %p26 = scmp.eq.s32.totalorder %s10, 1
    %p27 = por %p25, %p26
    %p28 = scmp.ne.s32.totalorder %s20, %s23
    %p29 = scmp.eq.s32.totalorder %s10, 0
    %p30 = por %p28, %p29
    %p31 = scmp.ne.s32.totalorder %s20, %s23
    %p32 = scmp.eq.s32.totalorder %s15, 1
    %p33 = por %p31, %p32
    %p34 = scmp.ne.s32.totalorder %s23, %s24
    %p35 = scmp.eq.s32.totalorder %s15, 0
    %p36 = por %p34, %p35
    %p37 = scmp.ne.s32.totalorder %s23, %s24
    %p38 = scmp.eq.s32.totalorder %s16, 1
    %p39 = por %p37, %p38
    %p41 = scmp.ne.s32.totalorder %s24, %s40
    %p42 = scmp.eq.s32.totalorder %s16, 0
    %p43 = por %p41, %p42
    %s45 = sadd.s32 %s44, 1
    %p48 = scmp.eq.s32.totalorder %s10, 1
    %p49 = scmp.ne.s32.totalorder %s44, %s46
    %p50 = scmp.eq.s32.totalorder %s10, 0
    %p51 = por %p49, %p50
    %p52 = scmp.ne.s32.totalorder %s44, %s46
    %p53 = scmp.eq.s32.totalorder %s15, 1
    %p54 = por %p52, %p53
    %p55 = scmp.ne.s32.totalorder %s46, %s47
    %p56 = scmp.eq.s32.totalorder %s15, 0
    %p57 = por %p55, %p56
    %p58 = scmp.ne.s32.totalorder %s46, %s47
    %p59 = scmp.eq.s32.totalorder %s16, 1
    %p60 = por %p58, %p59
    %p62 = scmp.ne.s32.totalorder %s47, %s61
    %p63 = scmp.eq.s32.totalorder %s16, 0
    %p64 = por %p62, %p63
    %s65 = ssub.s32 %s10, %s17
    %p66 = scmp.eq.s32.totalorder %s65, 0
    %s68 = sadd.s32 %s67, 1
    %s69 = scalar_select %p66, %s67, %s68
    %p72 = pneg %p66
    %p73 = scmp.eq.s32.totalorder %s10, 1
    %p74 = por %p72, %p73
    %p75 = scmp.ne.s32.totalorder %s67, %s70
    %p76 = scmp.eq.s32.totalorder %s10, 0
    %p77 = por %p75, %p76
    %p78 = scmp.ne.s32.totalorder %s67, %s70
    %p79 = scmp.eq.s32.totalorder %s15, 1
    %p80 = por %p78, %p79
    %p81 = scmp.ne.s32.totalorder %s70, %s71
    %p82 = scmp.eq.s32.totalorder %s15, 0
    %p83 = por %p81, %p82
    %p84 = scmp.ne.s32.totalorder %s70, %s71
    %p85 = scmp.eq.s32.totalorder %s16, 1
    %p86 = por %p84, %p85
    %p88 = scmp.ne.s32.totalorder %s71, %s87
    %p89 = scmp.eq.s32.totalorder %s16, 0
    %p90 = por %p88, %p89
    %s91 = ssub.s32 %s10, %s17
    %p92 = scmp.eq.s32.totalorder %s91, 0
    %s94 = sadd.s32 %s93, 1
    %s95 = scalar_select %p92, %s93, %s94
    %p98 = pneg %p92
    %p99 = scmp.eq.s32.totalorder %s10, 1
    %p100 = por %p98, %p99
    %p101 = scmp.ne.s32.totalorder %s93, %s96
    %p102 = scmp.eq.s32.totalorder %s10, 0
    %p103 = por %p101, %p102
    %p104 = scmp.ne.s32.totalorder %s93, %s96
    %p105 = scmp.eq.s32.totalorder %s15, 1
    %p106 = por %p104, %p105
    %p107 = scmp.ne.s32.totalorder %s96, %s97
    %p108 = scmp.eq.s32.totalorder %s15, 0
    %p109 = por %p107, %p108
    %p110 = scmp.ne.s32.totalorder %s96, %s97
    %p111 = scmp.eq.s32.totalorder %s16, 1
    %p112 = por %p110, %p111
    %p114 = scmp.ne.s32.totalorder %s97, %s113
    %p115 = scmp.eq.s32.totalorder %s16, 0
    %p116 = por %p114, %p115
    %p117 = scmp.le.s32.totalorder 1, %s10
    %p118 = scmp.lt.s32.totalorder %s10, 3
    %p119 = pnand %p117, %p118
    %p120 = pneg %p119
    // Predicated region
    $region9: #{tconv_layer_forward.6} parent=5 // pred_check
      _
    $region10: #{tconv_layer_forward.6} parent=5 // pred_check_branch
      %122 = sbr.rel (%p119) target = $region12
    $region11: #{tconv_layer_forward.6} parent=5 // pred_region
      %s123 = ssub.s32 %s10, 1
      // Predicated region
      $region13: #{tconv_layer_forward.6} parent=11 // pred_check
        %p124 = pneg %p57
      $region14: #{tconv_layer_forward.6} parent=11 // pred_check_branch
        %126 = sbr.rel (%p124) target = $region16
      $region15: #{tconv_layer_forward.6} parent=11 // pred_region
        _
      $region16: #{tconv_layer_forward.6} parent=11 // pred_fallthru
        _
    $region12: #{tconv_layer_forward.6} parent=5 // pred_fallthru
      _
    %p127 = scmp.lt.s32.totalorder %s10, 2
    // Predicated region
    $region17: #{tconv_layer_forward.6} parent=5 // pred_check
      %p128 = pneg %p127
    $region18: #{tconv_layer_forward.6} parent=5 // pred_check_branch
      %130 = sbr.rel (%p128) target = $region20
    $region19: #{tconv_layer_forward.6} parent=5 // pred_region
      // Predicated region
      $region21: #{tconv_layer_forward.6} parent=19 // pred_check
        %p131 = pneg %p30
      $region22: #{tconv_layer_forward.6} parent=19 // pred_check_branch
        %133 = sbr.rel (%p131) target = $region24
      $region23: #{tconv_layer_forward.6} parent=19 // pred_region
        %p134 = scmp.lt.s32.totalorder %s10, 1
        %s135 = scalar_select %p134, %s10, 1
        %s136 = smul.addr %s135, 67
        %s137 = smul.addr %s136, 4
        %s138 = scalar_lea.vmem %s0, %s137
      $region24: #{tconv_layer_forward.6} parent=19 // pred_fallthru
        _
    $region20: #{tconv_layer_forward.6} parent=5 // pred_fallthru
      _
    %p139 = scmp.le.s32.totalorder 1, %s10
    %p140 = scmp.lt.s32.totalorder %s10, 3
    %p141 = pnand %p139, %p140
    %p142 = pneg %p141
    // Predicated region
    $region25: #{tconv_layer_forward.6} parent=5 // pred_check
      _
    $region26: #{tconv_layer_forward.6} parent=5 // pred_check_branch
      %144 = sbr.rel (%p141) target = $region28
    $region27: #{tconv_layer_forward.6} parent=5 // pred_region
      %s145 = ssub.s32 %s10, 1
      %p146 = scmp.lt.s32.totalorder %s15, 1
      %s147 = scalar_select %p146, %s15, 1
      %s148 = smul.addr %s147, 67
      %s149 = smul.addr %s148, 4
      %s150 = scalar_lea.vmem %s0, %s149
      %p151 = pneg %p36
      %p152 = pneg %p33
      %p153 = pneg %p57
      %p154 = pneg %p54
      %p155 = pneg %p83
      %p156 = pneg %p80
      %p157 = scmp.lt.s32.totalorder %s15, 1
      %s158 = scalar_select %p157, %s15, 1
      %s159 = smul.addr %s158, 60
      %s160 = smul.addr %s159, 4
      %s161 = scalar_lea.vmem %s2, %s160
      %p162 = pneg %p109
      %p163 = pneg %p106
      %p164 = scmp.lt.s32.totalorder %s15, 1
      %s165 = scalar_select %p164, %s15, 1
      %s166 = smul.addr %s165, 2
      %s167 = scalar_lea.vmem %s3, %s166
      %p168 = scmp.lt.s32.totalorder %s15, 1
      %s169 = scalar_select %p168, %s15, 1
      %s170 = smul.addr %s169, 67
      %s171 = smul.addr %s170, 4
      %s172 = scalar_lea.vmem %s0, %s171
      %p173 = scmp.lt.s32.totalorder %s15, 1
      %s174 = scalar_select %p173, %s15, 1
      %s175 = smul.addr %s174, 60
      %s176 = smul.addr %s175, 4
      %s177 = scalar_lea.vmem %s2, %s176
      %p178 = scmp.lt.s32.totalorder %s15, 1
      %s179 = scalar_select %p178, %s15, 1
      %s180 = smul.addr %s179, 2
      %s181 = scalar_lea.vmem %s3, %s180
      %v183 = vld [vmem:[%s172] sm:$0xf]
      %v184 = vld [vmem:[%s172 + $0x4] sm:$0xf]
      %v185 = vld [vmem:[%s172 + $0x8] sm:$0xf]
      %v186 = vld [vmem:[%s172 + $0xc] sm:$0xf]
      %v187 = vld [vmem:[%s172 + $0x10] sm:$0xf]
      %v188 = vld [vmem:[%s172 + $0x14] sm:$0xf]
      %v189 = vld [vmem:[%s172 + $0x18] sm:$0xf]
      %v190 = vld [vmem:[%s172 + $0x1c] sm:$0xf]
      %v191 = vld [vmem:[%s172 + $0x20] sm:$0xf]
      %v192 = vld [vmem:[%s172 + $0x24] sm:$0xf]
      %v193 = vld [vmem:[%s172 + $0x28] sm:$0xf]
      %v194 = vld [vmem:[%s172 + $0x2c] sm:$0xf]
      %v195 = vld [vmem:[%s172 + $0x30] sm:$0xf]
      %v196 = vld [vmem:[%s172 + $0x34] sm:$0xf]
      %v197 = vld [vmem:[%s172 + $0x38] sm:$0xf]
      %v198 = vld [vmem:[%s172 + $0x3c] sm:$0xf]
      %v199 = vld [vmem:[%s172 + $0x40] sm:$0xf]
      %v200 = vld [vmem:[%s172 + $0x44] sm:$0xf]
      %v201 = vld [vmem:[%s172 + $0x48] sm:$0xf]
      %v202 = vld [vmem:[%s172 + $0x4c] sm:$0xf]
      %v203 = vld [vmem:[%s172 + $0x50] sm:$0xf]
      %v204 = vld [vmem:[%s172 + $0x54] sm:$0xf]
      %v205 = vld [vmem:[%s172 + $0x58] sm:$0xf]
      %v206 = vld [vmem:[%s172 + $0x5c] sm:$0xf]
      %v207 = vld [vmem:[%s172 + $0x60] sm:$0xf]
      %v208 = vld [vmem:[%s172 + $0x64] sm:$0xf]
      %v209 = vld [vmem:[%s172 + $0x68] sm:$0xf]
      %v210 = vld [vmem:[%s172 + $0x6c] sm:$0xf]
      %v211 = vld [vmem:[%s172 + $0x70] sm:$0xf]
      %v212 = vld [vmem:[%s172 + $0x74] sm:$0xf]
      %v213 = vld [vmem:[%s172 + $0x78] sm:$0xf]
      %v214 = vld [vmem:[%s172 + $0x7c] sm:$0xf]
      %v215 = vld [vmem:[%s172 + $0x80] sm:$0xf]
      %v216 = vld [vmem:[%s172 + $0x84] sm:$0xf]
      %v217 = vld [vmem:[%s172 + $0x88] sm:$0xf]
      %v218 = vld [vmem:[%s172 + $0x8c] sm:$0xf]
      %v219 = vld [vmem:[%s172 + $0x90] sm:$0xf]
      %v220 = vld [vmem:[%s172 + $0x94] sm:$0xf]
      %v221 = vld [vmem:[%s172 + $0x98] sm:$0xf]
      %v222 = vld [vmem:[%s172 + $0x9c] sm:$0xf]
      %v223 = vld [vmem:[%s172 + $0xa0] sm:$0xf]
      %v224 = vld [vmem:[%s172 + $0xa4] sm:$0xf]
      %v225 = vld [vmem:[%s172 + $0xa8] sm:$0xf]
      %v226 = vld [vmem:[%s172 + $0xac] sm:$0xf]
      %v227 = vld [vmem:[%s172 + $0xb0] sm:$0xf]
      %v228 = vld [vmem:[%s172 + $0xb4] sm:$0xf]
      %v229 = vld [vmem:[%s172 + $0xb8] sm:$0xf]
      %v230 = vld [vmem:[%s172 + $0xbc] sm:$0xf]
      %v231 = vld [vmem:[%s172 + $0xc0] sm:$0xf]
      %v232 = vld [vmem:[%s172 + $0xc4] sm:$0xf]
      %v233 = vld [vmem:[%s172 + $0xc8] sm:$0xf]
      %v234 = vld [vmem:[%s172 + $0xcc] sm:$0xf]
      %v235 = vld [vmem:[%s172 + $0xd0] sm:$0xf]
      %v236 = vld [vmem:[%s172 + $0xd4] sm:$0xf]
      %v237 = vld [vmem:[%s172 + $0xd8] sm:$0xf]
      %v238 = vld [vmem:[%s172 + $0xdc] sm:$0xf]
      %v239 = vld [vmem:[%s172 + $0xe0] sm:$0xf]
      %v240 = vld [vmem:[%s172 + $0xe4] sm:$0xf]
      %v241 = vld [vmem:[%s172 + $0xe8] sm:$0xf]
      %v242 = vld [vmem:[%s172 + $0xec] sm:$0xf]
      %v243 = vld [vmem:[%s172 + $0xf0] sm:$0x1]
      %v244 = vld [vmem:[%s172] sm:$0xe]
      %v245 = vld [vmem:[%s172 + $0xf0] sm:$0xf]
      %v246 = vld [vmem:[%s172 + $0xf4] sm:$0xf]
      %v247 = vld [vmem:[%s172 + $0xf8] sm:$0xf]
      %v248 = vld [vmem:[%s172 + $0xfc] sm:$0x1]
      %v249 = vld [vmem:[%s172 + $0xc] sm:$0xe]
      %v250 = vld [vmem:[%s172 + $0xfc] sm:$0xf]
      %v251 = vld [vmem:[%s172 + $0x100] sm:$0xf]
      %v252 = vld [vmem:[%s172 + $0x104] sm:$0xf]
      %v253 = vld [vmem:[%s172 + $0x108] sm:$0x1]
      %v254 = vld [vmem:[%s172 + $0x18] sm:$0xe]
      %v315 = vunpack.c.l.b16 %v183
      %v316 = vunpack.c.l.b16 %v184
      %v317 = vunpack.c.l.b16 %v185
      %v318 = vunpack.c.l.b16 %v186
      %v319 = vunpack.c.l.b16 %v187
      %v320 = vunpack.c.l.b16 %v188
      %v321 = vunpack.c.l.b16 %v189
      %v322 = vunpack.c.l.b16 %v190
      %v323 = vunpack.c.l.b16 %v191
      %v324 = vunpack.c.l.b16 %v192
      %v325 = vunpack.c.l.b16 %v193
      %v326 = vunpack.c.l.b16 %v194
      %v327 = vunpack.c.l.b16 %v195
      %v328 = vunpack.c.l.b16 %v196
      %v329 = vunpack.c.l.b16 %v197
      %v330 = vunpack.c.l.b16 %v198
      %v331 = vunpack.c.l.b16 %v199
      %v332 = vunpack.c.l.b16 %v200
      %v333 = vunpack.c.l.b16 %v201
      %v334 = vunpack.c.l.b16 %v202
      %v335 = vunpack.c.l.b16 %v203
      %v336 = vunpack.c.l.b16 %v204
      %v337 = vunpack.c.l.b16 %v205
      %v338 = vunpack.c.l.b16 %v206
      %v339 = vunpack.c.l.b16 %v207
      %v340 = vunpack.c.l.b16 %v208
      %v341 = vunpack.c.l.b16 %v209
      %v342 = vunpack.c.l.b16 %v210
      %v343 = vunpack.c.l.b16 %v211
      %v344 = vunpack.c.l.b16 %v212
      %v345 = vunpack.c.l.b16 %v213
      %v346 = vunpack.c.l.b16 %v214
      %v347 = vunpack.c.l.b16 %v215
      %v348 = vunpack.c.l.b16 %v216
      %v349 = vunpack.c.l.b16 %v217
      %v350 = vunpack.c.l.b16 %v218
      %v351 = vunpack.c.l.b16 %v219
      %v352 = vunpack.c.l.b16 %v220
      %v353 = vunpack.c.l.b16 %v221
      %v354 = vunpack.c.l.b16 %v222
      %v355 = vunpack.c.l.b16 %v223
      %v356 = vunpack.c.l.b16 %v224
      %v357 = vunpack.c.l.b16 %v225
      %v358 = vunpack.c.l.b16 %v226
      %v359 = vunpack.c.l.b16 %v227
      %v360 = vunpack.c.l.b16 %v228
      %v361 = vunpack.c.l.b16 %v229
      %v362 = vunpack.c.l.b16 %v230
      %v363 = vunpack.c.l.b16 %v231
      %v364 = vunpack.c.l.b16 %v232
      %v365 = vunpack.c.l.b16 %v233
      %v366 = vunpack.c.l.b16 %v234
      %v367 = vunpack.c.l.b16 %v235
      %v368 = vunpack.c.l.b16 %v236
      %v369 = vunpack.c.l.b16 %v237
      %v370 = vunpack.c.l.b16 %v238
      %v371 = vunpack.c.l.b16 %v239
      %v372 = vunpack.c.l.b16 %v240
      %v373 = vunpack.c.l.b16 %v241
      %v374 = vunpack.c.l.b16 %v242
      %v375 = vpack.c.b16 %v316, %v315
      %v376 = vpack.c.b16 %v318, %v317
      %v377 = vpack.c.b16 %v320, %v319
      %v378 = vpack.c.b16 %v322, %v321
      %v379 = vpack.c.b16 %v324, %v323
      %v380 = vpack.c.b16 %v326, %v325
      %v381 = vpack.c.b16 %v328, %v327
      %v382 = vpack.c.b16 %v330, %v329
      %v383 = vpack.c.b16 %v332, %v331
      %v384 = vpack.c.b16 %v334, %v333
      %v385 = vpack.c.b16 %v336, %v335
      %v386 = vpack.c.b16 %v338, %v337
      %v387 = vpack.c.b16 %v340, %v339
      %v388 = vpack.c.b16 %v342, %v341
      %v389 = vpack.c.b16 %v344, %v343
      %v390 = vpack.c.b16 %v346, %v345
      %v391 = vpack.c.b16 %v348, %v347
      %v392 = vpack.c.b16 %v350, %v349
      %v393 = vpack.c.b16 %v352, %v351
      %v394 = vpack.c.b16 %v354, %v353
      %v395 = vpack.c.b16 %v356, %v355
      %v396 = vpack.c.b16 %v358, %v357
      %v397 = vpack.c.b16 %v360, %v359
      %v398 = vpack.c.b16 %v362, %v361
      %v399 = vpack.c.b16 %v364, %v363
      %v400 = vpack.c.b16 %v366, %v365
      %v401 = vpack.c.b16 %v368, %v367
      %v402 = vpack.c.b16 %v370, %v369
      %v403 = vpack.c.b16 %v372, %v371
      %v404 = vpack.c.b16 %v374, %v373
      %v406 = vunpack.c.l.b16 %v243
      %v407 = vpack.c.b16 %v406, %v406
      %vm408 = vsmask.f32 7424
      %v410 = vshrl.u32 %v375, 16
      %v412 = vshll.u32 %v375, 16
      %v414 = vrot.slane %v412, 1
      %v415 = vor.u32 %v410, %v414
      %v417 = vshll.u32 %v376, 16
      %v419 = vrot.slane %v417, 1
      %v420 = vsel %vm408, %v415, %v419
      %v421 = vshrl.u32 %v376, 16
      %v423 = vor.u32 %v421, %v419
      %v425 = vshll.u32 %v377, 16
      %v427 = vrot.slane %v425, 1
      %v428 = vsel %vm408, %v423, %v427
      %v429 = vshrl.u32 %v377, 16
      %v431 = vor.u32 %v429, %v427
      %v433 = vshll.u32 %v378, 16
      %v435 = vrot.slane %v433, 1
      %v436 = vsel %vm408, %v431, %v435
      %v437 = vshrl.u32 %v378, 16
      %v439 = vor.u32 %v437, %v435
      %v441 = vshll.u32 %v379, 16
      %v443 = vrot.slane %v441, 1
      %v444 = vsel %vm408, %v439, %v443
      %v445 = vshrl.u32 %v379, 16
      %v447 = vor.u32 %v445, %v443
      %v449 = vshll.u32 %v380, 16
      %v451 = vrot.slane %v449, 1
      %v452 = vsel %vm408, %v447, %v451
      %v453 = vshrl.u32 %v380, 16
      %v455 = vor.u32 %v453, %v451
      %v457 = vshll.u32 %v381, 16
      %v459 = vrot.slane %v457, 1
      %v460 = vsel %vm408, %v455, %v459
      %v461 = vshrl.u32 %v381, 16
      %v463 = vor.u32 %v461, %v459
      %v465 = vshll.u32 %v382, 16
      %v467 = vrot.slane %v465, 1
      %v468 = vsel %vm408, %v463, %v467
      %v469 = vshrl.u32 %v382, 16
      %v471 = vor.u32 %v469, %v467
      %v473 = vshll.u32 %v383, 16
      %v475 = vrot.slane %v473, 1
      %v476 = vsel %vm408, %v471, %v475
      %v477 = vshrl.u32 %v383, 16
      %v479 = vor.u32 %v477, %v475
      %v481 = vshll.u32 %v384, 16
      %v483 = vrot.slane %v481, 1
      %v484 = vsel %vm408, %v479, %v483
      %v485 = vshrl.u32 %v384, 16
      %v487 = vor.u32 %v485, %v483
      %v489 = vshll.u32 %v385, 16
      %v491 = vrot.slane %v489, 1
      %v492 = vsel %vm408, %v487, %v491
      %v493 = vshrl.u32 %v385, 16
      %v495 = vor.u32 %v493, %v491
      %v497 = vshll.u32 %v386, 16
      %v499 = vrot.slane %v497, 1
      %v500 = vsel %vm408, %v495, %v499
      %v501 = vshrl.u32 %v386, 16
      %v503 = vor.u32 %v501, %v499
      %v505 = vshll.u32 %v387, 16
      %v507 = vrot.slane %v505, 1
      %v508 = vsel %vm408, %v503, %v507
      %v509 = vshrl.u32 %v387, 16
      %v511 = vor.u32 %v509, %v507
      %v513 = vshll.u32 %v388, 16
      %v515 = vrot.slane %v513, 1
      %v516 = vsel %vm408, %v511, %v515
      %v517 = vshrl.u32 %v388, 16
      %v519 = vor.u32 %v517, %v515
      %v521 = vshll.u32 %v389, 16
      %v523 = vrot.slane %v521, 1
      %v524 = vsel %vm408, %v519, %v523
      %v525 = vshrl.u32 %v389, 16
      %v527 = vor.u32 %v525, %v523
      %v529 = vshll.u32 %v390, 16
      %v531 = vrot.slane %v529, 1
      %v532 = vsel %vm408, %v527, %v531
      %v533 = vshrl.u32 %v390, 16
      %v535 = vor.u32 %v533, %v531
      %v537 = vshll.u32 %v391, 16
      %v539 = vrot.slane %v537, 1
      %v540 = vsel %vm408, %v535, %v539
      %v541 = vshrl.u32 %v391, 16
      %v543 = vor.u32 %v541, %v539
      %v545 = vshll.u32 %v392, 16
      %v547 = vrot.slane %v545, 1
      %v548 = vsel %vm408, %v543, %v547
      %v549 = vshrl.u32 %v392, 16
      %v551 = vor.u32 %v549, %v547
      %v553 = vshll.u32 %v393, 16
      %v555 = vrot.slane %v553, 1
      %v556 = vsel %vm408, %v551, %v555
      %v557 = vshrl.u32 %v393, 16
      %v559 = vor.u32 %v557, %v555
      %v561 = vshll.u32 %v394, 16
      %v563 = vrot.slane %v561, 1
      %v564 = vsel %vm408, %v559, %v563
      %v565 = vshrl.u32 %v394, 16
      %v567 = vor.u32 %v565, %v563
      %v569 = vshll.u32 %v395, 16
      %v571 = vrot.slane %v569, 1
      %v572 = vsel %vm408, %v567, %v571
      %v573 = vshrl.u32 %v395, 16
      %v575 = vor.u32 %v573, %v571
      %v577 = vshll.u32 %v396, 16
      %v579 = vrot.slane %v577, 1
      %v580 = vsel %vm408, %v575, %v579
      %v581 = vshrl.u32 %v396, 16
      %v583 = vor.u32 %v581, %v579
      %v585 = vshll.u32 %v397, 16
      %v587 = vrot.slane %v585, 1
      %v588 = vsel %vm408, %v583, %v587
      %v589 = vshrl.u32 %v397, 16
      %v591 = vor.u32 %v589, %v587
      %v593 = vshll.u32 %v398, 16
      %v595 = vrot.slane %v593, 1
      %v596 = vsel %vm408, %v591, %v595
      %v597 = vshrl.u32 %v398, 16
      %v599 = vor.u32 %v597, %v595
      %v601 = vshll.u32 %v399, 16
      %v603 = vrot.slane %v601, 1
      %v604 = vsel %vm408, %v599, %v603
      %v605 = vshrl.u32 %v399, 16
      %v607 = vor.u32 %v605, %v603
      %v609 = vshll.u32 %v400, 16
      %v611 = vrot.slane %v609, 1
      %v612 = vsel %vm408, %v607, %v611
      %v613 = vshrl.u32 %v400, 16
      %v615 = vor.u32 %v613, %v611
      %v617 = vshll.u32 %v401, 16
      %v619 = vrot.slane %v617, 1
      %v620 = vsel %vm408, %v615, %v619
      %v621 = vshrl.u32 %v401, 16
      %v623 = vor.u32 %v621, %v619
      %v625 = vshll.u32 %v402, 16
      %v627 = vrot.slane %v625, 1
      %v628 = vsel %vm408, %v623, %v627
      %v629 = vshrl.u32 %v402, 16
      %v631 = vor.u32 %v629, %v627
      %v633 = vshll.u32 %v403, 16
      %v635 = vrot.slane %v633, 1
      %v636 = vsel %vm408, %v631, %v635
      %v637 = vshrl.u32 %v403, 16
      %v639 = vor.u32 %v637, %v635
      %v641 = vshll.u32 %v404, 16
      %v643 = vrot.slane %v641, 1
      %v644 = vsel %vm408, %v639, %v643
      %v645 = vshrl.u32 %v404, 16
      %v647 = vor.u32 %v645, %v643
      %v649 = vshll.u32 %v407, 16
      %v651 = vrot.slane %v649, 1
      %v652 = vsel %vm408, %v647, %v651
      %653 = vrot.lane.b32.xlu0 %v420, 8
      %v654 = vpop.permute.xlu0 %653
      %655 = vrot.lane.b32.xlu0 %v428, 8
      %v656 = vpop.permute.xlu0 %655
      %657 = vrot.lane.b32.xlu0 %v436, 8
      %v658 = vpop.permute.xlu0 %657
      %659 = vrot.lane.b32.xlu0 %v444, 8
      %v660 = vpop.permute.xlu0 %659
      %661 = vrot.lane.b32.xlu0 %v452, 8
      %v662 = vpop.permute.xlu0 %661
      %663 = vrot.lane.b32.xlu0 %v460, 8
      %v664 = vpop.permute.xlu0 %663
      %665 = vrot.lane.b32.xlu0 %v468, 8
      %v666 = vpop.permute.xlu0 %665
      %667 = vrot.lane.b32.xlu0 %v476, 8
      %v668 = vpop.permute.xlu0 %667
      %669 = vrot.lane.b32.xlu0 %v484, 8
      %v670 = vpop.permute.xlu0 %669
      %671 = vrot.lane.b32.xlu0 %v492, 8
      %v672 = vpop.permute.xlu0 %671
      %673 = vrot.lane.b32.xlu0 %v500, 8
      %v674 = vpop.permute.xlu0 %673
      %675 = vrot.lane.b32.xlu0 %v508, 8
      %v676 = vpop.permute.xlu0 %675
      %677 = vrot.lane.b32.xlu0 %v516, 8
      %v678 = vpop.permute.xlu0 %677
      %679 = vrot.lane.b32.xlu0 %v524, 8
      %v680 = vpop.permute.xlu0 %679
      %681 = vrot.lane.b32.xlu0 %v532, 8
      %v682 = vpop.permute.xlu0 %681
      %683 = vrot.lane.b32.xlu0 %v540, 8
      %v684 = vpop.permute.xlu0 %683
      %685 = vrot.lane.b32.xlu0 %v548, 8
      %v686 = vpop.permute.xlu0 %685
      %687 = vrot.lane.b32.xlu0 %v556, 8
      %v688 = vpop.permute.xlu0 %687
      %689 = vrot.lane.b32.xlu0 %v564, 8
      %v690 = vpop.permute.xlu0 %689
      %691 = vrot.lane.b32.xlu0 %v572, 8
      %v692 = vpop.permute.xlu0 %691
      %693 = vrot.lane.b32.xlu0 %v580, 8
      %v694 = vpop.permute.xlu0 %693
      %695 = vrot.lane.b32.xlu0 %v588, 8
      %v696 = vpop.permute.xlu0 %695
      %697 = vrot.lane.b32.xlu0 %v596, 8
      %v698 = vpop.permute.xlu0 %697
      %699 = vrot.lane.b32.xlu0 %v604, 8
      %v700 = vpop.permute.xlu0 %699
      %701 = vrot.lane.b32.xlu0 %v612, 8
      %v702 = vpop.permute.xlu0 %701
      %703 = vrot.lane.b32.xlu0 %v620, 8
      %v704 = vpop.permute.xlu0 %703
      %705 = vrot.lane.b32.xlu0 %v628, 8
      %v706 = vpop.permute.xlu0 %705
      %707 = vrot.lane.b32.xlu0 %v636, 8
      %v708 = vpop.permute.xlu0 %707
      %709 = vrot.lane.b32.xlu0 %v644, 8
      %v710 = vpop.permute.xlu0 %709
      %711 = vrot.lane.b32.xlu0 %v652, 8
      %v712 = vpop.permute.xlu0 %711
      %v714 = vunpack.c.l.b16 %v244
      %v715 = vpack.c.b16 %v316, %v714
      %vm716 = vcmask 1046528
      %v717 = vrot.slane %v715, 1
      %v718 = vrot.slane %v376, 1
      %v719 = vsel %vm716, %v717, %v718
      %v720 = vrot.slane %v377, 1
      %v721 = vsel %vm716, %v718, %v720
      %v722 = vrot.slane %v378, 1
      %v723 = vsel %vm716, %v720, %v722
      %v724 = vrot.slane %v379, 1
      %v725 = vsel %vm716, %v722, %v724
      %v726 = vrot.slane %v380, 1
      %v727 = vsel %vm716, %v724, %v726
      %v728 = vrot.slane %v381, 1
      %v729 = vsel %vm716, %v726, %v728
      %v730 = vrot.slane %v382, 1
      %v731 = vsel %vm716, %v728, %v730
      %v732 = vrot.slane %v383, 1
      %v733 = vsel %vm716, %v730, %v732
      %v734 = vrot.slane %v384, 1
      %v735 = vsel %vm716, %v732, %v734
      %v736 = vrot.slane %v385, 1
      %v737 = vsel %vm716, %v734, %v736
      %v738 = vrot.slane %v386, 1
      %v739 = vsel %vm716, %v736, %v738
      %v740 = vrot.slane %v387, 1
      %v741 = vsel %vm716, %v738, %v740
      %v742 = vrot.slane %v388, 1
      %v743 = vsel %vm716, %v740, %v742
      %v744 = vrot.slane %v389, 1
      %v745 = vsel %vm716, %v742, %v744
      %v746 = vrot.slane %v390, 1
      %v747 = vsel %vm716, %v744, %v746
      %v748 = vrot.slane %v391, 1
      %v749 = vsel %vm716, %v746, %v748
      %v750 = vrot.slane %v392, 1
      %v751 = vsel %vm716, %v748, %v750
      %v752 = vrot.slane %v393, 1
      %v753 = vsel %vm716, %v750, %v752
      %v754 = vrot.slane %v394, 1
      %v755 = vsel %vm716, %v752, %v754
      %v756 = vrot.slane %v395, 1
      %v757 = vsel %vm716, %v754, %v756
      %v758 = vrot.slane %v396, 1
      %v759 = vsel %vm716, %v756, %v758
      %v760 = vrot.slane %v397, 1
      %v761 = vsel %vm716, %v758, %v760
      %v762 = vrot.slane %v398, 1
      %v763 = vsel %vm716, %v760, %v762
      %v764 = vrot.slane %v399, 1
      %v765 = vsel %vm716, %v762, %v764
      %v766 = vrot.slane %v400, 1
      %v767 = vsel %vm716, %v764, %v766
      %v768 = vrot.slane %v401, 1
      %v769 = vsel %vm716, %v766, %v768
      %v770 = vrot.slane %v402, 1
      %v771 = vsel %vm716, %v768, %v770
      %v772 = vrot.slane %v403, 1
      %v773 = vsel %vm716, %v770, %v772
      %v774 = vrot.slane %v404, 1
      %v775 = vsel %vm716, %v772, %v774
      %v776 = vrot.slane %v407, 1
      %v777 = vsel %vm716, %v774, %v776
      %778 = vrot.lane.b32.xlu0 %v719, 16
      %v779 = vpop.permute.xlu0 %778
      %780 = vrot.lane.b32.xlu0 %v721, 16
      %v781 = vpop.permute.xlu0 %780
      %782 = vrot.lane.b32.xlu0 %v723, 16
      %v783 = vpop.permute.xlu0 %782
      %784 = vrot.lane.b32.xlu0 %v725, 16
      %v785 = vpop.permute.xlu0 %784
      %786 = vrot.lane.b32.xlu0 %v727, 16
      %v787 = vpop.permute.xlu0 %786
      %788 = vrot.lane.b32.xlu0 %v729, 16
      %v789 = vpop.permute.xlu0 %788
      %790 = vrot.lane.b32.xlu0 %v731, 16
      %v791 = vpop.permute.xlu0 %790
      %792 = vrot.lane.b32.xlu0 %v733, 16
      %v793 = vpop.permute.xlu0 %792
      %794 = vrot.lane.b32.xlu0 %v735, 16
      %v795 = vpop.permute.xlu0 %794
      %796 = vrot.lane.b32.xlu0 %v737, 16
      %v797 = vpop.permute.xlu0 %796
      %798 = vrot.lane.b32.xlu0 %v739, 16
      %v799 = vpop.permute.xlu0 %798
      %800 = vrot.lane.b32.xlu0 %v741, 16
      %v801 = vpop.permute.xlu0 %800
      %802 = vrot.lane.b32.xlu0 %v743, 16
      %v803 = vpop.permute.xlu0 %802
      %804 = vrot.lane.b32.xlu0 %v745, 16
      %v805 = vpop.permute.xlu0 %804
      %806 = vrot.lane.b32.xlu0 %v747, 16
      %v807 = vpop.permute.xlu0 %806
      %808 = vrot.lane.b32.xlu0 %v749, 16
      %v809 = vpop.permute.xlu0 %808
      %810 = vrot.lane.b32.xlu0 %v751, 16
      %v811 = vpop.permute.xlu0 %810
      %812 = vrot.lane.b32.xlu0 %v753, 16
      %v813 = vpop.permute.xlu0 %812
      %814 = vrot.lane.b32.xlu0 %v755, 16
      %v815 = vpop.permute.xlu0 %814
      %816 = vrot.lane.b32.xlu0 %v757, 16
      %v817 = vpop.permute.xlu0 %816
      %818 = vrot.lane.b32.xlu0 %v759, 16
      %v819 = vpop.permute.xlu0 %818
      %820 = vrot.lane.b32.xlu0 %v761, 16
      %v821 = vpop.permute.xlu0 %820
      %822 = vrot.lane.b32.xlu0 %v763, 16
      %v823 = vpop.permute.xlu0 %822
      %824 = vrot.lane.b32.xlu0 %v765, 16
      %v825 = vpop.permute.xlu0 %824
      %826 = vrot.lane.b32.xlu0 %v767, 16
      %v827 = vpop.permute.xlu0 %826
      %828 = vrot.lane.b32.xlu0 %v769, 16
      %v829 = vpop.permute.xlu0 %828
      %830 = vrot.lane.b32.xlu0 %v771, 16
      %v831 = vpop.permute.xlu0 %830
      %832 = vrot.lane.b32.xlu0 %v773, 16
      %v833 = vpop.permute.xlu0 %832
      %834 = vrot.lane.b32.xlu0 %v775, 16
      %v835 = vpop.permute.xlu0 %834
      %836 = vrot.lane.b32.xlu0 %v777, 16
      %v837 = vpop.permute.xlu0 %836
      %v841 = vunpack.c.l.b16 %v245
      %v842 = vunpack.c.l.b16 %v246
      %v843 = vunpack.c.l.b16 %v247
      %v844 = vpack.c.b16 %v319, %v318
      %v845 = vpack.c.b16 %v321, %v320
      %v846 = vpack.c.b16 %v323, %v322
      %v847 = vpack.c.b16 %v325, %v324
      %v848 = vpack.c.b16 %v327, %v326
      %v849 = vpack.c.b16 %v329, %v328
      %v850 = vpack.c.b16 %v331, %v330
      %v851 = vpack.c.b16 %v333, %v332
      %v852 = vpack.c.b16 %v335, %v334
      %v853 = vpack.c.b16 %v337, %v336
      %v854 = vpack.c.b16 %v339, %v338
      %v855 = vpack.c.b16 %v341, %v340
      %v856 = vpack.c.b16 %v343, %v342
      %v857 = vpack.c.b16 %v345, %v344
      %v858 = vpack.c.b16 %v347, %v346
      %v859 = vpack.c.b16 %v349, %v348
      %v860 = vpack.c.b16 %v351, %v350
      %v861 = vpack.c.b16 %v353, %v352
      %v862 = vpack.c.b16 %v355, %v354
      %v863 = vpack.c.b16 %v357, %v356
      %v864 = vpack.c.b16 %v359, %v358
      %v865 = vpack.c.b16 %v361, %v360
      %v866 = vpack.c.b16 %v363, %v362
      %v867 = vpack.c.b16 %v365, %v364
      %v868 = vpack.c.b16 %v367, %v366
      %v869 = vpack.c.b16 %v369, %v368
      %v870 = vpack.c.b16 %v371, %v370
      %v871 = vpack.c.b16 %v373, %v372
      %v872 = vpack.c.b16 %v841, %v374
      %v873 = vpack.c.b16 %v843, %v842
      %874 = vrot.lane.b32.xlu0 %v844, 24
      %v875 = vpop.permute.xlu0 %874
      %876 = vrot.lane.b32.xlu0 %v845, 24
      %v877 = vpop.permute.xlu0 %876
      %878 = vrot.lane.b32.xlu0 %v846, 24
      %v879 = vpop.permute.xlu0 %878
      %880 = vrot.lane.b32.xlu0 %v847, 24
      %v881 = vpop.permute.xlu0 %880
      %882 = vrot.lane.b32.xlu0 %v848, 24
      %v883 = vpop.permute.xlu0 %882
      %884 = vrot.lane.b32.xlu0 %v849, 24
      %v885 = vpop.permute.xlu0 %884
      %886 = vrot.lane.b32.xlu0 %v850, 24
      %v887 = vpop.permute.xlu0 %886
      %888 = vrot.lane.b32.xlu0 %v851, 24
      %v889 = vpop.permute.xlu0 %888
      %890 = vrot.lane.b32.xlu0 %v852, 24
      %v891 = vpop.permute.xlu0 %890
      %892 = vrot.lane.b32.xlu0 %v853, 24
      %v893 = vpop.permute.xlu0 %892
      %894 = vrot.lane.b32.xlu0 %v854, 24
      %v895 = vpop.permute.xlu0 %894
      %896 = vrot.lane.b32.xlu0 %v855, 24
      %v897 = vpop.permute.xlu0 %896
      %898 = vrot.lane.b32.xlu0 %v856, 24
      %v899 = vpop.permute.xlu0 %898
      %900 = vrot.lane.b32.xlu0 %v857, 24
      %v901 = vpop.permute.xlu0 %900
      %902 = vrot.lane.b32.xlu0 %v858, 24
      %v903 = vpop.permute.xlu0 %902
      %904 = vrot.lane.b32.xlu0 %v859, 24
      %v905 = vpop.permute.xlu0 %904
      %906 = vrot.lane.b32.xlu0 %v860, 24
      %v907 = vpop.permute.xlu0 %906
      %908 = vrot.lane.b32.xlu0 %v861, 24
      %v909 = vpop.permute.xlu0 %908
      %910 = vrot.lane.b32.xlu0 %v862, 24
      %v911 = vpop.permute.xlu0 %910
      %912 = vrot.lane.b32.xlu0 %v863, 24
      %v913 = vpop.permute.xlu0 %912
      %914 = vrot.lane.b32.xlu0 %v864, 24
      %v915 = vpop.permute.xlu0 %914
      %916 = vrot.lane.b32.xlu0 %v865, 24
      %v917 = vpop.permute.xlu0 %916
      %918 = vrot.lane.b32.xlu0 %v866, 24
      %v919 = vpop.permute.xlu0 %918
      %920 = vrot.lane.b32.xlu0 %v867, 24
      %v921 = vpop.permute.xlu0 %920
      %922 = vrot.lane.b32.xlu0 %v868, 24
      %v923 = vpop.permute.xlu0 %922
      %924 = vrot.lane.b32.xlu0 %v869, 24
      %v925 = vpop.permute.xlu0 %924
      %926 = vrot.lane.b32.xlu0 %v870, 24
      %v927 = vpop.permute.xlu0 %926
      %928 = vrot.lane.b32.xlu0 %v871, 24
      %v929 = vpop.permute.xlu0 %928
      %930 = vrot.lane.b32.xlu0 %v872, 24
      %v931 = vpop.permute.xlu0 %930
      %932 = vrot.lane.b32.xlu0 %v873, 24
      %v933 = vpop.permute.xlu0 %932
      %v935 = vunpack.c.l.b16 %v248
      %v936 = vpack.c.b16 %v935, %v935
      %v938 = vshrl.u32 %v844, 16
      %v940 = vshll.u32 %v844, 16
      %v942 = vrot.slane %v940, 1
      %v943 = vor.u32 %v938, %v942
      %v945 = vshll.u32 %v845, 16
      %v947 = vrot.slane %v945, 1
      %v948 = vsel %vm408, %v943, %v947
      %v949 = vshrl.u32 %v845, 16
      %v951 = vor.u32 %v949, %v947
      %v953 = vshll.u32 %v846, 16
      %v955 = vrot.slane %v953, 1
      %v956 = vsel %vm408, %v951, %v955
      %v957 = vshrl.u32 %v846, 16
      %v959 = vor.u32 %v957, %v955
      %v961 = vshll.u32 %v847, 16
      %v963 = vrot.slane %v961, 1
      %v964 = vsel %vm408, %v959, %v963
      %v965 = vshrl.u32 %v847, 16
      %v967 = vor.u32 %v965, %v963
      %v969 = vshll.u32 %v848, 16
      %v971 = vrot.slane %v969, 1
      %v972 = vsel %vm408, %v967, %v971
      %v973 = vshrl.u32 %v848, 16
      %v975 = vor.u32 %v973, %v971
      %v977 = vshll.u32 %v849, 16
      %v979 = vrot.slane %v977, 1
      %v980 = vsel %vm408, %v975, %v979
      %v981 = vshrl.u32 %v849, 16
      %v983 = vor.u32 %v981, %v979
      %v985 = vshll.u32 %v850, 16
      %v987 = vrot.slane %v985, 1
      %v988 = vsel %vm408, %v983, %v987
      %v989 = vshrl.u32 %v850, 16
      %v991 = vor.u32 %v989, %v987
      %v993 = vshll.u32 %v851, 16
      %v995 = vrot.slane %v993, 1
      %v996 = vsel %vm408, %v991, %v995
      %v997 = vshrl.u32 %v851, 16
      %v999 = vor.u32 %v997, %v995
      %v1001 = vshll.u32 %v852, 16
      %v1003 = vrot.slane %v1001, 1
      %v1004 = vsel %vm408, %v999, %v1003
      %v1005 = vshrl.u32 %v852, 16
      %v1007 = vor.u32 %v1005, %v1003
      %v1009 = vshll.u32 %v853, 16
      %v1011 = vrot.slane %v1009, 1
      %v1012 = vsel %vm408, %v1007, %v1011
      %v1013 = vshrl.u32 %v853, 16
      %v1015 = vor.u32 %v1013, %v1011
      %v1017 = vshll.u32 %v854, 16
      %v1019 = vrot.slane %v1017, 1
      %v1020 = vsel %vm408, %v1015, %v1019
      %v1021 = vshrl.u32 %v854, 16
      %v1023 = vor.u32 %v1021, %v1019
      %v1025 = vshll.u32 %v855, 16
      %v1027 = vrot.slane %v1025, 1
      %v1028 = vsel %vm408, %v1023, %v1027
      %v1029 = vshrl.u32 %v855, 16
      %v1031 = vor.u32 %v1029, %v1027
      %v1033 = vshll.u32 %v856, 16
      %v1035 = vrot.slane %v1033, 1
      %v1036 = vsel %vm408, %v1031, %v1035
      %v1037 = vshrl.u32 %v856, 16
      %v1039 = vor.u32 %v1037, %v1035
      %v1041 = vshll.u32 %v857, 16
      %v1043 = vrot.slane %v1041, 1
      %v1044 = vsel %vm408, %v1039, %v1043
      %v1045 = vshrl.u32 %v857, 16
      %v1047 = vor.u32 %v1045, %v1043
      %v1049 = vshll.u32 %v858, 16
      %v1051 = vrot.slane %v1049, 1
      %v1052 = vsel %vm408, %v1047, %v1051
      %v1053 = vshrl.u32 %v858, 16
      %v1055 = vor.u32 %v1053, %v1051
      %v1057 = vshll.u32 %v859, 16
      %v1059 = vrot.slane %v1057, 1
      %v1060 = vsel %vm408, %v1055, %v1059
      %v1061 = vshrl.u32 %v859, 16
      %v1063 = vor.u32 %v1061, %v1059
      %v1065 = vshll.u32 %v860, 16
      %v1067 = vrot.slane %v1065, 1
      %v1068 = vsel %vm408, %v1063, %v1067
      %v1069 = vshrl.u32 %v860, 16
      %v1071 = vor.u32 %v1069, %v1067
      %v1073 = vshll.u32 %v861, 16
      %v1075 = vrot.slane %v1073, 1
      %v1076 = vsel %vm408, %v1071, %v1075
      %v1077 = vshrl.u32 %v861, 16
      %v1079 = vor.u32 %v1077, %v1075
      %v1081 = vshll.u32 %v862, 16
      %v1083 = vrot.slane %v1081, 1
      %v1084 = vsel %vm408, %v1079, %v1083
      %v1085 = vshrl.u32 %v862, 16
      %v1087 = vor.u32 %v1085, %v1083
      %v1089 = vshll.u32 %v863, 16
      %v1091 = vrot.slane %v1089, 1
      %v1092 = vsel %vm408, %v1087, %v1091
      %v1093 = vshrl.u32 %v863, 16
      %v1095 = vor.u32 %v1093, %v1091
      %v1097 = vshll.u32 %v864, 16
      %v1099 = vrot.slane %v1097, 1
      %v1100 = vsel %vm408, %v1095, %v1099
      %v1101 = vshrl.u32 %v864, 16
      %v1103 = vor.u32 %v1101, %v1099
      %v1105 = vshll.u32 %v865, 16
      %v1107 = vrot.slane %v1105, 1
      %v1108 = vsel %vm408, %v1103, %v1107
      %v1109 = vshrl.u32 %v865, 16
      %v1111 = vor.u32 %v1109, %v1107
      %v1113 = vshll.u32 %v866, 16
      %v1115 = vrot.slane %v1113, 1
      %v1116 = vsel %vm408, %v1111, %v1115
      %v1117 = vshrl.u32 %v866, 16
      %v1119 = vor.u32 %v1117, %v1115
      %v1121 = vshll.u32 %v867, 16
      %v1123 = vrot.slane %v1121, 1
      %v1124 = vsel %vm408, %v1119, %v1123
      %v1125 = vshrl.u32 %v867, 16
      %v1127 = vor.u32 %v1125, %v1123
      %v1129 = vshll.u32 %v868, 16
      %v1131 = vrot.slane %v1129, 1
      %v1132 = vsel %vm408, %v1127, %v1131
      %v1133 = vshrl.u32 %v868, 16
      %v1135 = vor.u32 %v1133, %v1131
      %v1137 = vshll.u32 %v869, 16
      %v1139 = vrot.slane %v1137, 1
      %v1140 = vsel %vm408, %v1135, %v1139
      %v1141 = vshrl.u32 %v869, 16
      %v1143 = vor.u32 %v1141, %v1139
      %v1145 = vshll.u32 %v870, 16
      %v1147 = vrot.slane %v1145, 1
      %v1148 = vsel %vm408, %v1143, %v1147
      %v1149 = vshrl.u32 %v870, 16
      %v1151 = vor.u32 %v1149, %v1147
      %v1153 = vshll.u32 %v871, 16
      %v1155 = vrot.slane %v1153, 1
      %v1156 = vsel %vm408, %v1151, %v1155
      %v1157 = vshrl.u32 %v871, 16
      %v1159 = vor.u32 %v1157, %v1155
      %v1161 = vshll.u32 %v872, 16
      %v1163 = vrot.slane %v1161, 1
      %v1164 = vsel %vm408, %v1159, %v1163
      %v1165 = vshrl.u32 %v872, 16
      %v1167 = vor.u32 %v1165, %v1163
      %v1169 = vshll.u32 %v873, 16
      %v1171 = vrot.slane %v1169, 1
      %v1172 = vsel %vm408, %v1167, %v1171
      %v1173 = vshrl.u32 %v873, 16
      %v1175 = vor.u32 %v1173, %v1171
      %v1177 = vshll.u32 %v936, 16
      %v1179 = vrot.slane %v1177, 1
      %v1180 = vsel %vm408, %v1175, %v1179
      %1181 = vrot.lane.b32.xlu0 %v948, 32
      %v1182 = vpop.permute.xlu0 %1181
      %1183 = vrot.lane.b32.xlu0 %v956, 32
      %v1184 = vpop.permute.xlu0 %1183
      %1185 = vrot.lane.b32.xlu0 %v964, 32
      %v1186 = vpop.permute.xlu0 %1185
      %1187 = vrot.lane.b32.xlu0 %v972, 32
      %v1188 = vpop.permute.xlu0 %1187
      %1189 = vrot.lane.b32.xlu0 %v980, 32
      %v1190 = vpop.permute.xlu0 %1189
      %1191 = vrot.lane.b32.xlu0 %v988, 32
      %v1192 = vpop.permute.xlu0 %1191
      %1193 = vrot.lane.b32.xlu0 %v996, 32
      %v1194 = vpop.permute.xlu0 %1193
      %1195 = vrot.lane.b32.xlu0 %v1004, 32
      %v1196 = vpop.permute.xlu0 %1195
      %1197 = vrot.lane.b32.xlu0 %v1012, 32
      %v1198 = vpop.permute.xlu0 %1197
      %1199 = vrot.lane.b32.xlu0 %v1020, 32
      %v1200 = vpop.permute.xlu0 %1199
      %1201 = vrot.lane.b32.xlu0 %v1028, 32
      %v1202 = vpop.permute.xlu0 %1201
      %1203 = vrot.lane.b32.xlu0 %v1036, 32
      %v1204 = vpop.permute.xlu0 %1203
      %1205 = vrot.lane.b32.xlu0 %v1044, 32
      %v1206 = vpop.permute.xlu0 %1205
      %1207 = vrot.lane.b32.xlu0 %v1052, 32
      %v1208 = vpop.permute.xlu0 %1207
      %1209 = vrot.lane.b32.xlu0 %v1060, 32
      %v1210 = vpop.permute.xlu0 %1209
      %1211 = vrot.lane.b32.xlu0 %v1068, 32
      %v1212 = vpop.permute.xlu0 %1211
      %1213 = vrot.lane.b32.xlu0 %v1076, 32
      %v1214 = vpop.permute.xlu0 %1213
      %1215 = vrot.lane.b32.xlu0 %v1084, 32
      %v1216 = vpop.permute.xlu0 %1215
      %1217 = vrot.lane.b32.xlu0 %v1092, 32
      %v1218 = vpop.permute.xlu0 %1217
      %1219 = vrot.lane.b32.xlu0 %v1100, 32
      %v1220 = vpop.permute.xlu0 %1219
      %1221 = vrot.lane.b32.xlu0 %v1108, 32
      %v1222 = vpop.permute.xlu0 %1221
      %1223 = vrot.lane.b32.xlu0 %v1116, 32
      %v1224 = vpop.permute.xlu0 %1223
      %1225 = vrot.lane.b32.xlu0 %v1124, 32
      %v1226 = vpop.permute.xlu0 %1225
      %1227 = vrot.lane.b32.xlu0 %v1132, 32
      %v1228 = vpop.permute.xlu0 %1227
      %1229 = vrot.lane.b32.xlu0 %v1140, 32
      %v1230 = vpop.permute.xlu0 %1229
      %1231 = vrot.lane.b32.xlu0 %v1148, 32
      %v1232 = vpop.permute.xlu0 %1231
      %1233 = vrot.lane.b32.xlu0 %v1156, 32
      %v1234 = vpop.permute.xlu0 %1233
      %1235 = vrot.lane.b32.xlu0 %v1164, 32
      %v1236 = vpop.permute.xlu0 %1235
      %1237 = vrot.lane.b32.xlu0 %v1172, 32
      %v1238 = vpop.permute.xlu0 %1237
      %1239 = vrot.lane.b32.xlu0 %v1180, 32
      %v1240 = vpop.permute.xlu0 %1239
      %v1242 = vunpack.c.l.b16 %v249
      %v1243 = vpack.c.b16 %v319, %v1242
      %v1244 = vrot.slane %v1243, 1
      %v1245 = vrot.slane %v845, 1
      %v1246 = vsel %vm716, %v1244, %v1245
      %v1247 = vrot.slane %v846, 1
      %v1248 = vsel %vm716, %v1245, %v1247
      %v1249 = vrot.slane %v847, 1
      %v1250 = vsel %vm716, %v1247, %v1249
      %v1251 = vrot.slane %v848, 1
      %v1252 = vsel %vm716, %v1249, %v1251
      %v1253 = vrot.slane %v849, 1
      %v1254 = vsel %vm716, %v1251, %v1253
      %v1255 = vrot.slane %v850, 1
      %v1256 = vsel %vm716, %v1253, %v1255
      %v1257 = vrot.slane %v851, 1
      %v1258 = vsel %vm716, %v1255, %v1257
      %v1259 = vrot.slane %v852, 1
      %v1260 = vsel %vm716, %v1257, %v1259
      %v1261 = vrot.slane %v853, 1
      %v1262 = vsel %vm716, %v1259, %v1261
      %v1263 = vrot.slane %v854, 1
      %v1264 = vsel %vm716, %v1261, %v1263
      %v1265 = vrot.slane %v855, 1
      %v1266 = vsel %vm716, %v1263, %v1265
      %v1267 = vrot.slane %v856, 1
      %v1268 = vsel %vm716, %v1265, %v1267
      %v1269 = vrot.slane %v857, 1
      %v1270 = vsel %vm716, %v1267, %v1269
      %v1271 = vrot.slane %v858, 1
      %v1272 = vsel %vm716, %v1269, %v1271
      %v1273 = vrot.slane %v859, 1
      %v1274 = vsel %vm716, %v1271, %v1273
      %v1275 = vrot.slane %v860, 1
      %v1276 = vsel %vm716, %v1273, %v1275
      %v1277 = vrot.slane %v861, 1
      %v1278 = vsel %vm716, %v1275, %v1277
      %v1279 = vrot.slane %v862, 1
      %v1280 = vsel %vm716, %v1277, %v1279
      %v1281 = vrot.slane %v863, 1
      %v1282 = vsel %vm716, %v1279, %v1281
      %v1283 = vrot.slane %v864, 1
      %v1284 = vsel %vm716, %v1281, %v1283
      %v1285 = vrot.slane %v865, 1
      %v1286 = vsel %vm716, %v1283, %v1285
      %v1287 = vrot.slane %v866, 1
      %v1288 = vsel %vm716, %v1285, %v1287
      %v1289 = vrot.slane %v867, 1
      %v1290 = vsel %vm716, %v1287, %v1289
      %v1291 = vrot.slane %v868, 1
      %v1292 = vsel %vm716, %v1289, %v1291
      %v1293 = vrot.slane %v869, 1
      %v1294 = vsel %vm716, %v1291, %v1293
      %v1295 = vrot.slane %v870, 1
      %v1296 = vsel %vm716, %v1293, %v1295
      %v1297 = vrot.slane %v871, 1
      %v1298 = vsel %vm716, %v1295, %v1297
      %v1299 = vrot.slane %v872, 1
      %v1300 = vsel %vm716, %v1297, %v1299
      %v1301 = vrot.slane %v873, 1
      %v1302 = vsel %vm716, %v1299, %v1301
      %v1303 = vrot.slane %v936, 1
      %v1304 = vsel %vm716, %v1301, %v1303
      %1305 = vrot.lane.b32.xlu0 %v1246, 40
      %v1306 = vpop.permute.xlu0 %1305
      %1307 = vrot.lane.b32.xlu0 %v1248, 40
      %v1308 = vpop.permute.xlu0 %1307
      %1309 = vrot.lane.b32.xlu0 %v1250, 40
      %v1310 = vpop.permute.xlu0 %1309
      %1311 = vrot.lane.b32.xlu0 %v1252, 40
      %v1312 = vpop.permute.xlu0 %1311
      %1313 = vrot.lane.b32.xlu0 %v1254, 40
      %v1314 = vpop.permute.xlu0 %1313
      %1315 = vrot.lane.b32.xlu0 %v1256, 40
      %v1316 = vpop.permute.xlu0 %1315
      %1317 = vrot.lane.b32.xlu0 %v1258, 40
      %v1318 = vpop.permute.xlu0 %1317
      %1319 = vrot.lane.b32.xlu0 %v1260, 40
      %v1320 = vpop.permute.xlu0 %1319
      %1321 = vrot.lane.b32.xlu0 %v1262, 40
      %v1322 = vpop.permute.xlu0 %1321
      %1323 = vrot.lane.b32.xlu0 %v1264, 40
      %v1324 = vpop.permute.xlu0 %1323
      %1325 = vrot.lane.b32.xlu0 %v1266, 40
      %v1326 = vpop.permute.xlu0 %1325
      %1327 = vrot.lane.b32.xlu0 %v1268, 40
      %v1328 = vpop.permute.xlu0 %1327
      %1329 = vrot.lane.b32.xlu0 %v1270, 40
      %v1330 = vpop.permute.xlu0 %1329
      %1331 = vrot.lane.b32.xlu0 %v1272, 40
      %v1332 = vpop.permute.xlu0 %1331
      %1333 = vrot.lane.b32.xlu0 %v1274, 40
      %v1334 = vpop.permute.xlu0 %1333
      %1335 = vrot.lane.b32.xlu0 %v1276, 40
      %v1336 = vpop.permute.xlu0 %1335
      %1337 = vrot.lane.b32.xlu0 %v1278, 40
      %v1338 = vpop.permute.xlu0 %1337
      %1339 = vrot.lane.b32.xlu0 %v1280, 40
      %v1340 = vpop.permute.xlu0 %1339
      %1341 = vrot.lane.b32.xlu0 %v1282, 40
      %v1342 = vpop.permute.xlu0 %1341
      %1343 = vrot.lane.b32.xlu0 %v1284, 40
      %v1344 = vpop.permute.xlu0 %1343
      %1345 = vrot.lane.b32.xlu0 %v1286, 40
      %v1346 = vpop.permute.xlu0 %1345
      %1347 = vrot.lane.b32.xlu0 %v1288, 40
      %v1348 = vpop.permute.xlu0 %1347
      %1349 = vrot.lane.b32.xlu0 %v1290, 40
      %v1350 = vpop.permute.xlu0 %1349
      %1351 = vrot.lane.b32.xlu0 %v1292, 40
      %v1352 = vpop.permute.xlu0 %1351
      %1353 = vrot.lane.b32.xlu0 %v1294, 40
      %v1354 = vpop.permute.xlu0 %1353
      %1355 = vrot.lane.b32.xlu0 %v1296, 40
      %v1356 = vpop.permute.xlu0 %1355
      %1357 = vrot.lane.b32.xlu0 %v1298, 40
      %v1358 = vpop.permute.xlu0 %1357
      %1359 = vrot.lane.b32.xlu0 %v1300, 40
      %v1360 = vpop.permute.xlu0 %1359
      %1361 = vrot.lane.b32.xlu0 %v1302, 40
      %v1362 = vpop.permute.xlu0 %1361
      %1363 = vrot.lane.b32.xlu0 %v1304, 40
      %v1364 = vpop.permute.xlu0 %1363
      %v1368 = vunpack.c.l.b16 %v250
      %v1369 = vunpack.c.l.b16 %v251
      %v1370 = vunpack.c.l.b16 %v252
      %v1371 = vpack.c.b16 %v842, %v841
      %v1372 = vpack.c.b16 %v1368, %v843
      %v1373 = vpack.c.b16 %v1370, %v1369
      %1374 = vrot.lane.b32.xlu0 %v378, 48
      %v1375 = vpop.permute.xlu0 %1374
      %1376 = vrot.lane.b32.xlu0 %v379, 48
      %v1377 = vpop.permute.xlu0 %1376
      %1378 = vrot.lane.b32.xlu0 %v380, 48
      %v1379 = vpop.permute.xlu0 %1378
      %1380 = vrot.lane.b32.xlu0 %v381, 48
      %v1381 = vpop.permute.xlu0 %1380
      %1382 = vrot.lane.b32.xlu0 %v382, 48
      %v1383 = vpop.permute.xlu0 %1382
      %1384 = vrot.lane.b32.xlu0 %v383, 48
      %v1385 = vpop.permute.xlu0 %1384
      %1386 = vrot.lane.b32.xlu0 %v384, 48
      %v1387 = vpop.permute.xlu0 %1386
      %1388 = vrot.lane.b32.xlu0 %v385, 48
      %v1389 = vpop.permute.xlu0 %1388
      %1390 = vrot.lane.b32.xlu0 %v386, 48
      %v1391 = vpop.permute.xlu0 %1390
      %1392 = vrot.lane.b32.xlu0 %v387, 48
      %v1393 = vpop.permute.xlu0 %1392
      %1394 = vrot.lane.b32.xlu0 %v388, 48
      %v1395 = vpop.permute.xlu0 %1394
      %1396 = vrot.lane.b32.xlu0 %v389, 48
      %v1397 = vpop.permute.xlu0 %1396
      %1398 = vrot.lane.b32.xlu0 %v390, 48
      %v1399 = vpop.permute.xlu0 %1398
      %1400 = vrot.lane.b32.xlu0 %v391, 48
      %v1401 = vpop.permute.xlu0 %1400
      %1402 = vrot.lane.b32.xlu0 %v392, 48
      %v1403 = vpop.permute.xlu0 %1402
      %1404 = vrot.lane.b32.xlu0 %v393, 48
      %v1405 = vpop.permute.xlu0 %1404
      %1406 = vrot.lane.b32.xlu0 %v394, 48
      %v1407 = vpop.permute.xlu0 %1406
      %1408 = vrot.lane.b32.xlu0 %v395, 48
      %v1409 = vpop.permute.xlu0 %1408
      %1410 = vrot.lane.b32.xlu0 %v396, 48
      %v1411 = vpop.permute.xlu0 %1410
      %1412 = vrot.lane.b32.xlu0 %v397, 48
      %v1413 = vpop.permute.xlu0 %1412
      %1414 = vrot.lane.b32.xlu0 %v398, 48
      %v1415 = vpop.permute.xlu0 %1414
      %1416 = vrot.lane.b32.xlu0 %v399, 48
      %v1417 = vpop.permute.xlu0 %1416
      %1418 = vrot.lane.b32.xlu0 %v400, 48
      %v1419 = vpop.permute.xlu0 %1418
      %1420 = vrot.lane.b32.xlu0 %v401, 48
      %v1421 = vpop.permute.xlu0 %1420
      %1422 = vrot.lane.b32.xlu0 %v402, 48
      %v1423 = vpop.permute.xlu0 %1422
      %1424 = vrot.lane.b32.xlu0 %v403, 48
      %v1425 = vpop.permute.xlu0 %1424
      %1426 = vrot.lane.b32.xlu0 %v404, 48
      %v1427 = vpop.permute.xlu0 %1426
      %1428 = vrot.lane.b32.xlu0 %v1371, 48
      %v1429 = vpop.permute.xlu0 %1428
      %1430 = vrot.lane.b32.xlu0 %v1372, 48
      %v1431 = vpop.permute.xlu0 %1430
      %1432 = vrot.lane.b32.xlu0 %v1373, 48
      %v1433 = vpop.permute.xlu0 %1432
      %v1435 = vunpack.c.l.b16 %v253
      %v1436 = vpack.c.b16 %v1435, %v1435
      %v1438 = vshll.u32 %v1371, 16
      %v1440 = vrot.slane %v1438, 1
      %v1441 = vsel %vm408, %v647, %v1440
      %v1442 = vshrl.u32 %v1371, 16
      %v1444 = vor.u32 %v1442, %v1440
      %v1446 = vshll.u32 %v1372, 16
      %v1448 = vrot.slane %v1446, 1
      %v1449 = vsel %vm408, %v1444, %v1448
      %v1450 = vshrl.u32 %v1372, 16
      %v1452 = vor.u32 %v1450, %v1448
      %v1454 = vshll.u32 %v1373, 16
      %v1456 = vrot.slane %v1454, 1
      %v1457 = vsel %vm408, %v1452, %v1456
      %v1458 = vshrl.u32 %v1373, 16
      %v1460 = vor.u32 %v1458, %v1456
      %v1462 = vshll.u32 %v1436, 16
      %v1464 = vrot.slane %v1462, 1
      %v1465 = vsel %vm408, %v1460, %v1464
      %1466 = vrot.lane.b32.xlu0 %v444, 56
      %v1467 = vpop.permute.xlu0 %1466
      %1468 = vrot.lane.b32.xlu0 %v452, 56
      %v1469 = vpop.permute.xlu0 %1468
      %1470 = vrot.lane.b32.xlu0 %v460, 56
      %v1471 = vpop.permute.xlu0 %1470
      %1472 = vrot.lane.b32.xlu0 %v468, 56
      %v1473 = vpop.permute.xlu0 %1472
      %1474 = vrot.lane.b32.xlu0 %v476, 56
      %v1475 = vpop.permute.xlu0 %1474
      %1476 = vrot.lane.b32.xlu0 %v484, 56
      %v1477 = vpop.permute.xlu0 %1476
      %1478 = vrot.lane.b32.xlu0 %v492, 56
      %v1479 = vpop.permute.xlu0 %1478
      %1480 = vrot.lane.b32.xlu0 %v500, 56
      %v1481 = vpop.permute.xlu0 %1480
      %1482 = vrot.lane.b32.xlu0 %v508, 56
      %v1483 = vpop.permute.xlu0 %1482
      %1484 = vrot.lane.b32.xlu0 %v516, 56
      %v1485 = vpop.permute.xlu0 %1484
      %1486 = vrot.lane.b32.xlu0 %v524, 56
      %v1487 = vpop.permute.xlu0 %1486
      %1488 = vrot.lane.b32.xlu0 %v532, 56
      %v1489 = vpop.permute.xlu0 %1488
      %1490 = vrot.lane.b32.xlu0 %v540, 56
      %v1491 = vpop.permute.xlu0 %1490
      %1492 = vrot.lane.b32.xlu0 %v548, 56
      %v1493 = vpop.permute.xlu0 %1492
      %1494 = vrot.lane.b32.xlu0 %v556, 56
      %v1495 = vpop.permute.xlu0 %1494
      %1496 = vrot.lane.b32.xlu0 %v564, 56
      %v1497 = vpop.permute.xlu0 %1496
      %1498 = vrot.lane.b32.xlu0 %v572, 56
      %v1499 = vpop.permute.xlu0 %1498
      %1500 = vrot.lane.b32.xlu0 %v580, 56
      %v1501 = vpop.permute.xlu0 %1500
      %1502 = vrot.lane.b32.xlu0 %v588, 56
      %v1503 = vpop.permute.xlu0 %1502
      %1504 = vrot.lane.b32.xlu0 %v596, 56
      %v1505 = vpop.permute.xlu0 %1504
      %1506 = vrot.lane.b32.xlu0 %v604, 56
      %v1507 = vpop.permute.xlu0 %1506
      %1508 = vrot.lane.b32.xlu0 %v612, 56
      %v1509 = vpop.permute.xlu0 %1508
      %1510 = vrot.lane.b32.xlu0 %v620, 56
      %v1511 = vpop.permute.xlu0 %1510
      %1512 = vrot.lane.b32.xlu0 %v628, 56
      %v1513 = vpop.permute.xlu0 %1512
      %1514 = vrot.lane.b32.xlu0 %v636, 56
      %v1515 = vpop.permute.xlu0 %1514
      %1516 = vrot.lane.b32.xlu0 %v644, 56
      %v1517 = vpop.permute.xlu0 %1516
      %1518 = vrot.lane.b32.xlu0 %v1441, 56
      %v1519 = vpop.permute.xlu0 %1518
      %1520 = vrot.lane.b32.xlu0 %v1449, 56
      %v1521 = vpop.permute.xlu0 %1520
      %1522 = vrot.lane.b32.xlu0 %v1457, 56
      %v1523 = vpop.permute.xlu0 %1522
      %1524 = vrot.lane.b32.xlu0 %v1465, 56
      %v1525 = vpop.permute.xlu0 %1524
      %v1527 = vunpack.c.l.b16 %v254
      %v1528 = vpack.c.b16 %v322, %v1527
      %v1529 = vrot.slane %v1528, 1
      %v1530 = vsel %vm716, %v1529, %v724
      %v1531 = vrot.slane %v1371, 1
      %v1532 = vsel %vm716, %v774, %v1531
      %v1533 = vrot.slane %v1372, 1
      %v1534 = vsel %vm716, %v1531, %v1533
      %v1535 = vrot.slane %v1373, 1
      %v1536 = vsel %vm716, %v1533, %v1535
      %v1537 = vrot.slane %v1436, 1
      %v1538 = vsel %vm716, %v1535, %v1537
      %1539 = vrot.lane.b32.xlu0 %v1530, 64
      %v1540 = vpop.permute.xlu0 %1539
      %1541 = vrot.lane.b32.xlu0 %v727, 64
      %v1542 = vpop.permute.xlu0 %1541
      %1543 = vrot.lane.b32.xlu0 %v729, 64
      %v1544 = vpop.permute.xlu0 %1543
      %1545 = vrot.lane.b32.xlu0 %v731, 64
      %v1546 = vpop.permute.xlu0 %1545
      %1547 = vrot.lane.b32.xlu0 %v733, 64
      %v1548 = vpop.permute.xlu0 %1547
      %1549 = vrot.lane.b32.xlu0 %v735, 64
      %v1550 = vpop.permute.xlu0 %1549
      %1551 = vrot.lane.b32.xlu0 %v737, 64
      %v1552 = vpop.permute.xlu0 %1551
      %1553 = vrot.lane.b32.xlu0 %v739, 64
      %v1554 = vpop.permute.xlu0 %1553
      %1555 = vrot.lane.b32.xlu0 %v741, 64
      %v1556 = vpop.permute.xlu0 %1555
      %1557 = vrot.lane.b32.xlu0 %v743, 64
      %v1558 = vpop.permute.xlu0 %1557
      %1559 = vrot.lane.b32.xlu0 %v745, 64
      %v1560 = vpop.permute.xlu0 %1559
      %1561 = vrot.lane.b32.xlu0 %v747, 64
      %v1562 = vpop.permute.xlu0 %1561
      %1563 = vrot.lane.b32.xlu0 %v749, 64
      %v1564 = vpop.permute.xlu0 %1563
      %1565 = vrot.lane.b32.xlu0 %v751, 64
      %v1566 = vpop.permute.xlu0 %1565
      %1567 = vrot.lane.b32.xlu0 %v753, 64
      %v1568 = vpop.permute.xlu0 %1567
      %1569 = vrot.lane.b32.xlu0 %v755, 64
      %v1570 = vpop.permute.xlu0 %1569
      %1571 = vrot.lane.b32.xlu0 %v757, 64
      %v1572 = vpop.permute.xlu0 %1571
      %1573 = vrot.lane.b32.xlu0 %v759, 64
      %v1574 = vpop.permute.xlu0 %1573
      %1575 = vrot.lane.b32.xlu0 %v761, 64
      %v1576 = vpop.permute.xlu0 %1575
      %1577 = vrot.lane.b32.xlu0 %v763, 64
      %v1578 = vpop.permute.xlu0 %1577
      %1579 = vrot.lane.b32.xlu0 %v765, 64
      %v1580 = vpop.permute.xlu0 %1579
      %1581 = vrot.lane.b32.xlu0 %v767, 64
      %v1582 = vpop.permute.xlu0 %1581
      %1583 = vrot.lane.b32.xlu0 %v769, 64
      %v1584 = vpop.permute.xlu0 %1583
      %1585 = vrot.lane.b32.xlu0 %v771, 64
      %v1586 = vpop.permute.xlu0 %1585
      %1587 = vrot.lane.b32.xlu0 %v773, 64
      %v1588 = vpop.permute.xlu0 %1587
      %1589 = vrot.lane.b32.xlu0 %v775, 64
      %v1590 = vpop.permute.xlu0 %1589
      %1591 = vrot.lane.b32.xlu0 %v1532, 64
      %v1592 = vpop.permute.xlu0 %1591
      %1593 = vrot.lane.b32.xlu0 %v1534, 64
      %v1594 = vpop.permute.xlu0 %1593
      %1595 = vrot.lane.b32.xlu0 %v1536, 64
      %v1596 = vpop.permute.xlu0 %1595
      %1597 = vrot.lane.b32.xlu0 %v1538, 64
      %v1598 = vpop.permute.xlu0 %1597
      %vm1599 = vcmask 64512
      %v1601 = vsel %vm1599, %v375, %v654
      %v1603 = vsel %vm1599, %v376, %v656
      %v1605 = vsel %vm1599, %v377, %v658
      %v1607 = vsel %vm1599, %v378, %v660
      %v1609 = vsel %vm1599, %v379, %v662
      %v1611 = vsel %vm1599, %v380, %v664
      %v1613 = vsel %vm1599, %v381, %v666
      %v1615 = vsel %vm1599, %v382, %v668
      %v1617 = vsel %vm1599, %v383, %v670
      %v1619 = vsel %vm1599, %v384, %v672
      %v1621 = vsel %vm1599, %v385, %v674
      %v1623 = vsel %vm1599, %v386, %v676
      %v1625 = vsel %vm1599, %v387, %v678
      %v1627 = vsel %vm1599, %v388, %v680
      %v1629 = vsel %vm1599, %v389, %v682
      %v1631 = vsel %vm1599, %v390, %v684
      %v1633 = vsel %vm1599, %v391, %v686
      %v1635 = vsel %vm1599, %v392, %v688
      %v1637 = vsel %vm1599, %v393, %v690
      %v1639 = vsel %vm1599, %v394, %v692
      %v1641 = vsel %vm1599, %v395, %v694
      %v1643 = vsel %vm1599, %v396, %v696
      %v1645 = vsel %vm1599, %v397, %v698
      %v1647 = vsel %vm1599, %v398, %v700
      %v1649 = vsel %vm1599, %v399, %v702
      %v1651 = vsel %vm1599, %v400, %v704
      %v1653 = vsel %vm1599, %v401, %v706
      %v1655 = vsel %vm1599, %v402, %v708
      %v1657 = vsel %vm1599, %v403, %v710
      %v1659 = vsel %vm1599, %v404, %v712
      %vm1660 = vcmask 130048
      %v1662 = vsel %vm1660, %v1601, %v779
      %v1664 = vsel %vm1660, %v1603, %v781
      %v1666 = vsel %vm1660, %v1605, %v783
      %v1668 = vsel %vm1660, %v1607, %v785
      %v1670 = vsel %vm1660, %v1609, %v787
      %v1672 = vsel %vm1660, %v1611, %v789
      %v1674 = vsel %vm1660, %v1613, %v791
      %v1676 = vsel %vm1660, %v1615, %v793
      %v1678 = vsel %vm1660, %v1617, %v795
      %v1680 = vsel %vm1660, %v1619, %v797
      %v1682 = vsel %vm1660, %v1621, %v799
      %v1684 = vsel %vm1660, %v1623, %v801
      %v1686 = vsel %vm1660, %v1625, %v803
      %v1688 = vsel %vm1660, %v1627, %v805
      %v1690 = vsel %vm1660, %v1629, %v807
      %v1692 = vsel %vm1660, %v1631, %v809
      %v1694 = vsel %vm1660, %v1633, %v811
      %v1696 = vsel %vm1660, %v1635, %v813
      %v1698 = vsel %vm1660, %v1637, %v815
      %v1700 = vsel %vm1660, %v1639, %v817
      %v1702 = vsel %vm1660, %v1641, %v819
      %v1704 = vsel %vm1660, %v1643, %v821
      %v1706 = vsel %vm1660, %v1645, %v823
      %v1708 = vsel %vm1660, %v1647, %v825
      %v1710 = vsel %vm1660, %v1649, %v827
      %v1712 = vsel %vm1660, %v1651, %v829
      %v1714 = vsel %vm1660, %v1653, %v831
      %v1716 = vsel %vm1660, %v1655, %v833
      %v1718 = vsel %vm1660, %v1657, %v835
      %v1720 = vsel %vm1660, %v1659, %v837
      %vm1721 = vcmask 195584
      %v1723 = vsel %vm1721, %v1662, %v875
      %v1725 = vsel %vm1721, %v1664, %v877
      %v1727 = vsel %vm1721, %v1666, %v879
      %v1729 = vsel %vm1721, %v1668, %v881
      %v1731 = vsel %vm1721, %v1670, %v883
      %v1733 = vsel %vm1721, %v1672, %v885
      %v1735 = vsel %vm1721, %v1674, %v887
      %v1737 = vsel %vm1721, %v1676, %v889
      %v1739 = vsel %vm1721, %v1678, %v891
      %v1741 = vsel %vm1721, %v1680, %v893
      %v1743 = vsel %vm1721, %v1682, %v895
      %v1745 = vsel %vm1721, %v1684, %v897
      %v1747 = vsel %vm1721, %v1686, %v899
      %v1749 = vsel %vm1721, %v1688, %v901
      %v1751 = vsel %vm1721, %v1690, %v903
      %v1753 = vsel %vm1721, %v1692, %v905
      %v1755 = vsel %vm1721, %v1694, %v907
      %v1757 = vsel %vm1721, %v1696, %v909
      %v1759 = vsel %vm1721, %v1698, %v911
      %v1761 = vsel %vm1721, %v1700, %v913
      %v1763 = vsel %vm1721, %v1702, %v915
      %v1765 = vsel %vm1721, %v1704, %v917
      %v1767 = vsel %vm1721, %v1706, %v919
      %v1769 = vsel %vm1721, %v1708, %v921
      %v1771 = vsel %vm1721, %v1710, %v923
      %v1773 = vsel %vm1721, %v1712, %v925
      %v1775 = vsel %vm1721, %v1714, %v927
      %v1777 = vsel %vm1721, %v1716, %v929
      %v1779 = vsel %vm1721, %v1718, %v931
      %v1781 = vsel %vm1721, %v1720, %v933
      %vm1782 = vcmask 261120
      %v1784 = vsel %vm1782, %v1723, %v1182
      %v1786 = vsel %vm1782, %v1725, %v1184
      %v1788 = vsel %vm1782, %v1727, %v1186
      %v1790 = vsel %vm1782, %v1729, %v1188
      %v1792 = vsel %vm1782, %v1731, %v1190
      %v1794 = vsel %vm1782, %v1733, %v1192
      %v1796 = vsel %vm1782, %v1735, %v1194
      %v1798 = vsel %vm1782, %v1737, %v1196
      %v1800 = vsel %vm1782, %v1739, %v1198
      %v1802 = vsel %vm1782, %v1741, %v1200
      %v1804 = vsel %vm1782, %v1743, %v1202
      %v1806 = vsel %vm1782, %v1745, %v1204
      %v1808 = vsel %vm1782, %v1747, %v1206
      %v1810 = vsel %vm1782, %v1749, %v1208
      %v1812 = vsel %vm1782, %v1751, %v1210
      %v1814 = vsel %vm1782, %v1753, %v1212
      %v1816 = vsel %vm1782, %v1755, %v1214
      %v1818 = vsel %vm1782, %v1757, %v1216
      %v1820 = vsel %vm1782, %v1759, %v1218
      %v1822 = vsel %vm1782, %v1761, %v1220
      %v1824 = vsel %vm1782, %v1763, %v1222
      %v1826 = vsel %vm1782, %v1765, %v1224
      %v1828 = vsel %vm1782, %v1767, %v1226
      %v1830 = vsel %vm1782, %v1769, %v1228
      %v1832 = vsel %vm1782, %v1771, %v1230
      %v1834 = vsel %vm1782, %v1773, %v1232
      %v1836 = vsel %vm1782, %v1775, %v1234
      %v1838 = vsel %vm1782, %v1777, %v1236
      %v1840 = vsel %vm1782, %v1779, %v1238
      %v1842 = vsel %vm1782, %v1781, %v1240
      %vm1843 = vcmask 326656
      %v1845 = vsel %vm1843, %v1784, %v1306
      %v1847 = vsel %vm1843, %v1786, %v1308
      %v1849 = vsel %vm1843, %v1788, %v1310
      %v1851 = vsel %vm1843, %v1790, %v1312
      %v1853 = vsel %vm1843, %v1792, %v1314
      %v1855 = vsel %vm1843, %v1794, %v1316
      %v1857 = vsel %vm1843, %v1796, %v1318
      %v1859 = vsel %vm1843, %v1798, %v1320
      %v1861 = vsel %vm1843, %v1800, %v1322
      %v1863 = vsel %vm1843, %v1802, %v1324
      %v1865 = vsel %vm1843, %v1804, %v1326
      %v1867 = vsel %vm1843, %v1806, %v1328
      %v1869 = vsel %vm1843, %v1808, %v1330
      %v1871 = vsel %vm1843, %v1810, %v1332
      %v1873 = vsel %vm1843, %v1812, %v1334
      %v1875 = vsel %vm1843, %v1814, %v1336
      %v1877 = vsel %vm1843, %v1816, %v1338
      %v1879 = vsel %vm1843, %v1818, %v1340
      %v1881 = vsel %vm1843, %v1820, %v1342
      %v1883 = vsel %vm1843, %v1822, %v1344
      %v1885 = vsel %vm1843, %v1824, %v1346
      %v1887 = vsel %vm1843, %v1826, %v1348
      %v1889 = vsel %vm1843, %v1828, %v1350
      %v1891 = vsel %vm1843, %v1830, %v1352
      %v1893 = vsel %vm1843, %v1832, %v1354
      %v1895 = vsel %vm1843, %v1834, %v1356
      %v1897 = vsel %vm1843, %v1836, %v1358
      %v1899 = vsel %vm1843, %v1838, %v1360
      %v1901 = vsel %vm1843, %v1840, %v1362
      %v1903 = vsel %vm1843, %v1842, %v1364
      %vm1904 = vcmask 392192
      %v1906 = vsel %vm1904, %v1845, %v1375
      %v1908 = vsel %vm1904, %v1847, %v1377
      %v1910 = vsel %vm1904, %v1849, %v1379
      %v1912 = vsel %vm1904, %v1851, %v1381
      %v1914 = vsel %vm1904, %v1853, %v1383
      %v1916 = vsel %vm1904, %v1855, %v1385
      %v1918 = vsel %vm1904, %v1857, %v1387
      %v1920 = vsel %vm1904, %v1859, %v1389
      %v1922 = vsel %vm1904, %v1861, %v1391
      %v1924 = vsel %vm1904, %v1863, %v1393
      %v1926 = vsel %vm1904, %v1865, %v1395
      %v1928 = vsel %vm1904, %v1867, %v1397
      %v1930 = vsel %vm1904, %v1869, %v1399
      %v1932 = vsel %vm1904, %v1871, %v1401
      %v1934 = vsel %vm1904, %v1873, %v1403
      %v1936 = vsel %vm1904, %v1875, %v1405
      %v1938 = vsel %vm1904, %v1877, %v1407
      %v1940 = vsel %vm1904, %v1879, %v1409
      %v1942 = vsel %vm1904, %v1881, %v1411
      %v1944 = vsel %vm1904, %v1883, %v1413
      %v1946 = vsel %vm1904, %v1885, %v1415
      %v1948 = vsel %vm1904, %v1887, %v1417
      %v1950 = vsel %vm1904, %v1889, %v1419
      %v1952 = vsel %vm1904, %v1891, %v1421
      %v1954 = vsel %vm1904, %v1893, %v1423
      %v1956 = vsel %vm1904, %v1895, %v1425
      %v1958 = vsel %vm1904, %v1897, %v1427
      %v1960 = vsel %vm1904, %v1899, %v1429
      %v1962 = vsel %vm1904, %v1901, %v1431
      %v1964 = vsel %vm1904, %v1903, %v1433
      %vm1965 = vcmask 457728
      %v1967 = vsel %vm1965, %v1906, %v1467
      %v1969 = vsel %vm1965, %v1908, %v1469
      %v1971 = vsel %vm1965, %v1910, %v1471
      %v1973 = vsel %vm1965, %v1912, %v1473
      %v1975 = vsel %vm1965, %v1914, %v1475
      %v1977 = vsel %vm1965, %v1916, %v1477
      %v1979 = vsel %vm1965, %v1918, %v1479
      %v1981 = vsel %vm1965, %v1920, %v1481
      %v1983 = vsel %vm1965, %v1922, %v1483
      %v1985 = vsel %vm1965, %v1924, %v1485
      %v1987 = vsel %vm1965, %v1926, %v1487
      %v1989 = vsel %vm1965, %v1928, %v1489
      %v1991 = vsel %vm1965, %v1930, %v1491
      %v1993 = vsel %vm1965, %v1932, %v1493
      %v1995 = vsel %vm1965, %v1934, %v1495
      %v1997 = vsel %vm1965, %v1936, %v1497
      %v1999 = vsel %vm1965, %v1938, %v1499
      %v2001 = vsel %vm1965, %v1940, %v1501
      %v2003 = vsel %vm1965, %v1942, %v1503
      %v2005 = vsel %vm1965, %v1944, %v1505
      %v2007 = vsel %vm1965, %v1946, %v1507
      %v2009 = vsel %vm1965, %v1948, %v1509
      %v2011 = vsel %vm1965, %v1950, %v1511
      %v2013 = vsel %vm1965, %v1952, %v1513
      %v2015 = vsel %vm1965, %v1954, %v1515
      %v2017 = vsel %vm1965, %v1956, %v1517
      %v2019 = vsel %vm1965, %v1958, %v1519
      %v2021 = vsel %vm1965, %v1960, %v1521
      %v2023 = vsel %vm1965, %v1962, %v1523
      %v2025 = vsel %vm1965, %v1964, %v1525
      %vm2026 = vcmask 523264
      %v2028 = vsel %vm2026, %v1967, %v1540
      %v2030 = vsel %vm2026, %v1969, %v1542
      %v2032 = vsel %vm2026, %v1971, %v1544
      %v2034 = vsel %vm2026, %v1973, %v1546
      %v2036 = vsel %vm2026, %v1975, %v1548
      %v2038 = vsel %vm2026, %v1977, %v1550
      %v2040 = vsel %vm2026, %v1979, %v1552
      %v2042 = vsel %vm2026, %v1981, %v1554
      %v2044 = vsel %vm2026, %v1983, %v1556
      %v2046 = vsel %vm2026, %v1985, %v1558
      %v2048 = vsel %vm2026, %v1987, %v1560
      %v2050 = vsel %vm2026, %v1989, %v1562
      %v2052 = vsel %vm2026, %v1991, %v1564
      %v2054 = vsel %vm2026, %v1993, %v1566
      %v2056 = vsel %vm2026, %v1995, %v1568
      %v2058 = vsel %vm2026, %v1997, %v1570
      %v2060 = vsel %vm2026, %v1999, %v1572
      %v2062 = vsel %vm2026, %v2001, %v1574
      %v2064 = vsel %vm2026, %v2003, %v1576
      %v2066 = vsel %vm2026, %v2005, %v1578
      %v2068 = vsel %vm2026, %v2007, %v1580
      %v2070 = vsel %vm2026, %v2009, %v1582
      %v2072 = vsel %vm2026, %v2011, %v1584
      %v2074 = vsel %vm2026, %v2013, %v1586
      %v2076 = vsel %vm2026, %v2015, %v1588
      %v2078 = vsel %vm2026, %v2017, %v1590
      %v2080 = vsel %vm2026, %v2019, %v1592
      %v2082 = vsel %vm2026, %v2021, %v1594
      %v2084 = vsel %vm2026, %v2023, %v1596
      %v2086 = vsel %vm2026, %v2025, %v1598
      %v2087 = vld [vmem:[%s1] sm:$0xf]
      %v2088 = vld [vmem:[%s1 + $0x4] sm:$0xf]
      %v2089 = vld [vmem:[%s1 + $0x8] sm:$0xf]
      %v2090 = vld [vmem:[%s1 + $0xc] sm:$0xf]
      %v2091 = vld [vmem:[%s1 + $0x10] sm:$0xf]
      %v2092 = vld [vmem:[%s1 + $0x14] sm:$0xf]
      %v2093 = vld [vmem:[%s1 + $0x18] sm:$0xf]
      %v2094 = vld [vmem:[%s1 + $0x1c] sm:$0xf]
      %v2095 = vld [vmem:[%s1 + $0x20] sm:$0xf]
      %v2105 = vunpack.c.l.b16 %v2087
      %v2106 = vunpack.c.l.b16 %v2088
      %v2107 = vunpack.c.l.b16 %v2089
      %v2108 = vunpack.c.l.b16 %v2090
      %v2109 = vunpack.c.l.b16 %v2091
      %v2110 = vunpack.c.l.b16 %v2092
      %v2111 = vunpack.c.l.b16 %v2093
      %v2112 = vunpack.c.l.b16 %v2094
      %v2113 = vunpack.c.l.b16 %v2095
      %v2114 = vpack.c.b16 %v2106, %v2105
      %v2115 = vpack.c.b16 %v2108, %v2107
      %v2116 = vpack.c.b16 %v2110, %v2109
      %v2117 = vpack.c.b16 %v2112, %v2111
      %v2118 = vpack.c.b16 %v2113, %v2113
      %vm2123 = vcmask 588800
      %v2124 = vsel %vm2123, %v2028, 0
      %v2126 = vsel %vm2123, %v2030, 0
      %v2128 = vsel %vm2123, %v2032, 0
      %v2130 = vsel %vm2123, %v2034, 0
      %v2132 = vsel %vm2123, %v2036, 0
      %v2134 = vsel %vm2123, %v2038, 0
      %v2136 = vsel %vm2123, %v2040, 0
      %v2138 = vsel %vm2123, %v2042, 0
      %v2140 = vsel %vm2123, %v2044, 0
      %v2142 = vsel %vm2123, %v2046, 0
      %v2144 = vsel %vm2123, %v2048, 0
      %v2146 = vsel %vm2123, %v2050, 0
      %v2148 = vsel %vm2123, %v2052, 0
      %v2150 = vsel %vm2123, %v2054, 0
      %v2152 = vsel %vm2123, %v2056, 0
      %v2154 = vsel %vm2123, %v2058, 0
      %v2156 = vsel %vm2123, %v2060, 0
      %v2158 = vsel %vm2123, %v2062, 0
      %v2160 = vsel %vm2123, %v2064, 0
      %v2162 = vsel %vm2123, %v2066, 0
      %v2164 = vsel %vm2123, %v2068, 0
      %v2166 = vsel %vm2123, %v2070, 0
      %v2168 = vsel %vm2123, %v2072, 0
      %v2170 = vsel %vm2123, %v2074, 0
      %v2172 = vsel %vm2123, %v2076, 0
      %v2174 = vsel %vm2123, %v2078, 0
      %v2176 = vsel %vm2123, %v2080, 0
      %v2178 = vsel %vm2123, %v2082, 0
      %v2180 = vsel %vm2123, %v2084, 0
      %v2182 = vsel %vm2123, %v2086, 0
      %vm2184 = vcmask 1043456
      %v2186 = vsel %vm2184, %v2118, 0
      %2188 = vmatpush.bf16.msra.mxu0 0
      %2189 = vmatpush.bf16.msra.mxu0 0
      %2190 = vmatpush.bf16.msra.mxu0 0
      %2191 = vmatpush.bf16.msra.mxu0 %v2186
      %2192 = vmatpush.bf16.msra.mxu0 %v2117
      %2193 = vmatpush.bf16.msra.mxu0 %v2116
      %2194 = vmatpush.bf16.msra.mxu0 %v2115
      %2195 = vmatpush.bf16.msra.mxu0 %v2114
      %2196 = vmatmul.bf16.gmra.mxu0 %v2124
      %v2197 = vpop.f32.mrf.mxu0
      %v2198 = vadd.f32 0.0, %v2197
      %v2199 = vpop.f32.mrf.mxu0
      %v2200 = vadd.f32 0.0, %v2199
      %2201 = vmatmul.bf16.gmra.mxu0 %v2126
      %v2202 = vpop.f32.mrf.mxu0
      %v2203 = vadd.f32 0.0, %v2202
      %v2204 = vpop.f32.mrf.mxu0
      %v2205 = vadd.f32 0.0, %v2204
      %2206 = vmatmul.bf16.gmra.mxu0 %v2128
      %v2207 = vpop.f32.mrf.mxu0
      %v2208 = vadd.f32 0.0, %v2207
      %v2209 = vpop.f32.mrf.mxu0
      %v2210 = vadd.f32 0.0, %v2209
      %2211 = vmatmul.bf16.gmra.mxu0 %v2130
      %v2212 = vpop.f32.mrf.mxu0
      %v2213 = vadd.f32 0.0, %v2212
      %v2214 = vpop.f32.mrf.mxu0
      %v2215 = vadd.f32 0.0, %v2214
      %2216 = vmatmul.bf16.gmra.mxu0 %v2132
      %v2217 = vpop.f32.mrf.mxu0
      %v2218 = vadd.f32 0.0, %v2217
      %v2219 = vpop.f32.mrf.mxu0
      %v2220 = vadd.f32 0.0, %v2219
      %2221 = vmatmul.bf16.gmra.mxu0 %v2134
      %v2222 = vpop.f32.mrf.mxu0
      %v2223 = vadd.f32 0.0, %v2222
      %v2224 = vpop.f32.mrf.mxu0
      %v2225 = vadd.f32 0.0, %v2224
      %2226 = vmatmul.bf16.gmra.mxu0 %v2136
      %v2227 = vpop.f32.mrf.mxu0
      %v2228 = vadd.f32 0.0, %v2227
      %v2229 = vpop.f32.mrf.mxu0
      %v2230 = vadd.f32 0.0, %v2229
      %2231 = vmatmul.bf16.gmra.mxu0 %v2138
      %v2232 = vpop.f32.mrf.mxu0
      %v2233 = vadd.f32 0.0, %v2232
      %v2234 = vpop.f32.mrf.mxu0
      %v2235 = vadd.f32 0.0, %v2234
      %2236 = vmatmul.bf16.gmra.mxu0 %v2140
      %v2237 = vpop.f32.mrf.mxu0
      %v2238 = vadd.f32 0.0, %v2237
      %v2239 = vpop.f32.mrf.mxu0
      %v2240 = vadd.f32 0.0, %v2239
      %2241 = vmatmul.bf16.gmra.mxu0 %v2142
      %v2242 = vpop.f32.mrf.mxu0
      %v2243 = vadd.f32 0.0, %v2242
      %v2244 = vpop.f32.mrf.mxu0
      %v2245 = vadd.f32 0.0, %v2244
      %2246 = vmatmul.bf16.gmra.mxu0 %v2144
      %v2247 = vpop.f32.mrf.mxu0
      %v2248 = vadd.f32 0.0, %v2247
      %v2249 = vpop.f32.mrf.mxu0
      %v2250 = vadd.f32 0.0, %v2249
      %2251 = vmatmul.bf16.gmra.mxu0 %v2146
      %v2252 = vpop.f32.mrf.mxu0
      %v2253 = vadd.f32 0.0, %v2252
      %v2254 = vpop.f32.mrf.mxu0
      %v2255 = vadd.f32 0.0, %v2254
      %2256 = vmatmul.bf16.gmra.mxu0 %v2148
      %v2257 = vpop.f32.mrf.mxu0
      %v2258 = vadd.f32 0.0, %v2257
      %v2259 = vpop.f32.mrf.mxu0
      %v2260 = vadd.f32 0.0, %v2259
      %2261 = vmatmul.bf16.gmra.mxu0 %v2150
      %v2262 = vpop.f32.mrf.mxu0
      %v2263 = vadd.f32 0.0, %v2262
      %v2264 = vpop.f32.mrf.mxu0
      %v2265 = vadd.f32 0.0, %v2264
      %2266 = vmatmul.bf16.gmra.mxu0 %v2152
      %v2267 = vpop.f32.mrf.mxu0
      %v2268 = vadd.f32 0.0, %v2267
      %v2269 = vpop.f32.mrf.mxu0
      %v2270 = vadd.f32 0.0, %v2269
      %2271 = vmatmul.bf16.gmra.mxu0 %v2154
      %v2272 = vpop.f32.mrf.mxu0
      %v2273 = vadd.f32 0.0, %v2272
      %v2274 = vpop.f32.mrf.mxu0
      %v2275 = vadd.f32 0.0, %v2274
      %2276 = vmatmul.bf16.gmra.mxu0 %v2156
      %v2277 = vpop.f32.mrf.mxu0
      %v2278 = vadd.f32 0.0, %v2277
      %v2279 = vpop.f32.mrf.mxu0
      %v2280 = vadd.f32 0.0, %v2279
      %2281 = vmatmul.bf16.gmra.mxu0 %v2158
      %v2282 = vpop.f32.mrf.mxu0
      %v2283 = vadd.f32 0.0, %v2282
      %v2284 = vpop.f32.mrf.mxu0
      %v2285 = vadd.f32 0.0, %v2284
      %2286 = vmatmul.bf16.gmra.mxu0 %v2160
      %v2287 = vpop.f32.mrf.mxu0
      %v2288 = vadd.f32 0.0, %v2287
      %v2289 = vpop.f32.mrf.mxu0
      %v2290 = vadd.f32 0.0, %v2289
      %2291 = vmatmul.bf16.gmra.mxu0 %v2162
      %v2292 = vpop.f32.mrf.mxu0
      %v2293 = vadd.f32 0.0, %v2292
      %v2294 = vpop.f32.mrf.mxu0
      %v2295 = vadd.f32 0.0, %v2294
      %2296 = vmatmul.bf16.gmra.mxu0 %v2164
      %v2297 = vpop.f32.mrf.mxu0
      %v2298 = vadd.f32 0.0, %v2297
      %v2299 = vpop.f32.mrf.mxu0
      %v2300 = vadd.f32 0.0, %v2299
      %2301 = vmatmul.bf16.gmra.mxu0 %v2166
      %v2302 = vpop.f32.mrf.mxu0
      %v2303 = vadd.f32 0.0, %v2302
      %v2304 = vpop.f32.mrf.mxu0
      %v2305 = vadd.f32 0.0, %v2304
      %2306 = vmatmul.bf16.gmra.mxu0 %v2168
      %v2307 = vpop.f32.mrf.mxu0
      %v2308 = vadd.f32 0.0, %v2307
      %v2309 = vpop.f32.mrf.mxu0
      %v2310 = vadd.f32 0.0, %v2309
      %2311 = vmatmul.bf16.gmra.mxu0 %v2170
      %v2312 = vpop.f32.mrf.mxu0
      %v2313 = vadd.f32 0.0, %v2312
      %v2314 = vpop.f32.mrf.mxu0
      %v2315 = vadd.f32 0.0, %v2314
      %2316 = vmatmul.bf16.gmra.mxu0 %v2172
      %v2317 = vpop.f32.mrf.mxu0
      %v2318 = vadd.f32 0.0, %v2317
      %v2319 = vpop.f32.mrf.mxu0
      %v2320 = vadd.f32 0.0, %v2319
      %2321 = vmatmul.bf16.gmra.mxu0 %v2174
      %v2322 = vpop.f32.mrf.mxu0
      %v2323 = vadd.f32 0.0, %v2322
      %v2324 = vpop.f32.mrf.mxu0
      %v2325 = vadd.f32 0.0, %v2324
      %2326 = vmatmul.bf16.gmra.mxu0 %v2176
      %v2327 = vpop.f32.mrf.mxu0
      %v2328 = vadd.f32 0.0, %v2327
      %v2329 = vpop.f32.mrf.mxu0
      %v2330 = vadd.f32 0.0, %v2329
      %2331 = vmatmul.bf16.gmra.mxu0 %v2178
      %v2332 = vpop.f32.mrf.mxu0
      %v2333 = vadd.f32 0.0, %v2332
      %v2334 = vpop.f32.mrf.mxu0
      %v2335 = vadd.f32 0.0, %v2334
      %2336 = vmatmul.bf16.gmra.mxu0 %v2180
      %v2337 = vpop.f32.mrf.mxu0
      %v2338 = vadd.f32 0.0, %v2337
      %v2339 = vpop.f32.mrf.mxu0
      %v2340 = vadd.f32 0.0, %v2339
      %2341 = vmatmul.bf16.gmra.mxu0 %v2182
      %v2342 = vpop.f32.mrf.mxu0
      %v2343 = vadd.f32 0.0, %v2342
      %v2344 = vpop.f32.mrf.mxu0
      %v2345 = vadd.f32 0.0, %v2344
      %2346 = vdwg.mxu0
      %v2347 = vsel %vm1599, %v2198, 0.0
      %v2348 = vsel %vm1599, %v2200, 0.0
      %v2349 = vadd.f32 %v2347, %v2348
      %v2350 = vsel %vm1599, %v2203, 0.0
      %v2351 = vadd.f32 %v2349, %v2350
      %v2352 = vsel %vm1599, %v2205, 0.0
      %v2353 = vadd.f32 %v2351, %v2352
      %v2354 = vsel %vm1599, %v2208, 0.0
      %v2355 = vadd.f32 %v2353, %v2354
      %v2356 = vsel %vm1599, %v2210, 0.0
      %v2357 = vadd.f32 %v2355, %v2356
      %v2358 = vsel %vm1599, %v2213, 0.0
      %v2359 = vadd.f32 %v2357, %v2358
      %v2360 = vsel %vm1599, %v2215, 0.0
      %v2361 = vadd.f32 %v2359, %v2360
      %v2362 = vsel %vm1599, %v2218, 0.0
      %v2363 = vadd.f32 %v2361, %v2362
      %v2364 = vsel %vm1599, %v2220, 0.0
      %v2365 = vadd.f32 %v2363, %v2364
      %v2366 = vsel %vm1599, %v2223, 0.0
      %v2367 = vadd.f32 %v2365, %v2366
      %v2368 = vsel %vm1599, %v2225, 0.0
      %v2369 = vadd.f32 %v2367, %v2368
      %v2370 = vsel %vm1599, %v2228, 0.0
      %v2371 = vadd.f32 %v2369, %v2370
      %v2372 = vsel %vm1599, %v2230, 0.0
      %v2373 = vadd.f32 %v2371, %v2372
      %v2374 = vsel %vm1599, %v2233, 0.0
      %v2375 = vadd.f32 %v2373, %v2374
      %v2376 = vsel %vm1599, %v2235, 0.0
      %v2377 = vadd.f32 %v2375, %v2376
      %v2378 = vsel %vm1599, %v2238, 0.0
      %v2379 = vadd.f32 %v2377, %v2378
      %v2380 = vsel %vm1599, %v2240, 0.0
      %v2381 = vadd.f32 %v2379, %v2380
      %v2382 = vsel %vm1599, %v2243, 0.0
      %v2383 = vadd.f32 %v2381, %v2382
      %v2384 = vsel %vm1599, %v2245, 0.0
      %v2385 = vadd.f32 %v2383, %v2384
      %v2386 = vsel %vm1599, %v2248, 0.0
      %v2387 = vadd.f32 %v2385, %v2386
      %v2388 = vsel %vm1599, %v2250, 0.0
      %v2389 = vadd.f32 %v2387, %v2388
      %v2390 = vsel %vm1599, %v2253, 0.0
      %v2391 = vadd.f32 %v2389, %v2390
      %v2392 = vsel %vm1599, %v2255, 0.0
      %v2393 = vadd.f32 %v2391, %v2392
      %v2394 = vsel %vm1599, %v2258, 0.0
      %v2395 = vadd.f32 %v2393, %v2394
      %v2396 = vsel %vm1599, %v2260, 0.0
      %v2397 = vadd.f32 %v2395, %v2396
      %v2398 = vsel %vm1599, %v2263, 0.0
      %v2399 = vadd.f32 %v2397, %v2398
      %v2400 = vsel %vm1599, %v2265, 0.0
      %v2401 = vadd.f32 %v2399, %v2400
      %v2402 = vsel %vm1599, %v2268, 0.0
      %v2403 = vadd.f32 %v2401, %v2402
      %v2404 = vsel %vm1599, %v2270, 0.0
      %v2405 = vadd.f32 %v2403, %v2404
      %v2406 = vsel %vm1599, %v2273, 0.0
      %v2407 = vadd.f32 %v2405, %v2406
      %v2408 = vsel %vm1599, %v2275, 0.0
      %v2409 = vadd.f32 %v2407, %v2408
      %v2410 = vsel %vm1599, %v2278, 0.0
      %v2411 = vadd.f32 %v2409, %v2410
      %v2412 = vsel %vm1599, %v2280, 0.0
      %v2413 = vadd.f32 %v2411, %v2412
      %v2414 = vsel %vm1599, %v2283, 0.0
      %v2415 = vadd.f32 %v2413, %v2414
      %v2416 = vsel %vm1599, %v2285, 0.0
      %v2417 = vadd.f32 %v2415, %v2416
      %v2418 = vsel %vm1599, %v2288, 0.0
      %v2419 = vadd.f32 %v2417, %v2418
      %v2420 = vsel %vm1599, %v2290, 0.0
      %v2421 = vadd.f32 %v2419, %v2420
      %v2422 = vsel %vm1599, %v2293, 0.0
      %v2423 = vadd.f32 %v2421, %v2422
      %v2424 = vsel %vm1599, %v2295, 0.0
      %v2425 = vadd.f32 %v2423, %v2424
      %v2426 = vsel %vm1599, %v2298, 0.0
      %v2427 = vadd.f32 %v2425, %v2426
      %v2428 = vsel %vm1599, %v2300, 0.0
      %v2429 = vadd.f32 %v2427, %v2428
      %v2430 = vsel %vm1599, %v2303, 0.0
      %v2431 = vadd.f32 %v2429, %v2430
      %v2432 = vsel %vm1599, %v2305, 0.0
      %v2433 = vadd.f32 %v2431, %v2432
      %v2434 = vsel %vm1599, %v2308, 0.0
      %v2435 = vadd.f32 %v2433, %v2434
      %v2436 = vsel %vm1599, %v2310, 0.0
      %v2437 = vadd.f32 %v2435, %v2436
      %v2438 = vsel %vm1599, %v2313, 0.0
      %v2439 = vadd.f32 %v2437, %v2438
      %v2440 = vsel %vm1599, %v2315, 0.0
      %v2441 = vadd.f32 %v2439, %v2440
      %v2442 = vsel %vm1599, %v2318, 0.0
      %v2443 = vadd.f32 %v2441, %v2442
      %v2444 = vsel %vm1599, %v2320, 0.0
      %v2445 = vadd.f32 %v2443, %v2444
      %v2446 = vsel %vm1599, %v2323, 0.0
      %v2447 = vadd.f32 %v2445, %v2446
      %v2448 = vsel %vm1599, %v2325, 0.0
      %v2449 = vadd.f32 %v2447, %v2448
      %v2450 = vsel %vm1599, %v2328, 0.0
      %v2451 = vadd.f32 %v2449, %v2450
      %v2452 = vsel %vm1599, %v2330, 0.0
      %v2453 = vadd.f32 %v2451, %v2452
      %v2454 = vsel %vm1599, %v2333, 0.0
      %v2455 = vadd.f32 %v2453, %v2454
      %v2456 = vsel %vm1599, %v2335, 0.0
      %v2457 = vadd.f32 %v2455, %v2456
      %v2458 = vsel %vm1599, %v2338, 0.0
      %v2459 = vadd.f32 %v2457, %v2458
      %v2460 = vsel %vm1599, %v2340, 0.0
      %v2461 = vadd.f32 %v2459, %v2460
      %v2462 = vsel %vm1599, %v2343, 0.0
      %v2463 = vadd.f32 %v2461, %v2462
      %v2464 = vsel %vm1599, %v2345, 0.0
      %v2465 = vadd.f32 %v2463, %v2464
      %v2466 = vrot.slane %v2465, 4
      %v2467 = vadd.f32 %v2465, %v2466
      %v2468 = vrot.slane %v2467, 2
      %v2469 = vadd.f32 %v2467, %v2468
      %v2470 = vrot.slane %v2469, 1
      %v2471 = vadd.f32 %v2469, %v2470
      %v2472 = vmul.f32 %v2198, %v2198
      %v2473 = vmul.f32 %v2200, %v2200
      %v2474 = vmul.f32 %v2203, %v2203
      %v2475 = vmul.f32 %v2205, %v2205
      %v2476 = vmul.f32 %v2208, %v2208
      %v2477 = vmul.f32 %v2210, %v2210
      %v2478 = vmul.f32 %v2213, %v2213
      %v2479 = vmul.f32 %v2215, %v2215
      %v2480 = vmul.f32 %v2218, %v2218
      %v2481 = vmul.f32 %v2220, %v2220
      %v2482 = vmul.f32 %v2223, %v2223
      %v2483 = vmul.f32 %v2225, %v2225
      %v2484 = vmul.f32 %v2228, %v2228
      %v2485 = vmul.f32 %v2230, %v2230
      %v2486 = vmul.f32 %v2233, %v2233
      %v2487 = vmul.f32 %v2235, %v2235
      %v2488 = vmul.f32 %v2238, %v2238
      %v2489 = vmul.f32 %v2240, %v2240
      %v2490 = vmul.f32 %v2243, %v2243
      %v2491 = vmul.f32 %v2245, %v2245
      %v2492 = vmul.f32 %v2248, %v2248
      %v2493 = vmul.f32 %v2250, %v2250
      %v2494 = vmul.f32 %v2253, %v2253
      %v2495 = vmul.f32 %v2255, %v2255
      %v2496 = vmul.f32 %v2258, %v2258
      %v2497 = vmul.f32 %v2260, %v2260
      %v2498 = vmul.f32 %v2263, %v2263
      %v2499 = vmul.f32 %v2265, %v2265
      %v2500 = vmul.f32 %v2268, %v2268
      %v2501 = vmul.f32 %v2270, %v2270
      %v2502 = vmul.f32 %v2273, %v2273
      %v2503 = vmul.f32 %v2275, %v2275
      %v2504 = vmul.f32 %v2278, %v2278
      %v2505 = vmul.f32 %v2280, %v2280
      %v2506 = vmul.f32 %v2283, %v2283
      %v2507 = vmul.f32 %v2285, %v2285
      %v2508 = vmul.f32 %v2288, %v2288
      %v2509 = vmul.f32 %v2290, %v2290
      %v2510 = vmul.f32 %v2293, %v2293
      %v2511 = vmul.f32 %v2295, %v2295
      %v2512 = vmul.f32 %v2298, %v2298
      %v2513 = vmul.f32 %v2300, %v2300
      %v2514 = vmul.f32 %v2303, %v2303
      %v2515 = vmul.f32 %v2305, %v2305
      %v2516 = vmul.f32 %v2308, %v2308
      %v2517 = vmul.f32 %v2310, %v2310
      %v2518 = vmul.f32 %v2313, %v2313
      %v2519 = vmul.f32 %v2315, %v2315
      %v2520 = vmul.f32 %v2318, %v2318
      %v2521 = vmul.f32 %v2320, %v2320
      %v2522 = vmul.f32 %v2323, %v2323
      %v2523 = vmul.f32 %v2325, %v2325
      %v2524 = vmul.f32 %v2328, %v2328
      %v2525 = vmul.f32 %v2330, %v2330
      %v2526 = vmul.f32 %v2333, %v2333
      %v2527 = vmul.f32 %v2335, %v2335
      %v2528 = vmul.f32 %v2338, %v2338
      %v2529 = vmul.f32 %v2340, %v2340
      %v2530 = vmul.f32 %v2343, %v2343
      %v2531 = vmul.f32 %v2345, %v2345
      %v2532 = vsel %vm1599, %v2472, 0.0
      %v2533 = vsel %vm1599, %v2473, 0.0
      %v2534 = vadd.f32 %v2532, %v2533
      %v2535 = vsel %vm1599, %v2474, 0.0
      %v2536 = vadd.f32 %v2534, %v2535
      %v2537 = vsel %vm1599, %v2475, 0.0
      %v2538 = vadd.f32 %v2536, %v2537
      %v2539 = vsel %vm1599, %v2476, 0.0
      %v2540 = vadd.f32 %v2538, %v2539
      %v2541 = vsel %vm1599, %v2477, 0.0
      %v2542 = vadd.f32 %v2540, %v2541
      %v2543 = vsel %vm1599, %v2478, 0.0
      %v2544 = vadd.f32 %v2542, %v2543
      %v2545 = vsel %vm1599, %v2479, 0.0
      %v2546 = vadd.f32 %v2544, %v2545
      %v2547 = vsel %vm1599, %v2480, 0.0
      %v2548 = vadd.f32 %v2546, %v2547
      %v2549 = vsel %vm1599, %v2481, 0.0
      %v2550 = vadd.f32 %v2548, %v2549
      %v2551 = vsel %vm1599, %v2482, 0.0
      %v2552 = vadd.f32 %v2550, %v2551
      %v2553 = vsel %vm1599, %v2483, 0.0
      %v2554 = vadd.f32 %v2552, %v2553
      %v2555 = vsel %vm1599, %v2484, 0.0
      %v2556 = vadd.f32 %v2554, %v2555
      %v2557 = vsel %vm1599, %v2485, 0.0
      %v2558 = vadd.f32 %v2556, %v2557
      %v2559 = vsel %vm1599, %v2486, 0.0
      %v2560 = vadd.f32 %v2558, %v2559
      %v2561 = vsel %vm1599, %v2487, 0.0
      %v2562 = vadd.f32 %v2560, %v2561
      %v2563 = vsel %vm1599, %v2488, 0.0
      %v2564 = vadd.f32 %v2562, %v2563
      %v2565 = vsel %vm1599, %v2489, 0.0
      %v2566 = vadd.f32 %v2564, %v2565
      %v2567 = vsel %vm1599, %v2490, 0.0
      %v2568 = vadd.f32 %v2566, %v2567
      %v2569 = vsel %vm1599, %v2491, 0.0
      %v2570 = vadd.f32 %v2568, %v2569
      %v2571 = vsel %vm1599, %v2492, 0.0
      %v2572 = vadd.f32 %v2570, %v2571
      %v2573 = vsel %vm1599, %v2493, 0.0
      %v2574 = vadd.f32 %v2572, %v2573
      %v2575 = vsel %vm1599, %v2494, 0.0
      %v2576 = vadd.f32 %v2574, %v2575
      %v2577 = vsel %vm1599, %v2495, 0.0
      %v2578 = vadd.f32 %v2576, %v2577
      %v2579 = vsel %vm1599, %v2496, 0.0
      %v2580 = vadd.f32 %v2578, %v2579
      %v2581 = vsel %vm1599, %v2497, 0.0
      %v2582 = vadd.f32 %v2580, %v2581
      %v2583 = vsel %vm1599, %v2498, 0.0
      %v2584 = vadd.f32 %v2582, %v2583
      %v2585 = vsel %vm1599, %v2499, 0.0
      %v2586 = vadd.f32 %v2584, %v2585
      %v2587 = vsel %vm1599, %v2500, 0.0
      %v2588 = vadd.f32 %v2586, %v2587
      %v2589 = vsel %vm1599, %v2501, 0.0
      %v2590 = vadd.f32 %v2588, %v2589
      %v2591 = vsel %vm1599, %v2502, 0.0
      %v2592 = vadd.f32 %v2590, %v2591
      %v2593 = vsel %vm1599, %v2503, 0.0
      %v2594 = vadd.f32 %v2592, %v2593
      %v2595 = vsel %vm1599, %v2504, 0.0
      %v2596 = vadd.f32 %v2594, %v2595
      %v2597 = vsel %vm1599, %v2505, 0.0
      %v2598 = vadd.f32 %v2596, %v2597
      %v2599 = vsel %vm1599, %v2506, 0.0
      %v2600 = vadd.f32 %v2598, %v2599
      %v2601 = vsel %vm1599, %v2507, 0.0
      %v2602 = vadd.f32 %v2600, %v2601
      %v2603 = vsel %vm1599, %v2508, 0.0
      %v2604 = vadd.f32 %v2602, %v2603
      %v2605 = vsel %vm1599, %v2509, 0.0
      %v2606 = vadd.f32 %v2604, %v2605
      %v2607 = vsel %vm1599, %v2510, 0.0
      %v2608 = vadd.f32 %v2606, %v2607
      %v2609 = vsel %vm1599, %v2511, 0.0
      %v2610 = vadd.f32 %v2608, %v2609
      %v2611 = vsel %vm1599, %v2512, 0.0
      %v2612 = vadd.f32 %v2610, %v2611
      %v2613 = vsel %vm1599, %v2513, 0.0
      %v2614 = vadd.f32 %v2612, %v2613
      %v2615 = vsel %vm1599, %v2514, 0.0
      %v2616 = vadd.f32 %v2614, %v2615
      %v2617 = vsel %vm1599, %v2515, 0.0
      %v2618 = vadd.f32 %v2616, %v2617
      %v2619 = vsel %vm1599, %v2516, 0.0
      %v2620 = vadd.f32 %v2618, %v2619
      %v2621 = vsel %vm1599, %v2517, 0.0
      %v2622 = vadd.f32 %v2620, %v2621
      %v2623 = vsel %vm1599, %v2518, 0.0
      %v2624 = vadd.f32 %v2622, %v2623
      %v2625 = vsel %vm1599, %v2519, 0.0
      %v2626 = vadd.f32 %v2624, %v2625
      %v2627 = vsel %vm1599, %v2520, 0.0
      %v2628 = vadd.f32 %v2626, %v2627
      %v2629 = vsel %vm1599, %v2521, 0.0
      %v2630 = vadd.f32 %v2628, %v2629
      %v2631 = vsel %vm1599, %v2522, 0.0
      %v2632 = vadd.f32 %v2630, %v2631
      %v2633 = vsel %vm1599, %v2523, 0.0
      %v2634 = vadd.f32 %v2632, %v2633
      %v2635 = vsel %vm1599, %v2524, 0.0
      %v2636 = vadd.f32 %v2634, %v2635
      %v2637 = vsel %vm1599, %v2525, 0.0
      %v2638 = vadd.f32 %v2636, %v2637
      %v2639 = vsel %vm1599, %v2526, 0.0
      %v2640 = vadd.f32 %v2638, %v2639
      %v2641 = vsel %vm1599, %v2527, 0.0
      %v2642 = vadd.f32 %v2640, %v2641
      %v2643 = vsel %vm1599, %v2528, 0.0
      %v2644 = vadd.f32 %v2642, %v2643
      %v2645 = vsel %vm1599, %v2529, 0.0
      %v2646 = vadd.f32 %v2644, %v2645
      %v2647 = vsel %vm1599, %v2530, 0.0
      %v2648 = vadd.f32 %v2646, %v2647
      %v2649 = vsel %vm1599, %v2531, 0.0
      %v2650 = vadd.f32 %v2648, %v2649
      %v2651 = vrot.slane %v2650, 4
      %v2652 = vadd.f32 %v2650, %v2651
      %v2653 = vrot.slane %v2652, 2
      %v2654 = vadd.f32 %v2652, %v2653
      %v2655 = vrot.slane %v2654, 1
      %v2656 = vadd.f32 %v2654, %v2655
      %vm2657 = vcmask 1040384
      %v2658 = vsel %vm2657, %v2471, %v2656
      %vm2659 = vcmask 58368
      %2660 = vst.msk [vmem:[%s181] sm:$0x3] %vm2659, %v2658
      %v2661 = vpack.c.bf16 %v2198, %v2198
      %v2662 = vpack.c.bf16 %v2200, %v2200
      %v2663 = vpack.c.bf16 %v2203, %v2203
      %v2664 = vpack.c.bf16 %v2205, %v2205
      %v2665 = vpack.c.bf16 %v2208, %v2208
      %v2666 = vpack.c.bf16 %v2210, %v2210
      %v2667 = vpack.c.bf16 %v2213, %v2213
      %v2668 = vpack.c.bf16 %v2215, %v2215
      %v2669 = vpack.c.bf16 %v2218, %v2218
      %v2670 = vpack.c.bf16 %v2220, %v2220
      %v2671 = vpack.c.bf16 %v2223, %v2223
      %v2672 = vpack.c.bf16 %v2225, %v2225
      %v2673 = vpack.c.bf16 %v2228, %v2228
      %v2674 = vpack.c.bf16 %v2230, %v2230
      %v2675 = vpack.c.bf16 %v2233, %v2233
      %v2676 = vpack.c.bf16 %v2235, %v2235
      %v2677 = vpack.c.bf16 %v2238, %v2238
      %v2678 = vpack.c.bf16 %v2240, %v2240
      %v2679 = vpack.c.bf16 %v2243, %v2243
      %v2680 = vpack.c.bf16 %v2245, %v2245
      %v2681 = vpack.c.bf16 %v2248, %v2248
      %v2682 = vpack.c.bf16 %v2250, %v2250
      %v2683 = vpack.c.bf16 %v2253, %v2253
      %v2684 = vpack.c.bf16 %v2255, %v2255
      %v2685 = vpack.c.bf16 %v2258, %v2258
      %v2686 = vpack.c.bf16 %v2260, %v2260
      %v2687 = vpack.c.bf16 %v2263, %v2263
      %v2688 = vpack.c.bf16 %v2265, %v2265
      %v2689 = vpack.c.bf16 %v2268, %v2268
      %v2690 = vpack.c.bf16 %v2270, %v2270
      %v2691 = vpack.c.bf16 %v2273, %v2273
      %v2692 = vpack.c.bf16 %v2275, %v2275
      %v2693 = vpack.c.bf16 %v2278, %v2278
      %v2694 = vpack.c.bf16 %v2280, %v2280
      %v2695 = vpack.c.bf16 %v2283, %v2283
      %v2696 = vpack.c.bf16 %v2285, %v2285
      %v2697 = vpack.c.bf16 %v2288, %v2288
      %v2698 = vpack.c.bf16 %v2290, %v2290
      %v2699 = vpack.c.bf16 %v2293, %v2293
      %v2700 = vpack.c.bf16 %v2295, %v2295
      %v2701 = vpack.c.bf16 %v2298, %v2298
      %v2702 = vpack.c.bf16 %v2300, %v2300
      %v2703 = vpack.c.bf16 %v2303, %v2303
      %v2704 = vpack.c.bf16 %v2305, %v2305
      %v2705 = vpack.c.bf16 %v2308, %v2308
      %v2706 = vpack.c.bf16 %v2310, %v2310
      %v2707 = vpack.c.bf16 %v2313, %v2313
      %v2708 = vpack.c.bf16 %v2315, %v2315
      %v2709 = vpack.c.bf16 %v2318, %v2318
      %v2710 = vpack.c.bf16 %v2320, %v2320
      %v2711 = vpack.c.bf16 %v2323, %v2323
      %v2712 = vpack.c.bf16 %v2325, %v2325
      %v2713 = vpack.c.bf16 %v2328, %v2328
      %v2714 = vpack.c.bf16 %v2330, %v2330
      %v2715 = vpack.c.bf16 %v2333, %v2333
      %v2716 = vpack.c.bf16 %v2335, %v2335
      %v2717 = vpack.c.bf16 %v2338, %v2338
      %v2718 = vpack.c.bf16 %v2340, %v2340
      %v2719 = vpack.c.bf16 %v2343, %v2343
      %v2720 = vpack.c.bf16 %v2345, %v2345
      %vm2721 = vcmask 60416
      %2722 = vst.msk [vmem:[%s177] sm:$0xf] %vm2721, %v2661
      %2723 = vst.msk [vmem:[%s177 + $0x4] sm:$0xf] %vm2721, %v2662
      %2724 = vst.msk [vmem:[%s177 + $0x8] sm:$0xf] %vm2721, %v2663
      %2725 = vst.msk [vmem:[%s177 + $0xc] sm:$0xf] %vm2721, %v2664
      %2726 = vst.msk [vmem:[%s177 + $0x10] sm:$0xf] %vm2721, %v2665
      %2727 = vst.msk [vmem:[%s177 + $0x14] sm:$0xf] %vm2721, %v2666
      %2728 = vst.msk [vmem:[%s177 + $0x18] sm:$0xf] %vm2721, %v2667
      %2729 = vst.msk [vmem:[%s177 + $0x1c] sm:$0xf] %vm2721, %v2668
      %2730 = vst.msk [vmem:[%s177 + $0x20] sm:$0xf] %vm2721, %v2669
      %2731 = vst.msk [vmem:[%s177 + $0x24] sm:$0xf] %vm2721, %v2670
      %2732 = vst.msk [vmem:[%s177 + $0x28] sm:$0xf] %vm2721, %v2671
      %2733 = vst.msk [vmem:[%s177 + $0x2c] sm:$0xf] %vm2721, %v2672
      %2734 = vst.msk [vmem:[%s177 + $0x30] sm:$0xf] %vm2721, %v2673
      %2735 = vst.msk [vmem:[%s177 + $0x34] sm:$0xf] %vm2721, %v2674
      %2736 = vst.msk [vmem:[%s177 + $0x38] sm:$0xf] %vm2721, %v2675
      %2737 = vst.msk [vmem:[%s177 + $0x3c] sm:$0xf] %vm2721, %v2676
      %2738 = vst.msk [vmem:[%s177 + $0x40] sm:$0xf] %vm2721, %v2677
      %2739 = vst.msk [vmem:[%s177 + $0x44] sm:$0xf] %vm2721, %v2678
      %2740 = vst.msk [vmem:[%s177 + $0x48] sm:$0xf] %vm2721, %v2679
      %2741 = vst.msk [vmem:[%s177 + $0x4c] sm:$0xf] %vm2721, %v2680
      %2742 = vst.msk [vmem:[%s177 + $0x50] sm:$0xf] %vm2721, %v2681
      %2743 = vst.msk [vmem:[%s177 + $0x54] sm:$0xf] %vm2721, %v2682
      %2744 = vst.msk [vmem:[%s177 + $0x58] sm:$0xf] %vm2721, %v2683
      %2745 = vst.msk [vmem:[%s177 + $0x5c] sm:$0xf] %vm2721, %v2684
      %2746 = vst.msk [vmem:[%s177 + $0x60] sm:$0xf] %vm2721, %v2685
      %2747 = vst.msk [vmem:[%s177 + $0x64] sm:$0xf] %vm2721, %v2686
      %2748 = vst.msk [vmem:[%s177 + $0x68] sm:$0xf] %vm2721, %v2687
      %2749 = vst.msk [vmem:[%s177 + $0x6c] sm:$0xf] %vm2721, %v2688
      %2750 = vst.msk [vmem:[%s177 + $0x70] sm:$0xf] %vm2721, %v2689
      %2751 = vst.msk [vmem:[%s177 + $0x74] sm:$0xf] %vm2721, %v2690
      %2752 = vst.msk [vmem:[%s177 + $0x78] sm:$0xf] %vm2721, %v2691
      %2753 = vst.msk [vmem:[%s177 + $0x7c] sm:$0xf] %vm2721, %v2692
      %2754 = vst.msk [vmem:[%s177 + $0x80] sm:$0xf] %vm2721, %v2693
      %2755 = vst.msk [vmem:[%s177 + $0x84] sm:$0xf] %vm2721, %v2694
      %2756 = vst.msk [vmem:[%s177 + $0x88] sm:$0xf] %vm2721, %v2695
      %2757 = vst.msk [vmem:[%s177 + $0x8c] sm:$0xf] %vm2721, %v2696
      %2758 = vst.msk [vmem:[%s177 + $0x90] sm:$0xf] %vm2721, %v2697
      %2759 = vst.msk [vmem:[%s177 + $0x94] sm:$0xf] %vm2721, %v2698
      %2760 = vst.msk [vmem:[%s177 + $0x98] sm:$0xf] %vm2721, %v2699
      %2761 = vst.msk [vmem:[%s177 + $0x9c] sm:$0xf] %vm2721, %v2700
      %2762 = vst.msk [vmem:[%s177 + $0xa0] sm:$0xf] %vm2721, %v2701
      %2763 = vst.msk [vmem:[%s177 + $0xa4] sm:$0xf] %vm2721, %v2702
      %2764 = vst.msk [vmem:[%s177 + $0xa8] sm:$0xf] %vm2721, %v2703
      %2765 = vst.msk [vmem:[%s177 + $0xac] sm:$0xf] %vm2721, %v2704
      %2766 = vst.msk [vmem:[%s177 + $0xb0] sm:$0xf] %vm2721, %v2705
      %2767 = vst.msk [vmem:[%s177 + $0xb4] sm:$0xf] %vm2721, %v2706
      %2768 = vst.msk [vmem:[%s177 + $0xb8] sm:$0xf] %vm2721, %v2707
      %2769 = vst.msk [vmem:[%s177 + $0xbc] sm:$0xf] %vm2721, %v2708
      %2770 = vst.msk [vmem:[%s177 + $0xc0] sm:$0xf] %vm2721, %v2709
      %2771 = vst.msk [vmem:[%s177 + $0xc4] sm:$0xf] %vm2721, %v2710
      %2772 = vst.msk [vmem:[%s177 + $0xc8] sm:$0xf] %vm2721, %v2711
      %2773 = vst.msk [vmem:[%s177 + $0xcc] sm:$0xf] %vm2721, %v2712
      %2774 = vst.msk [vmem:[%s177 + $0xd0] sm:$0xf] %vm2721, %v2713
      %2775 = vst.msk [vmem:[%s177 + $0xd4] sm:$0xf] %vm2721, %v2714
      %2776 = vst.msk [vmem:[%s177 + $0xd8] sm:$0xf] %vm2721, %v2715
      %2777 = vst.msk [vmem:[%s177 + $0xdc] sm:$0xf] %vm2721, %v2716
      %2778 = vst.msk [vmem:[%s177 + $0xe0] sm:$0xf] %vm2721, %v2717
      %2779 = vst.msk [vmem:[%s177 + $0xe4] sm:$0xf] %vm2721, %v2718
      %2780 = vst.msk [vmem:[%s177 + $0xe8] sm:$0xf] %vm2721, %v2719
      %2781 = vst.msk [vmem:[%s177 + $0xec] sm:$0xf] %vm2721, %v2720
      %p2782 = scmp.lt.s32.totalorder %s15, 1
      %s2783 = scalar_select %p2782, %s15, 1
      %s2784 = smul.addr %s2783, 60
      %s2785 = smul.addr %s2784, 4
      %s2786 = scalar_lea.vmem %s2, %s2785
      %p2787 = scmp.lt.s32.totalorder %s15, 1
      %s2788 = scalar_select %p2787, %s15, 1
      %s2789 = smul.addr %s2788, 2
      %s2790 = scalar_lea.vmem %s3, %s2789
      // Predicated region
      $region29: #{tconv_layer_forward.6} parent=27 // pred_check
        %p2791 = pneg %p80
      $region30: #{tconv_layer_forward.6} parent=27 // pred_check_branch
        %2793 = sbr.rel (%p2791) target = $region32
      $region31: #{tconv_layer_forward.6} parent=27 // pred_region
        _
      $region32: #{tconv_layer_forward.6} parent=27 // pred_fallthru
        _
      // Predicated region
      $region33: #{tconv_layer_forward.6} parent=27 // pred_check
        %p2794 = pneg %p106
      $region34: #{tconv_layer_forward.6} parent=27 // pred_check_branch
        %2796 = sbr.rel (%p2794) target = $region36
      $region35: #{tconv_layer_forward.6} parent=27 // pred_region
        _
      $region36: #{tconv_layer_forward.6} parent=27 // pred_fallthru
        _
    $region28: #{tconv_layer_forward.6} parent=5 // pred_fallthru
      _
    %p2797 = scmp.le.s32.totalorder 2, %s10
    // Predicated region
    $region37: #{tconv_layer_forward.6} parent=5 // pred_check
      %p2798 = pneg %p2797
    $region38: #{tconv_layer_forward.6} parent=5 // pred_check_branch
      %2800 = sbr.rel (%p2798) target = $region40
    $region39: #{tconv_layer_forward.6} parent=5 // pred_region
      %s2801 = ssub.s32 %s10, 2
      // Predicated region
      $region41: #{tconv_layer_forward.6} parent=39 // pred_check
        %p2802 = pneg %p86
      $region42: #{tconv_layer_forward.6} parent=39 // pred_check_branch
        %2804 = sbr.rel (%p2802) target = $region44
      $region43: #{tconv_layer_forward.6} parent=39 // pred_region
        %p2805 = scmp.lt.s32.totalorder %s16, 1
        %s2806 = scalar_select %p2805, %s16, 1
        %s2807 = smul.addr %s2806, 60
        %s2808 = smul.addr %s2807, 4
        %s2809 = scalar_lea.vmem %s2, %s2808
      $region44: #{tconv_layer_forward.6} parent=39 // pred_fallthru
        _
      // Predicated region
      $region45: #{tconv_layer_forward.6} parent=39 // pred_check
        %p2810 = pneg %p112
      $region46: #{tconv_layer_forward.6} parent=39 // pred_check_branch
        %2812 = sbr.rel (%p2810) target = $region48
      $region47: #{tconv_layer_forward.6} parent=39 // pred_region
        %p2813 = scmp.lt.s32.totalorder %s16, 1
        %s2814 = scalar_select %p2813, %s16, 1
        %s2815 = smul.addr %s2814, 2
        %s2816 = scalar_lea.vmem %s3, %s2815
      $region48: #{tconv_layer_forward.6} parent=39 // pred_fallthru
        _
    $region40: #{tconv_layer_forward.6} parent=5 // pred_fallthru
      _
  $region6: #{tconv_layer_forward.6} parent=0 // loop_footer
    %s14 = sadd.s32 1, %s10
  $region7: #{tconv_layer_forward.6} parent=0 // loop_footer_branch
    %9 = sbr.rel target = $region3
  $region8: #{tconv_layer_forward.6} parent=0 // loop_exit
    _

</llo_original>
